<compile_context>
chip_gen: v7x
topology: tpu7x:2x2x1
jax: 0.10.0
libtpu: 0.0.40
codegen_flags: <defaults>
</compile_context>

<pallas_src>
import functools

import numpy as np
import jax
import jax.numpy as jnp
from jax import lax
from jax.experimental import pallas as pl
from jax.experimental.pallas import tpu as pltpu


# ----------------------------------------------------------------------------
# Fused kernel: projections + 4 attentions/scrambles + aggregation + out_conv
# ----------------------------------------------------------------------------
def _ccafx_kernel(x_ref, xd_ref, xa_ref, w_ref, b_ref, wo_ref, bo_ref, gamma_ref,
                  out_ref, *, H, W, C, C8):
    HW = H * W

    xb = x_ref[0]            # (HW, C) f32, natural (h, w) row-major pixel order
    xdb = xd_ref[0]          # (HW, C) f32, d-shuffled pixels: row a*W+b == pixel b*H+a
    xab = xa_ref[0]          # (HW, C) f32, a-shuffled pixels: row a*H+b == pixel b*W+a

    w_all = w_ref[...]       # (C, 2*C8 + C) bf16   [wq | wk | wv]
    b_all = b_ref[...]       # (1, 2*C8 + C) f32

    def project(xm):         # fused q/k/v 1x1 conv (bf16 MXU, f32 accumulation)
        return jnp.dot(xm.astype(jnp.bfloat16), w_all,
                       preferred_element_type=jnp.float32) + b_all

    p_n = project(xb)
    p_d = project(xdb)
    p_a = project(xab)

    q = p_n[:, :C8]
    k = p_n[:, C8:2 * C8]
    v = p_n[:, 2 * C8:]
    q_d = p_d[:, :C8]
    v_perm = p_d[:, 2 * C8:]       # v_perm[h*W + w] == v[w*H + h]
    q_a = p_a[:, :C8]
    k_c = p_a[:, C8:2 * C8]        # k_c[w*H + hc] == k[hc*W + w]

    qb, kb = q.astype(jnp.bfloat16), k.astype(jnp.bfloat16)
    qdb = q_d.astype(jnp.bfloat16)
    qab, kcb = q_a.astype(jnp.bfloat16), k_c.astype(jnp.bfloat16)

    def energy(qq, kk):            # (HW, C8) x (HW, C8) -> (HW, HW)
        return lax.dot_general(qq, kk, (((1,), (1,)), ((), ())),
                               preferred_element_type=jnp.float32)

    def grouped_softmax(e):        # softmax over groups of W consecutive columns
        chunks = []
        for g in range(H):
            ch = e[:, g * W:(g + 1) * W]
            m = jnp.max(ch, axis=-1, keepdims=True)
            p = jnp.exp(ch - m)
            s = jnp.sum(p, axis=-1, keepdims=True)
            chunks.append(p * pl.reciprocal(s, approx=True))
        return jnp.concatenate(chunks, axis=-1)

    def grouped_stats(e):          # per-(row, group) max and sum-exp -> (HW, H) each
        ms, ss = [], []
        for g in range(H):
            ch = e[:, g * W:(g + 1) * W]
            m = jnp.max(ch, axis=-1, keepdims=True)
            ms.append(m)
            ss.append(jnp.sum(jnp.exp(ch - m), axis=-1, keepdims=True))
        return jnp.concatenate(ms, axis=-1), jnp.concatenate(ss, axis=-1)

    # Natural attention A[q_idx, h*W + w].
    attn = grouped_softmax(energy(qb, kb))
    # Query-row-shuffled attention: A_d[s*W + m, j] == A[m*H + s, j].
    attn_d = grouped_softmax(energy(qdb, kb))
    # Query- and key-shuffled attention: A_a[t*H + m, w*H + hc] == A[m*W + t, hc*W + w].
    # Values come from E_ca = q_a @ k_c^T; the softmax stats (per original key
    # group) come from the natural-key-order energy of the shuffled queries and
    # are broadcast with a lane tile of period H (column j' belongs to group j'%H).
    m_a, s_a = grouped_stats(energy(qab, kb))
    e_ca = energy(qab, kcb)
    m_t = jnp.concatenate([m_a] * W, axis=-1)      # (HW, HW)
    s_t = jnp.concatenate([s_a] * W, axis=-1)
    attn_a = jnp.exp(e_ca - m_t) * pl.reciprocal(s_t, approx=True)

    # The remaining criss-cross scramble is a block-local transpose, done fully in
    # VMEM: one 2-D transpose + static block slices + concats.
    #   l_d[s*W + wc, h*W + m] = attn_d[s*W + m, h*W + wc]
    #   l_a[t*H + hc, w*H + m] = attn_a[t*H + m, w*H + hc]
    adT = jnp.transpose(attn_d)
    aaT = jnp.transpose(attn_a)
    l_d = jnp.concatenate(
        [jnp.concatenate([adT[h * W:(h + 1) * W, s * W:(s + 1) * W]
                          for h in range(H)], axis=1)
         for s in range(H)], axis=0)
    l_a = jnp.concatenate(
        [jnp.concatenate([aaT[w * H:(w + 1) * H, t * H:(t + 1) * H]
                          for w in range(W)], axis=1)
         for t in range(W)], axis=0)

    # Batched aggregation: one MXU matmul for the h/d/a paths, one for the v path.
    vb = v.astype(jnp.bfloat16)
    vpb = v_perm.astype(jnp.bfloat16)
    big_lhs = jnp.concatenate([attn, l_d, l_a], axis=0).astype(jnp.bfloat16)  # (3HW, HW)
    big = jnp.dot(big_lhs, vb, preferred_element_type=jnp.float32)            # (3HW, C)
    r_h = big[0:HW]
    r_d = big[HW:2 * HW]
    r_a = big[2 * HW:3 * HW]
    r_v = jnp.dot(attn.astype(jnp.bfloat16), vpb, preferred_element_type=jnp.float32)

    # out_conv as four (C, C) blocks (no (HW, 4C) concat), then gamma * out + x.
    wo = wo_ref[...]                               # (4C, C) bf16
    o = jnp.dot(r_h.astype(jnp.bfloat16), wo[0:C, :],
                preferred_element_type=jnp.float32)
    o += jnp.dot(r_v.astype(jnp.bfloat16), wo[C:2 * C, :],
                 preferred_element_type=jnp.float32)
    o += jnp.dot(r_d.astype(jnp.bfloat16), wo[2 * C:3 * C, :],
                 preferred_element_type=jnp.float32)
    o += jnp.dot(r_a.astype(jnp.bfloat16), wo[3 * C:4 * C, :],
                 preferred_element_type=jnp.float32)
    o += bo_ref[...]
    out_ref[0] = gamma_ref[0] * o + xb


# ----------------------------------------------------------------------------
# Wrapper
# ----------------------------------------------------------------------------
def criss_cross_attention_fake_x(x, params):
    """x: (B, C, H, W) float32.  Returns (B, C, H, W) float32."""
    B, C, H, W = x.shape
    HW = H * W
    C8 = params["wq"].shape[0]

    xf = x.astype(jnp.float32)
    x_flat = jnp.transpose(xf, (0, 2, 3, 1)).reshape(B, HW, C)
    # Cheap (HW, C)-sized row-shuffled copies of the input; they let the fused
    # kernel produce the scrambled attentions directly in the right row order so
    # the (HW, HW) attention itself never leaves VMEM.
    x_d = jnp.transpose(x_flat.reshape(B, W, H, C), (0, 2, 1, 3)).reshape(B, HW, C)
    x_a = jnp.transpose(x_flat.reshape(B, H, W, C), (0, 2, 1, 3)).reshape(B, HW, C)

    w_all = jnp.concatenate([params["wq"].T, params["wk"].T, params["wv"].T],
                            axis=1).astype(jnp.bfloat16)              # (C, 2*C8+C)
    b_all = jnp.concatenate([params["bq"], params["bk"], params["bv"]]
                            ).reshape(1, 2 * C8 + C).astype(jnp.float32)
    wo_t = params["wo"].T.astype(jnp.bfloat16)                        # (4C, C)
    bo2 = params["bo"].reshape(1, C).astype(jnp.float32)
    gamma = params["gamma"].reshape(1).astype(jnp.float32)

    kernel = functools.partial(_ccafx_kernel, H=H, W=W, C=C, C8=C8)

    out_flat = pl.pallas_call(
        kernel,
        out_shape=jax.ShapeDtypeStruct((B, HW, C), jnp.float32),
        grid=(B,),
        in_specs=[
            pl.BlockSpec((1, HW, C), lambda b: (b, 0, 0)),       # x (natural)
            pl.BlockSpec((1, HW, C), lambda b: (b, 0, 0)),       # x (d-shuffle)
            pl.BlockSpec((1, HW, C), lambda b: (b, 0, 0)),       # x (a-shuffle)
            pl.BlockSpec((C, 2 * C8 + C), lambda b: (0, 0)),     # [wq|wk|wv]
            pl.BlockSpec((1, 2 * C8 + C), lambda b: (0, 0)),     # [bq|bk|bv]
            pl.BlockSpec((4 * C, C), lambda b: (0, 0)),          # wo^T
            pl.BlockSpec((1, C), lambda b: (0, 0)),              # bo
            pl.BlockSpec(memory_space=pltpu.MemorySpace.SMEM),   # gamma scalar
        ],
        out_specs=pl.BlockSpec((1, HW, C), lambda b: (b, 0, 0)),
        compiler_params=pltpu.CompilerParams(
            dimension_semantics=("parallel",),
            vmem_limit_bytes=48 * 1024 * 1024,
        ),
    )(x_flat, x_d, x_a, w_all, b_all, wo_t, bo2, gamma)

    return jnp.transpose(out_flat.reshape(B, H, W, C), (0, 3, 1, 2))


# ----------------------------------------------------------------------------
# Pure-JAX reference (mirrors the PyTorch forward literally, NCHW)
# ----------------------------------------------------------------------------
def reference(x, params):
    B, C, H, W = x.shape
    HW = H * W

    def conv1x1(inp, w, b):
        return jnp.einsum("oc,bchw->bohw", w, inp) + b[None, :, None, None]

    q = conv1x1(x, params["wq"], params["bq"]).reshape(B, -1, HW).transpose(0, 2, 1)
    k = conv1x1(x, params["wk"], params["bk"]).reshape(B, -1, HW)
    v = conv1x1(x, params["wv"], params["bv"]).reshape(B, -1, HW)

    energy = jnp.matmul(q, k).reshape(B, HW, H, W)
    attention = jax.nn.softmax(energy, axis=-1)

    def proj(perm):
        m = jnp.transpose(attention, perm).reshape(B, HW, HW)
        return jnp.matmul(v, m).reshape(B, -1, H, W)

    ph = proj((0, 2, 3, 1))
    pv = proj((0, 3, 2, 1))
    pd = proj((0, 2, 1, 3))
    pa = proj((0, 3, 1, 2))
    out = jnp.concatenate([ph, pv, pd, pa], axis=1)
    out = conv1x1(out, params["wo"], params["bo"])
    return params["gamma"][0] * out + x


# ----------------------------------------------------------------------------
if __name__ == "__main__":
    B, C, H, W = 2, 16, 8, 8          # in_channels=16 -> query/key channels = 2
    C8 = C // 8

    key = jax.random.PRNGKey(0)
    ks = jax.random.split(key, 10)
    params = {
        "wq": 0.1 * jax.random.normal(ks[0], (C8, C), jnp.float32),
        "bq": 0.01 * jax.random.normal(ks[1], (C8,), jnp.float32),
        "wk": 0.1 * jax.random.normal(ks[2], (C8, C), jnp.float32),
        "bk": 0.01 * jax.random.normal(ks[3], (C8,), jnp.float32),
        "wv": 0.1 * jax.random.normal(ks[4], (C, C), jnp.float32),
        "bv": 0.01 * jax.random.normal(ks[5], (C,), jnp.float32),
        "wo": 0.1 * jax.random.normal(ks[6], (C, 4 * C), jnp.float32),
        "bo": 0.01 * jax.random.normal(ks[7], (C,), jnp.float32),
        # PyTorch initializes gamma to 0; use a nonzero value so the attention
        # path actually contributes to the output in this synthetic test.
        "gamma": jnp.array([0.5], jnp.float32),
    }

    x = jax.random.normal(ks[8], (B, C, H, W), jnp.float32)

    out = criss_cross_attention_fake_x(x, params)
    out = jax.block_until_ready(out)

    ref = jax.block_until_ready(reference(x, params))
    assert out.shape == (B, C, H, W)
    # bf16 MXU matmuls + approx reciprocal -> relax tolerance vs the f32 reference.
    assert np.allclose(np.asarray(out), np.asarray(ref), rtol=2e-2, atol=2e-2), (
        "mismatch vs reference: max abs diff = %g"
        % float(np.max(np.abs(np.asarray(out) - np.asarray(ref))))
    )

    print("KERNEL_OK")
</pallas_src>

<mosaic_0001>
module attributes {stable_mosaic.version = 11 : i64} {
  func.func @_ccafx_kernel(%arg0: i32, %arg1: memref<1x64x16xf32, #tpu.memory_space<vmem>>, %arg2: memref<1x64x16xf32, #tpu.memory_space<vmem>>, %arg3: memref<1x64x16xf32, #tpu.memory_space<vmem>>, %arg4: memref<16x20xbf16, #tpu.memory_space<vmem>>, %arg5: memref<1x20xf32, #tpu.memory_space<vmem>>, %arg6: memref<64x16xbf16, #tpu.memory_space<vmem>>, %arg7: memref<1x16xf32, #tpu.memory_space<vmem>>, %arg8: memref<1xf32, #tpu.memory_space<smem>>, %arg9: memref<1x64x16xf32, #tpu.memory_space<vmem>>) attributes {dimension_semantics = [#tpu.dimension_semantics<parallel>], iteration_bounds = array<i64: 2>, scalar_prefetch = 0 : i64, scratch_operands = 0 : i64, tpu.core_type = #tpu.core_type<tc>, window_params = [{transform_indices = @transform_0, window_bounds = array<i64: 1, 64, 16>}, {transform_indices = @transform_1, window_bounds = array<i64: 1, 64, 16>}, {transform_indices = @transform_2, window_bounds = array<i64: 1, 64, 16>}, {pipeline_mode = #tpu.pipeline_mode<synchronous>, transform_indices = @transform_3, window_bounds = array<i64: 16, 20>}, {pipeline_mode = #tpu.pipeline_mode<synchronous>, transform_indices = @transform_4, window_bounds = array<i64: 1, 20>}, {pipeline_mode = #tpu.pipeline_mode<synchronous>, transform_indices = @transform_5, window_bounds = array<i64: 64, 16>}, {pipeline_mode = #tpu.pipeline_mode<synchronous>, transform_indices = @transform_6, window_bounds = array<i64: 1, 16>}, {transform_indices = @transform_7, window_bounds = array<i64: 1>}, {transform_indices = @transform_8, window_bounds = array<i64: 1, 64, 16>}]} {
    %c0 = arith.constant 0 : index
    %c0_0 = arith.constant 0 : index
    %c0_1 = arith.constant 0 : index
    %0 = vector.load %arg1[%c0, %c0_0, %c0_1] : memref<1x64x16xf32, #tpu.memory_space<vmem>>, vector<1x64x16xf32>
    %1 = vector.shape_cast %0 : vector<1x64x16xf32> to vector<64x16xf32>
    %c0_2 = arith.constant 0 : index
    %c0_3 = arith.constant 0 : index
    %c0_4 = arith.constant 0 : index
    %2 = vector.load %arg2[%c0_2, %c0_3, %c0_4] : memref<1x64x16xf32, #tpu.memory_space<vmem>>, vector<1x64x16xf32>
    %3 = vector.shape_cast %2 : vector<1x64x16xf32> to vector<64x16xf32>
    %c0_5 = arith.constant 0 : index
    %c0_6 = arith.constant 0 : index
    %c0_7 = arith.constant 0 : index
    %4 = vector.load %arg3[%c0_5, %c0_6, %c0_7] : memref<1x64x16xf32, #tpu.memory_space<vmem>>, vector<1x64x16xf32>
    %5 = vector.shape_cast %4 : vector<1x64x16xf32> to vector<64x16xf32>
    %c0_8 = arith.constant 0 : index
    %c0_9 = arith.constant 0 : index
    %6 = vector.load %arg4[%c0_8, %c0_9] : memref<16x20xbf16, #tpu.memory_space<vmem>>, vector<16x20xbf16>
    %c0_10 = arith.constant 0 : index
    %c0_11 = arith.constant 0 : index
    %7 = vector.load %arg5[%c0_10, %c0_11] : memref<1x20xf32, #tpu.memory_space<vmem>>, vector<1x20xf32>
    %8 = arith.truncf %1 : vector<64x16xf32> to vector<64x16xbf16>
    %cst = arith.constant dense<0.000000e+00> : vector<64x20xf32>
    %9 = tpu.matmul %8, %6, %cst {dimension_numbers = #tpu.dot_dimension_numbers<[1], [0], [0], [1], [0, 0, 1, 1], [], []>} : vector<64x16xbf16>, vector<16x20xbf16>, vector<64x20xf32> -> vector<64x20xf32>
    %10 = vector.broadcast %7 : vector<1x20xf32> to vector<64x20xf32>
    %11 = arith.addf %9, %10 : vector<64x20xf32>
    %12 = arith.truncf %3 : vector<64x16xf32> to vector<64x16xbf16>
    %cst_12 = arith.constant dense<0.000000e+00> : vector<64x20xf32>
    %13 = tpu.matmul %12, %6, %cst_12 {dimension_numbers = #tpu.dot_dimension_numbers<[1], [0], [0], [1], [0, 0, 1, 1], [], []>} : vector<64x16xbf16>, vector<16x20xbf16>, vector<64x20xf32> -> vector<64x20xf32>
    %14 = vector.broadcast %7 : vector<1x20xf32> to vector<64x20xf32>
    %15 = arith.addf %13, %14 : vector<64x20xf32>
    %16 = arith.truncf %5 : vector<64x16xf32> to vector<64x16xbf16>
    %cst_13 = arith.constant dense<0.000000e+00> : vector<64x20xf32>
    %17 = tpu.matmul %16, %6, %cst_13 {dimension_numbers = #tpu.dot_dimension_numbers<[1], [0], [0], [1], [0, 0, 1, 1], [], []>} : vector<64x16xbf16>, vector<16x20xbf16>, vector<64x20xf32> -> vector<64x20xf32>
    %18 = vector.broadcast %7 : vector<1x20xf32> to vector<64x20xf32>
    %19 = arith.addf %17, %18 : vector<64x20xf32>
    %20 = vector.extract_strided_slice %11 {offsets = [0, 0], sizes = [64, 2], strides = [1, 1]} : vector<64x20xf32> to vector<64x2xf32>
    %21 = vector.extract_strided_slice %11 {offsets = [0, 2], sizes = [64, 2], strides = [1, 1]} : vector<64x20xf32> to vector<64x2xf32>
    %22 = vector.extract_strided_slice %11 {offsets = [0, 4], sizes = [64, 16], strides = [1, 1]} : vector<64x20xf32> to vector<64x16xf32>
    %23 = vector.extract_strided_slice %15 {offsets = [0, 0], sizes = [64, 2], strides = [1, 1]} : vector<64x20xf32> to vector<64x2xf32>
    %24 = vector.extract_strided_slice %15 {offsets = [0, 4], sizes = [64, 16], strides = [1, 1]} : vector<64x20xf32> to vector<64x16xf32>
    %25 = vector.extract_strided_slice %19 {offsets = [0, 0], sizes = [64, 2], strides = [1, 1]} : vector<64x20xf32> to vector<64x2xf32>
    %26 = vector.extract_strided_slice %19 {offsets = [0, 2], sizes = [64, 2], strides = [1, 1]} : vector<64x20xf32> to vector<64x2xf32>
    %27 = arith.truncf %20 : vector<64x2xf32> to vector<64x2xbf16>
    %28 = arith.truncf %21 : vector<64x2xf32> to vector<64x2xbf16>
    %29 = arith.truncf %23 : vector<64x2xf32> to vector<64x2xbf16>
    %30 = arith.truncf %25 : vector<64x2xf32> to vector<64x2xbf16>
    %31 = arith.truncf %26 : vector<64x2xf32> to vector<64x2xbf16>
    %cst_14 = arith.constant dense<0.000000e+00> : vector<64x64xf32>
    %32 = tpu.matmul %27, %28, %cst_14 {dimension_numbers = #tpu.dot_dimension_numbers<[1], [1], [0], [0], [0, 0, 1, 0], [], []>} : vector<64x2xbf16>, vector<64x2xbf16>, vector<64x64xf32> -> vector<64x64xf32>
    %33 = vector.extract_strided_slice %32 {offsets = [0, 0], sizes = [64, 8], strides = [1, 1]} : vector<64x64xf32> to vector<64x8xf32>
    %cst_15 = arith.constant dense<0xFF800000> : vector<64xf32>
    %34 = vector.multi_reduction <maximumf>, %33, %cst_15 [1] : vector<64x8xf32> to vector<64xf32>
    %35 = vector.shape_cast %34 : vector<64xf32> to vector<64x1xf32>
    %36 = vector.broadcast %35 : vector<64x1xf32> to vector<64x8xf32>
    %37 = arith.subf %33, %36 : vector<64x8xf32>
    %38 = math.exp %37 : vector<64x8xf32>
    %cst_16 = arith.constant dense<0.000000e+00> : vector<64xf32>
    %39 = vector.multi_reduction <add>, %38, %cst_16 [1] : vector<64x8xf32> to vector<64xf32>
    %40 = vector.shape_cast %39 : vector<64xf32> to vector<64x1xf32>
    %41 = tpu.reciprocal %40 {approx = true} : vector<64x1xf32> -> vector<64x1xf32>
    %42 = vector.broadcast %41 : vector<64x1xf32> to vector<64x8xf32>
    %43 = arith.mulf %38, %42 : vector<64x8xf32>
    %44 = vector.extract_strided_slice %32 {offsets = [0, 8], sizes = [64, 8], strides = [1, 1]} : vector<64x64xf32> to vector<64x8xf32>
    %cst_17 = arith.constant dense<0xFF800000> : vector<64xf32>
    %45 = vector.multi_reduction <maximumf>, %44, %cst_17 [1] : vector<64x8xf32> to vector<64xf32>
    %46 = vector.shape_cast %45 : vector<64xf32> to vector<64x1xf32>
    %47 = vector.broadcast %46 : vector<64x1xf32> to vector<64x8xf32>
    %48 = arith.subf %44, %47 : vector<64x8xf32>
    %49 = math.exp %48 : vector<64x8xf32>
    %cst_18 = arith.constant dense<0.000000e+00> : vector<64xf32>
    %50 = vector.multi_reduction <add>, %49, %cst_18 [1] : vector<64x8xf32> to vector<64xf32>
    %51 = vector.shape_cast %50 : vector<64xf32> to vector<64x1xf32>
    %52 = tpu.reciprocal %51 {approx = true} : vector<64x1xf32> -> vector<64x1xf32>
    %53 = vector.broadcast %52 : vector<64x1xf32> to vector<64x8xf32>
    %54 = arith.mulf %49, %53 : vector<64x8xf32>
    %55 = vector.extract_strided_slice %32 {offsets = [0, 16], sizes = [64, 8], strides = [1, 1]} : vector<64x64xf32> to vector<64x8xf32>
    %cst_19 = arith.constant dense<0xFF800000> : vector<64xf32>
    %56 = vector.multi_reduction <maximumf>, %55, %cst_19 [1] : vector<64x8xf32> to vector<64xf32>
    %57 = vector.shape_cast %56 : vector<64xf32> to vector<64x1xf32>
    %58 = vector.broadcast %57 : vector<64x1xf32> to vector<64x8xf32>
    %59 = arith.subf %55, %58 : vector<64x8xf32>
    %60 = math.exp %59 : vector<64x8xf32>
    %cst_20 = arith.constant dense<0.000000e+00> : vector<64xf32>
    %61 = vector.multi_reduction <add>, %60, %cst_20 [1] : vector<64x8xf32> to vector<64xf32>
    %62 = vector.shape_cast %61 : vector<64xf32> to vector<64x1xf32>
    %63 = tpu.reciprocal %62 {approx = true} : vector<64x1xf32> -> vector<64x1xf32>
    %64 = vector.broadcast %63 : vector<64x1xf32> to vector<64x8xf32>
    %65 = arith.mulf %60, %64 : vector<64x8xf32>
    %66 = vector.extract_strided_slice %32 {offsets = [0, 24], sizes = [64, 8], strides = [1, 1]} : vector<64x64xf32> to vector<64x8xf32>
    %cst_21 = arith.constant dense<0xFF800000> : vector<64xf32>
    %67 = vector.multi_reduction <maximumf>, %66, %cst_21 [1] : vector<64x8xf32> to vector<64xf32>
    %68 = vector.shape_cast %67 : vector<64xf32> to vector<64x1xf32>
    %69 = vector.broadcast %68 : vector<64x1xf32> to vector<64x8xf32>
    %70 = arith.subf %66, %69 : vector<64x8xf32>
    %71 = math.exp %70 : vector<64x8xf32>
    %cst_22 = arith.constant dense<0.000000e+00> : vector<64xf32>
    %72 = vector.multi_reduction <add>, %71, %cst_22 [1] : vector<64x8xf32> to vector<64xf32>
    %73 = vector.shape_cast %72 : vector<64xf32> to vector<64x1xf32>
    %74 = tpu.reciprocal %73 {approx = true} : vector<64x1xf32> -> vector<64x1xf32>
    %75 = vector.broadcast %74 : vector<64x1xf32> to vector<64x8xf32>
    %76 = arith.mulf %71, %75 : vector<64x8xf32>
    %77 = vector.extract_strided_slice %32 {offsets = [0, 32], sizes = [64, 8], strides = [1, 1]} : vector<64x64xf32> to vector<64x8xf32>
    %cst_23 = arith.constant dense<0xFF800000> : vector<64xf32>
    %78 = vector.multi_reduction <maximumf>, %77, %cst_23 [1] : vector<64x8xf32> to vector<64xf32>
    %79 = vector.shape_cast %78 : vector<64xf32> to vector<64x1xf32>
    %80 = vector.broadcast %79 : vector<64x1xf32> to vector<64x8xf32>
    %81 = arith.subf %77, %80 : vector<64x8xf32>
    %82 = math.exp %81 : vector<64x8xf32>
    %cst_24 = arith.constant dense<0.000000e+00> : vector<64xf32>
    %83 = vector.multi_reduction <add>, %82, %cst_24 [1] : vector<64x8xf32> to vector<64xf32>
    %84 = vector.shape_cast %83 : vector<64xf32> to vector<64x1xf32>
    %85 = tpu.reciprocal %84 {approx = true} : vector<64x1xf32> -> vector<64x1xf32>
    %86 = vector.broadcast %85 : vector<64x1xf32> to vector<64x8xf32>
    %87 = arith.mulf %82, %86 : vector<64x8xf32>
    %88 = vector.extract_strided_slice %32 {offsets = [0, 40], sizes = [64, 8], strides = [1, 1]} : vector<64x64xf32> to vector<64x8xf32>
    %cst_25 = arith.constant dense<0xFF800000> : vector<64xf32>
    %89 = vector.multi_reduction <maximumf>, %88, %cst_25 [1] : vector<64x8xf32> to vector<64xf32>
    %90 = vector.shape_cast %89 : vector<64xf32> to vector<64x1xf32>
    %91 = vector.broadcast %90 : vector<64x1xf32> to vector<64x8xf32>
    %92 = arith.subf %88, %91 : vector<64x8xf32>
    %93 = math.exp %92 : vector<64x8xf32>
    %cst_26 = arith.constant dense<0.000000e+00> : vector<64xf32>
    %94 = vector.multi_reduction <add>, %93, %cst_26 [1] : vector<64x8xf32> to vector<64xf32>
    %95 = vector.shape_cast %94 : vector<64xf32> to vector<64x1xf32>
    %96 = tpu.reciprocal %95 {approx = true} : vector<64x1xf32> -> vector<64x1xf32>
    %97 = vector.broadcast %96 : vector<64x1xf32> to vector<64x8xf32>
    %98 = arith.mulf %93, %97 : vector<64x8xf32>
    %99 = vector.extract_strided_slice %32 {offsets = [0, 48], sizes = [64, 8], strides = [1, 1]} : vector<64x64xf32> to vector<64x8xf32>
    %cst_27 = arith.constant dense<0xFF800000> : vector<64xf32>
    %100 = vector.multi_reduction <maximumf>, %99, %cst_27 [1] : vector<64x8xf32> to vector<64xf32>
    %101 = vector.shape_cast %100 : vector<64xf32> to vector<64x1xf32>
    %102 = vector.broadcast %101 : vector<64x1xf32> to vector<64x8xf32>
    %103 = arith.subf %99, %102 : vector<64x8xf32>
    %104 = math.exp %103 : vector<64x8xf32>
    %cst_28 = arith.constant dense<0.000000e+00> : vector<64xf32>
    %105 = vector.multi_reduction <add>, %104, %cst_28 [1] : vector<64x8xf32> to vector<64xf32>
    %106 = vector.shape_cast %105 : vector<64xf32> to vector<64x1xf32>
    %107 = tpu.reciprocal %106 {approx = true} : vector<64x1xf32> -> vector<64x1xf32>
    %108 = vector.broadcast %107 : vector<64x1xf32> to vector<64x8xf32>
    %109 = arith.mulf %104, %108 : vector<64x8xf32>
    %110 = vector.extract_strided_slice %32 {offsets = [0, 56], sizes = [64, 8], strides = [1, 1]} : vector<64x64xf32> to vector<64x8xf32>
    %cst_29 = arith.constant dense<0xFF800000> : vector<64xf32>
    %111 = vector.multi_reduction <maximumf>, %110, %cst_29 [1] : vector<64x8xf32> to vector<64xf32>
    %112 = vector.shape_cast %111 : vector<64xf32> to vector<64x1xf32>
    %113 = vector.broadcast %112 : vector<64x1xf32> to vector<64x8xf32>
    %114 = arith.subf %110, %113 : vector<64x8xf32>
    %115 = math.exp %114 : vector<64x8xf32>
    %cst_30 = arith.constant dense<0.000000e+00> : vector<64xf32>
    %116 = vector.multi_reduction <add>, %115, %cst_30 [1] : vector<64x8xf32> to vector<64xf32>
    %117 = vector.shape_cast %116 : vector<64xf32> to vector<64x1xf32>
    %118 = tpu.reciprocal %117 {approx = true} : vector<64x1xf32> -> vector<64x1xf32>
    %119 = vector.broadcast %118 : vector<64x1xf32> to vector<64x8xf32>
    %120 = arith.mulf %115, %119 : vector<64x8xf32>
    %121 = tpu.concatenate %43, %54, %65, %76, %87, %98, %109, %120 in 1 : vector<64x8xf32>, vector<64x8xf32>, vector<64x8xf32>, vector<64x8xf32>, vector<64x8xf32>, vector<64x8xf32>, vector<64x8xf32>, vector<64x8xf32> -> vector<64x64xf32>
    %cst_31 = arith.constant dense<0.000000e+00> : vector<64x64xf32>
    %122 = tpu.matmul %29, %28, %cst_31 {dimension_numbers = #tpu.dot_dimension_numbers<[1], [1], [0], [0], [0, 0, 1, 0], [], []>} : vector<64x2xbf16>, vector<64x2xbf16>, vector<64x64xf32> -> vector<64x64xf32>
    %123 = vector.extract_strided_slice %122 {offsets = [0, 0], sizes = [64, 8], strides = [1, 1]} : vector<64x64xf32> to vector<64x8xf32>
    %cst_32 = arith.constant dense<0xFF800000> : vector<64xf32>
    %124 = vector.multi_reduction <maximumf>, %123, %cst_32 [1] : vector<64x8xf32> to vector<64xf32>
    %125 = vector.shape_cast %124 : vector<64xf32> to vector<64x1xf32>
    %126 = vector.broadcast %125 : vector<64x1xf32> to vector<64x8xf32>
    %127 = arith.subf %123, %126 : vector<64x8xf32>
    %128 = math.exp %127 : vector<64x8xf32>
    %cst_33 = arith.constant dense<0.000000e+00> : vector<64xf32>
    %129 = vector.multi_reduction <add>, %128, %cst_33 [1] : vector<64x8xf32> to vector<64xf32>
    %130 = vector.shape_cast %129 : vector<64xf32> to vector<64x1xf32>
    %131 = tpu.reciprocal %130 {approx = true} : vector<64x1xf32> -> vector<64x1xf32>
    %132 = vector.broadcast %131 : vector<64x1xf32> to vector<64x8xf32>
    %133 = arith.mulf %128, %132 : vector<64x8xf32>
    %134 = vector.extract_strided_slice %122 {offsets = [0, 8], sizes = [64, 8], strides = [1, 1]} : vector<64x64xf32> to vector<64x8xf32>
    %cst_34 = arith.constant dense<0xFF800000> : vector<64xf32>
    %135 = vector.multi_reduction <maximumf>, %134, %cst_34 [1] : vector<64x8xf32> to vector<64xf32>
    %136 = vector.shape_cast %135 : vector<64xf32> to vector<64x1xf32>
    %137 = vector.broadcast %136 : vector<64x1xf32> to vector<64x8xf32>
    %138 = arith.subf %134, %137 : vector<64x8xf32>
    %139 = math.exp %138 : vector<64x8xf32>
    %cst_35 = arith.constant dense<0.000000e+00> : vector<64xf32>
    %140 = vector.multi_reduction <add>, %139, %cst_35 [1] : vector<64x8xf32> to vector<64xf32>
    %141 = vector.shape_cast %140 : vector<64xf32> to vector<64x1xf32>
    %142 = tpu.reciprocal %141 {approx = true} : vector<64x1xf32> -> vector<64x1xf32>
    %143 = vector.broadcast %142 : vector<64x1xf32> to vector<64x8xf32>
    %144 = arith.mulf %139, %143 : vector<64x8xf32>
    %145 = vector.extract_strided_slice %122 {offsets = [0, 16], sizes = [64, 8], strides = [1, 1]} : vector<64x64xf32> to vector<64x8xf32>
    %cst_36 = arith.constant dense<0xFF800000> : vector<64xf32>
    %146 = vector.multi_reduction <maximumf>, %145, %cst_36 [1] : vector<64x8xf32> to vector<64xf32>
    %147 = vector.shape_cast %146 : vector<64xf32> to vector<64x1xf32>
    %148 = vector.broadcast %147 : vector<64x1xf32> to vector<64x8xf32>
    %149 = arith.subf %145, %148 : vector<64x8xf32>
    %150 = math.exp %149 : vector<64x8xf32>
    %cst_37 = arith.constant dense<0.000000e+00> : vector<64xf32>
    %151 = vector.multi_reduction <add>, %150, %cst_37 [1] : vector<64x8xf32> to vector<64xf32>
    %152 = vector.shape_cast %151 : vector<64xf32> to vector<64x1xf32>
    %153 = tpu.reciprocal %152 {approx = true} : vector<64x1xf32> -> vector<64x1xf32>
    %154 = vector.broadcast %153 : vector<64x1xf32> to vector<64x8xf32>
    %155 = arith.mulf %150, %154 : vector<64x8xf32>
    %156 = vector.extract_strided_slice %122 {offsets = [0, 24], sizes = [64, 8], strides = [1, 1]} : vector<64x64xf32> to vector<64x8xf32>
    %cst_38 = arith.constant dense<0xFF800000> : vector<64xf32>
    %157 = vector.multi_reduction <maximumf>, %156, %cst_38 [1] : vector<64x8xf32> to vector<64xf32>
    %158 = vector.shape_cast %157 : vector<64xf32> to vector<64x1xf32>
    %159 = vector.broadcast %158 : vector<64x1xf32> to vector<64x8xf32>
    %160 = arith.subf %156, %159 : vector<64x8xf32>
    %161 = math.exp %160 : vector<64x8xf32>
    %cst_39 = arith.constant dense<0.000000e+00> : vector<64xf32>
    %162 = vector.multi_reduction <add>, %161, %cst_39 [1] : vector<64x8xf32> to vector<64xf32>
    %163 = vector.shape_cast %162 : vector<64xf32> to vector<64x1xf32>
    %164 = tpu.reciprocal %163 {approx = true} : vector<64x1xf32> -> vector<64x1xf32>
    %165 = vector.broadcast %164 : vector<64x1xf32> to vector<64x8xf32>
    %166 = arith.mulf %161, %165 : vector<64x8xf32>
    %167 = vector.extract_strided_slice %122 {offsets = [0, 32], sizes = [64, 8], strides = [1, 1]} : vector<64x64xf32> to vector<64x8xf32>
    %cst_40 = arith.constant dense<0xFF800000> : vector<64xf32>
    %168 = vector.multi_reduction <maximumf>, %167, %cst_40 [1] : vector<64x8xf32> to vector<64xf32>
    %169 = vector.shape_cast %168 : vector<64xf32> to vector<64x1xf32>
    %170 = vector.broadcast %169 : vector<64x1xf32> to vector<64x8xf32>
    %171 = arith.subf %167, %170 : vector<64x8xf32>
    %172 = math.exp %171 : vector<64x8xf32>
    %cst_41 = arith.constant dense<0.000000e+00> : vector<64xf32>
    %173 = vector.multi_reduction <add>, %172, %cst_41 [1] : vector<64x8xf32> to vector<64xf32>
    %174 = vector.shape_cast %173 : vector<64xf32> to vector<64x1xf32>
    %175 = tpu.reciprocal %174 {approx = true} : vector<64x1xf32> -> vector<64x1xf32>
    %176 = vector.broadcast %175 : vector<64x1xf32> to vector<64x8xf32>
    %177 = arith.mulf %172, %176 : vector<64x8xf32>
    %178 = vector.extract_strided_slice %122 {offsets = [0, 40], sizes = [64, 8], strides = [1, 1]} : vector<64x64xf32> to vector<64x8xf32>
    %cst_42 = arith.constant dense<0xFF800000> : vector<64xf32>
    %179 = vector.multi_reduction <maximumf>, %178, %cst_42 [1] : vector<64x8xf32> to vector<64xf32>
    %180 = vector.shape_cast %179 : vector<64xf32> to vector<64x1xf32>
    %181 = vector.broadcast %180 : vector<64x1xf32> to vector<64x8xf32>
    %182 = arith.subf %178, %181 : vector<64x8xf32>
    %183 = math.exp %182 : vector<64x8xf32>
    %cst_43 = arith.constant dense<0.000000e+00> : vector<64xf32>
    %184 = vector.multi_reduction <add>, %183, %cst_43 [1] : vector<64x8xf32> to vector<64xf32>
    %185 = vector.shape_cast %184 : vector<64xf32> to vector<64x1xf32>
    %186 = tpu.reciprocal %185 {approx = true} : vector<64x1xf32> -> vector<64x1xf32>
    %187 = vector.broadcast %186 : vector<64x1xf32> to vector<64x8xf32>
    %188 = arith.mulf %183, %187 : vector<64x8xf32>
    %189 = vector.extract_strided_slice %122 {offsets = [0, 48], sizes = [64, 8], strides = [1, 1]} : vector<64x64xf32> to vector<64x8xf32>
    %cst_44 = arith.constant dense<0xFF800000> : vector<64xf32>
    %190 = vector.multi_reduction <maximumf>, %189, %cst_44 [1] : vector<64x8xf32> to vector<64xf32>
    %191 = vector.shape_cast %190 : vector<64xf32> to vector<64x1xf32>
    %192 = vector.broadcast %191 : vector<64x1xf32> to vector<64x8xf32>
    %193 = arith.subf %189, %192 : vector<64x8xf32>
    %194 = math.exp %193 : vector<64x8xf32>
    %cst_45 = arith.constant dense<0.000000e+00> : vector<64xf32>
    %195 = vector.multi_reduction <add>, %194, %cst_45 [1] : vector<64x8xf32> to vector<64xf32>
    %196 = vector.shape_cast %195 : vector<64xf32> to vector<64x1xf32>
    %197 = tpu.reciprocal %196 {approx = true} : vector<64x1xf32> -> vector<64x1xf32>
    %198 = vector.broadcast %197 : vector<64x1xf32> to vector<64x8xf32>
    %199 = arith.mulf %194, %198 : vector<64x8xf32>
    %200 = vector.extract_strided_slice %122 {offsets = [0, 56], sizes = [64, 8], strides = [1, 1]} : vector<64x64xf32> to vector<64x8xf32>
    %cst_46 = arith.constant dense<0xFF800000> : vector<64xf32>
    %201 = vector.multi_reduction <maximumf>, %200, %cst_46 [1] : vector<64x8xf32> to vector<64xf32>
    %202 = vector.shape_cast %201 : vector<64xf32> to vector<64x1xf32>
    %203 = vector.broadcast %202 : vector<64x1xf32> to vector<64x8xf32>
    %204 = arith.subf %200, %203 : vector<64x8xf32>
    %205 = math.exp %204 : vector<64x8xf32>
    %cst_47 = arith.constant dense<0.000000e+00> : vector<64xf32>
    %206 = vector.multi_reduction <add>, %205, %cst_47 [1] : vector<64x8xf32> to vector<64xf32>
    %207 = vector.shape_cast %206 : vector<64xf32> to vector<64x1xf32>
    %208 = tpu.reciprocal %207 {approx = true} : vector<64x1xf32> -> vector<64x1xf32>
    %209 = vector.broadcast %208 : vector<64x1xf32> to vector<64x8xf32>
    %210 = arith.mulf %205, %209 : vector<64x8xf32>
    %211 = tpu.concatenate %133, %144, %155, %166, %177, %188, %199, %210 in 1 : vector<64x8xf32>, vector<64x8xf32>, vector<64x8xf32>, vector<64x8xf32>, vector<64x8xf32>, vector<64x8xf32>, vector<64x8xf32>, vector<64x8xf32> -> vector<64x64xf32>
    %cst_48 = arith.constant dense<0.000000e+00> : vector<64x64xf32>
    %212 = tpu.matmul %30, %28, %cst_48 {dimension_numbers = #tpu.dot_dimension_numbers<[1], [1], [0], [0], [0, 0, 1, 0], [], []>} : vector<64x2xbf16>, vector<64x2xbf16>, vector<64x64xf32> -> vector<64x64xf32>
    %213 = vector.extract_strided_slice %212 {offsets = [0, 0], sizes = [64, 8], strides = [1, 1]} : vector<64x64xf32> to vector<64x8xf32>
    %cst_49 = arith.constant dense<0xFF800000> : vector<64xf32>
    %214 = vector.multi_reduction <maximumf>, %213, %cst_49 [1] : vector<64x8xf32> to vector<64xf32>
    %215 = vector.shape_cast %214 : vector<64xf32> to vector<64x1xf32>
    %216 = vector.broadcast %215 : vector<64x1xf32> to vector<64x8xf32>
    %217 = arith.subf %213, %216 : vector<64x8xf32>
    %218 = math.exp %217 : vector<64x8xf32>
    %cst_50 = arith.constant dense<0.000000e+00> : vector<64xf32>
    %219 = vector.multi_reduction <add>, %218, %cst_50 [1] : vector<64x8xf32> to vector<64xf32>
    %220 = vector.shape_cast %219 : vector<64xf32> to vector<64x1xf32>
    %221 = vector.extract_strided_slice %212 {offsets = [0, 8], sizes = [64, 8], strides = [1, 1]} : vector<64x64xf32> to vector<64x8xf32>
    %cst_51 = arith.constant dense<0xFF800000> : vector<64xf32>
    %222 = vector.multi_reduction <maximumf>, %221, %cst_51 [1] : vector<64x8xf32> to vector<64xf32>
    %223 = vector.shape_cast %222 : vector<64xf32> to vector<64x1xf32>
    %224 = vector.broadcast %223 : vector<64x1xf32> to vector<64x8xf32>
    %225 = arith.subf %221, %224 : vector<64x8xf32>
    %226 = math.exp %225 : vector<64x8xf32>
    %cst_52 = arith.constant dense<0.000000e+00> : vector<64xf32>
    %227 = vector.multi_reduction <add>, %226, %cst_52 [1] : vector<64x8xf32> to vector<64xf32>
    %228 = vector.shape_cast %227 : vector<64xf32> to vector<64x1xf32>
    %229 = vector.extract_strided_slice %212 {offsets = [0, 16], sizes = [64, 8], strides = [1, 1]} : vector<64x64xf32> to vector<64x8xf32>
    %cst_53 = arith.constant dense<0xFF800000> : vector<64xf32>
    %230 = vector.multi_reduction <maximumf>, %229, %cst_53 [1] : vector<64x8xf32> to vector<64xf32>
    %231 = vector.shape_cast %230 : vector<64xf32> to vector<64x1xf32>
    %232 = vector.broadcast %231 : vector<64x1xf32> to vector<64x8xf32>
    %233 = arith.subf %229, %232 : vector<64x8xf32>
    %234 = math.exp %233 : vector<64x8xf32>
    %cst_54 = arith.constant dense<0.000000e+00> : vector<64xf32>
    %235 = vector.multi_reduction <add>, %234, %cst_54 [1] : vector<64x8xf32> to vector<64xf32>
    %236 = vector.shape_cast %235 : vector<64xf32> to vector<64x1xf32>
    %237 = vector.extract_strided_slice %212 {offsets = [0, 24], sizes = [64, 8], strides = [1, 1]} : vector<64x64xf32> to vector<64x8xf32>
    %cst_55 = arith.constant dense<0xFF800000> : vector<64xf32>
    %238 = vector.multi_reduction <maximumf>, %237, %cst_55 [1] : vector<64x8xf32> to vector<64xf32>
    %239 = vector.shape_cast %238 : vector<64xf32> to vector<64x1xf32>
    %240 = vector.broadcast %239 : vector<64x1xf32> to vector<64x8xf32>
    %241 = arith.subf %237, %240 : vector<64x8xf32>
    %242 = math.exp %241 : vector<64x8xf32>
    %cst_56 = arith.constant dense<0.000000e+00> : vector<64xf32>
    %243 = vector.multi_reduction <add>, %242, %cst_56 [1] : vector<64x8xf32> to vector<64xf32>
    %244 = vector.shape_cast %243 : vector<64xf32> to vector<64x1xf32>
    %245 = vector.extract_strided_slice %212 {offsets = [0, 32], sizes = [64, 8], strides = [1, 1]} : vector<64x64xf32> to vector<64x8xf32>
    %cst_57 = arith.constant dense<0xFF800000> : vector<64xf32>
    %246 = vector.multi_reduction <maximumf>, %245, %cst_57 [1] : vector<64x8xf32> to vector<64xf32>
    %247 = vector.shape_cast %246 : vector<64xf32> to vector<64x1xf32>
    %248 = vector.broadcast %247 : vector<64x1xf32> to vector<64x8xf32>
    %249 = arith.subf %245, %248 : vector<64x8xf32>
    %250 = math.exp %249 : vector<64x8xf32>
    %cst_58 = arith.constant dense<0.000000e+00> : vector<64xf32>
    %251 = vector.multi_reduction <add>, %250, %cst_58 [1] : vector<64x8xf32> to vector<64xf32>
    %252 = vector.shape_cast %251 : vector<64xf32> to vector<64x1xf32>
    %253 = vector.extract_strided_slice %212 {offsets = [0, 40], sizes = [64, 8], strides = [1, 1]} : vector<64x64xf32> to vector<64x8xf32>
    %cst_59 = arith.constant dense<0xFF800000> : vector<64xf32>
    %254 = vector.multi_reduction <maximumf>, %253, %cst_59 [1] : vector<64x8xf32> to vector<64xf32>
    %255 = vector.shape_cast %254 : vector<64xf32> to vector<64x1xf32>
    %256 = vector.broadcast %255 : vector<64x1xf32> to vector<64x8xf32>
    %257 = arith.subf %253, %256 : vector<64x8xf32>
    %258 = math.exp %257 : vector<64x8xf32>
    %cst_60 = arith.constant dense<0.000000e+00> : vector<64xf32>
    %259 = vector.multi_reduction <add>, %258, %cst_60 [1] : vector<64x8xf32> to vector<64xf32>
    %260 = vector.shape_cast %259 : vector<64xf32> to vector<64x1xf32>
    %261 = vector.extract_strided_slice %212 {offsets = [0, 48], sizes = [64, 8], strides = [1, 1]} : vector<64x64xf32> to vector<64x8xf32>
    %cst_61 = arith.constant dense<0xFF800000> : vector<64xf32>
    %262 = vector.multi_reduction <maximumf>, %261, %cst_61 [1] : vector<64x8xf32> to vector<64xf32>
    %263 = vector.shape_cast %262 : vector<64xf32> to vector<64x1xf32>
    %264 = vector.broadcast %263 : vector<64x1xf32> to vector<64x8xf32>
    %265 = arith.subf %261, %264 : vector<64x8xf32>
    %266 = math.exp %265 : vector<64x8xf32>
    %cst_62 = arith.constant dense<0.000000e+00> : vector<64xf32>
    %267 = vector.multi_reduction <add>, %266, %cst_62 [1] : vector<64x8xf32> to vector<64xf32>
    %268 = vector.shape_cast %267 : vector<64xf32> to vector<64x1xf32>
    %269 = vector.extract_strided_slice %212 {offsets = [0, 56], sizes = [64, 8], strides = [1, 1]} : vector<64x64xf32> to vector<64x8xf32>
    %cst_63 = arith.constant dense<0xFF800000> : vector<64xf32>
    %270 = vector.multi_reduction <maximumf>, %269, %cst_63 [1] : vector<64x8xf32> to vector<64xf32>
    %271 = vector.shape_cast %270 : vector<64xf32> to vector<64x1xf32>
    %272 = vector.broadcast %271 : vector<64x1xf32> to vector<64x8xf32>
    %273 = arith.subf %269, %272 : vector<64x8xf32>
    %274 = math.exp %273 : vector<64x8xf32>
    %cst_64 = arith.constant dense<0.000000e+00> : vector<64xf32>
    %275 = vector.multi_reduction <add>, %274, %cst_64 [1] : vector<64x8xf32> to vector<64xf32>
    %276 = vector.shape_cast %275 : vector<64xf32> to vector<64x1xf32>
    %277 = tpu.concatenate %215, %223, %231, %239, %247, %255, %263, %271 in 1 : vector<64x1xf32>, vector<64x1xf32>, vector<64x1xf32>, vector<64x1xf32>, vector<64x1xf32>, vector<64x1xf32>, vector<64x1xf32>, vector<64x1xf32> -> vector<64x8xf32>
    %278 = tpu.concatenate %220, %228, %236, %244, %252, %260, %268, %276 in 1 : vector<64x1xf32>, vector<64x1xf32>, vector<64x1xf32>, vector<64x1xf32>, vector<64x1xf32>, vector<64x1xf32>, vector<64x1xf32>, vector<64x1xf32> -> vector<64x8xf32>
    %cst_65 = arith.constant dense<0.000000e+00> : vector<64x64xf32>
    %279 = tpu.matmul %30, %31, %cst_65 {dimension_numbers = #tpu.dot_dimension_numbers<[1], [1], [0], [0], [0, 0, 1, 0], [], []>} : vector<64x2xbf16>, vector<64x2xbf16>, vector<64x64xf32> -> vector<64x64xf32>
    %280 = tpu.concatenate %277, %277, %277, %277, %277, %277, %277, %277 in 1 : vector<64x8xf32>, vector<64x8xf32>, vector<64x8xf32>, vector<64x8xf32>, vector<64x8xf32>, vector<64x8xf32>, vector<64x8xf32>, vector<64x8xf32> -> vector<64x64xf32>
    %281 = tpu.concatenate %278, %278, %278, %278, %278, %278, %278, %278 in 1 : vector<64x8xf32>, vector<64x8xf32>, vector<64x8xf32>, vector<64x8xf32>, vector<64x8xf32>, vector<64x8xf32>, vector<64x8xf32>, vector<64x8xf32> -> vector<64x64xf32>
    %282 = arith.subf %279, %280 : vector<64x64xf32>
    %283 = math.exp %282 : vector<64x64xf32>
    %284 = tpu.reciprocal %281 {approx = true} : vector<64x64xf32> -> vector<64x64xf32>
    %285 = arith.mulf %283, %284 : vector<64x64xf32>
    %286 = tpu.transpose %211, [1, 0] : vector<64x64xf32> -> vector<64x64xf32>
    %287 = tpu.transpose %285, [1, 0] : vector<64x64xf32> -> vector<64x64xf32>
    %288 = vector.extract_strided_slice %286 {offsets = [0, 0], sizes = [8, 8], strides = [1, 1]} : vector<64x64xf32> to vector<8x8xf32>
    %289 = vector.extract_strided_slice %286 {offsets = [8, 0], sizes = [8, 8], strides = [1, 1]} : vector<64x64xf32> to vector<8x8xf32>
    %290 = vector.extract_strided_slice %286 {offsets = [16, 0], sizes = [8, 8], strides = [1, 1]} : vector<64x64xf32> to vector<8x8xf32>
    %291 = vector.extract_strided_slice %286 {offsets = [24, 0], sizes = [8, 8], strides = [1, 1]} : vector<64x64xf32> to vector<8x8xf32>
    %292 = vector.extract_strided_slice %286 {offsets = [32, 0], sizes = [8, 8], strides = [1, 1]} : vector<64x64xf32> to vector<8x8xf32>
    %293 = vector.extract_strided_slice %286 {offsets = [40, 0], sizes = [8, 8], strides = [1, 1]} : vector<64x64xf32> to vector<8x8xf32>
    %294 = vector.extract_strided_slice %286 {offsets = [48, 0], sizes = [8, 8], strides = [1, 1]} : vector<64x64xf32> to vector<8x8xf32>
    %295 = vector.extract_strided_slice %286 {offsets = [56, 0], sizes = [8, 8], strides = [1, 1]} : vector<64x64xf32> to vector<8x8xf32>
    %296 = tpu.concatenate %288, %289, %290, %291, %292, %293, %294, %295 in 1 : vector<8x8xf32>, vector<8x8xf32>, vector<8x8xf32>, vector<8x8xf32>, vector<8x8xf32>, vector<8x8xf32>, vector<8x8xf32>, vector<8x8xf32> -> vector<8x64xf32>
    %297 = vector.extract_strided_slice %286 {offsets = [0, 8], sizes = [8, 8], strides = [1, 1]} : vector<64x64xf32> to vector<8x8xf32>
    %298 = vector.extract_strided_slice %286 {offsets = [8, 8], sizes = [8, 8], strides = [1, 1]} : vector<64x64xf32> to vector<8x8xf32>
    %299 = vector.extract_strided_slice %286 {offsets = [16, 8], sizes = [8, 8], strides = [1, 1]} : vector<64x64xf32> to vector<8x8xf32>
    %300 = vector.extract_strided_slice %286 {offsets = [24, 8], sizes = [8, 8], strides = [1, 1]} : vector<64x64xf32> to vector<8x8xf32>
    %301 = vector.extract_strided_slice %286 {offsets = [32, 8], sizes = [8, 8], strides = [1, 1]} : vector<64x64xf32> to vector<8x8xf32>
    %302 = vector.extract_strided_slice %286 {offsets = [40, 8], sizes = [8, 8], strides = [1, 1]} : vector<64x64xf32> to vector<8x8xf32>
    %303 = vector.extract_strided_slice %286 {offsets = [48, 8], sizes = [8, 8], strides = [1, 1]} : vector<64x64xf32> to vector<8x8xf32>
    %304 = vector.extract_strided_slice %286 {offsets = [56, 8], sizes = [8, 8], strides = [1, 1]} : vector<64x64xf32> to vector<8x8xf32>
    %305 = tpu.concatenate %297, %298, %299, %300, %301, %302, %303, %304 in 1 : vector<8x8xf32>, vector<8x8xf32>, vector<8x8xf32>, vector<8x8xf32>, vector<8x8xf32>, vector<8x8xf32>, vector<8x8xf32>, vector<8x8xf32> -> vector<8x64xf32>
    %306 = vector.extract_strided_slice %286 {offsets = [0, 16], sizes = [8, 8], strides = [1, 1]} : vector<64x64xf32> to vector<8x8xf32>
    %307 = vector.extract_strided_slice %286 {offsets = [8, 16], sizes = [8, 8], strides = [1, 1]} : vector<64x64xf32> to vector<8x8xf32>
    %308 = vector.extract_strided_slice %286 {offsets = [16, 16], sizes = [8, 8], strides = [1, 1]} : vector<64x64xf32> to vector<8x8xf32>
    %309 = vector.extract_strided_slice %286 {offsets = [24, 16], sizes = [8, 8], strides = [1, 1]} : vector<64x64xf32> to vector<8x8xf32>
    %310 = vector.extract_strided_slice %286 {offsets = [32, 16], sizes = [8, 8], strides = [1, 1]} : vector<64x64xf32> to vector<8x8xf32>
    %311 = vector.extract_strided_slice %286 {offsets = [40, 16], sizes = [8, 8], strides = [1, 1]} : vector<64x64xf32> to vector<8x8xf32>
    %312 = vector.extract_strided_slice %286 {offsets = [48, 16], sizes = [8, 8], strides = [1, 1]} : vector<64x64xf32> to vector<8x8xf32>
    %313 = vector.extract_strided_slice %286 {offsets = [56, 16], sizes = [8, 8], strides = [1, 1]} : vector<64x64xf32> to vector<8x8xf32>
    %314 = tpu.concatenate %306, %307, %308, %309, %310, %311, %312, %313 in 1 : vector<8x8xf32>, vector<8x8xf32>, vector<8x8xf32>, vector<8x8xf32>, vector<8x8xf32>, vector<8x8xf32>, vector<8x8xf32>, vector<8x8xf32> -> vector<8x64xf32>
    %315 = vector.extract_strided_slice %286 {offsets = [0, 24], sizes = [8, 8], strides = [1, 1]} : vector<64x64xf32> to vector<8x8xf32>
    %316 = vector.extract_strided_slice %286 {offsets = [8, 24], sizes = [8, 8], strides = [1, 1]} : vector<64x64xf32> to vector<8x8xf32>
    %317 = vector.extract_strided_slice %286 {offsets = [16, 24], sizes = [8, 8], strides = [1, 1]} : vector<64x64xf32> to vector<8x8xf32>
    %318 = vector.extract_strided_slice %286 {offsets = [24, 24], sizes = [8, 8], strides = [1, 1]} : vector<64x64xf32> to vector<8x8xf32>
    %319 = vector.extract_strided_slice %286 {offsets = [32, 24], sizes = [8, 8], strides = [1, 1]} : vector<64x64xf32> to vector<8x8xf32>
    %320 = vector.extract_strided_slice %286 {offsets = [40, 24], sizes = [8, 8], strides = [1, 1]} : vector<64x64xf32> to vector<8x8xf32>
    %321 = vector.extract_strided_slice %286 {offsets = [48, 24], sizes = [8, 8], strides = [1, 1]} : vector<64x64xf32> to vector<8x8xf32>
    %322 = vector.extract_strided_slice %286 {offsets = [56, 24], sizes = [8, 8], strides = [1, 1]} : vector<64x64xf32> to vector<8x8xf32>
    %323 = tpu.concatenate %315, %316, %317, %318, %319, %320, %321, %322 in 1 : vector<8x8xf32>, vector<8x8xf32>, vector<8x8xf32>, vector<8x8xf32>, vector<8x8xf32>, vector<8x8xf32>, vector<8x8xf32>, vector<8x8xf32> -> vector<8x64xf32>
    %324 = vector.extract_strided_slice %286 {offsets = [0, 32], sizes = [8, 8], strides = [1, 1]} : vector<64x64xf32> to vector<8x8xf32>
    %325 = vector.extract_strided_slice %286 {offsets = [8, 32], sizes = [8, 8], strides = [1, 1]} : vector<64x64xf32> to vector<8x8xf32>
    %326 = vector.extract_strided_slice %286 {offsets = [16, 32], sizes = [8, 8], strides = [1, 1]} : vector<64x64xf32> to vector<8x8xf32>
    %327 = vector.extract_strided_slice %286 {offsets = [24, 32], sizes = [8, 8], strides = [1, 1]} : vector<64x64xf32> to vector<8x8xf32>
    %328 = vector.extract_strided_slice %286 {offsets = [32, 32], sizes = [8, 8], strides = [1, 1]} : vector<64x64xf32> to vector<8x8xf32>
    %329 = vector.extract_strided_slice %286 {offsets = [40, 32], sizes = [8, 8], strides = [1, 1]} : vector<64x64xf32> to vector<8x8xf32>
    %330 = vector.extract_strided_slice %286 {offsets = [48, 32], sizes = [8, 8], strides = [1, 1]} : vector<64x64xf32> to vector<8x8xf32>
    %331 = vector.extract_strided_slice %286 {offsets = [56, 32], sizes = [8, 8], strides = [1, 1]} : vector<64x64xf32> to vector<8x8xf32>
    %332 = tpu.concatenate %324, %325, %326, %327, %328, %329, %330, %331 in 1 : vector<8x8xf32>, vector<8x8xf32>, vector<8x8xf32>, vector<8x8xf32>, vector<8x8xf32>, vector<8x8xf32>, vector<8x8xf32>, vector<8x8xf32> -> vector<8x64xf32>
    %333 = vector.extract_strided_slice %286 {offsets = [0, 40], sizes = [8, 8], strides = [1, 1]} : vector<64x64xf32> to vector<8x8xf32>
    %334 = vector.extract_strided_slice %286 {offsets = [8, 40], sizes = [8, 8], strides = [1, 1]} : vector<64x64xf32> to vector<8x8xf32>
    %335 = vector.extract_strided_slice %286 {offsets = [16, 40], sizes = [8, 8], strides = [1, 1]} : vector<64x64xf32> to vector<8x8xf32>
    %336 = vector.extract_strided_slice %286 {offsets = [24, 40], sizes = [8, 8], strides = [1, 1]} : vector<64x64xf32> to vector<8x8xf32>
    %337 = vector.extract_strided_slice %286 {offsets = [32, 40], sizes = [8, 8], strides = [1, 1]} : vector<64x64xf32> to vector<8x8xf32>
    %338 = vector.extract_strided_slice %286 {offsets = [40, 40], sizes = [8, 8], strides = [1, 1]} : vector<64x64xf32> to vector<8x8xf32>
    %339 = vector.extract_strided_slice %286 {offsets = [48, 40], sizes = [8, 8], strides = [1, 1]} : vector<64x64xf32> to vector<8x8xf32>
    %340 = vector.extract_strided_slice %286 {offsets = [56, 40], sizes = [8, 8], strides = [1, 1]} : vector<64x64xf32> to vector<8x8xf32>
    %341 = tpu.concatenate %333, %334, %335, %336, %337, %338, %339, %340 in 1 : vector<8x8xf32>, vector<8x8xf32>, vector<8x8xf32>, vector<8x8xf32>, vector<8x8xf32>, vector<8x8xf32>, vector<8x8xf32>, vector<8x8xf32> -> vector<8x64xf32>
    %342 = vector.extract_strided_slice %286 {offsets = [0, 48], sizes = [8, 8], strides = [1, 1]} : vector<64x64xf32> to vector<8x8xf32>
    %343 = vector.extract_strided_slice %286 {offsets = [8, 48], sizes = [8, 8], strides = [1, 1]} : vector<64x64xf32> to vector<8x8xf32>
    %344 = vector.extract_strided_slice %286 {offsets = [16, 48], sizes = [8, 8], strides = [1, 1]} : vector<64x64xf32> to vector<8x8xf32>
    %345 = vector.extract_strided_slice %286 {offsets = [24, 48], sizes = [8, 8], strides = [1, 1]} : vector<64x64xf32> to vector<8x8xf32>
    %346 = vector.extract_strided_slice %286 {offsets = [32, 48], sizes = [8, 8], strides = [1, 1]} : vector<64x64xf32> to vector<8x8xf32>
    %347 = vector.extract_strided_slice %286 {offsets = [40, 48], sizes = [8, 8], strides = [1, 1]} : vector<64x64xf32> to vector<8x8xf32>
    %348 = vector.extract_strided_slice %286 {offsets = [48, 48], sizes = [8, 8], strides = [1, 1]} : vector<64x64xf32> to vector<8x8xf32>
    %349 = vector.extract_strided_slice %286 {offsets = [56, 48], sizes = [8, 8], strides = [1, 1]} : vector<64x64xf32> to vector<8x8xf32>
    %350 = tpu.concatenate %342, %343, %344, %345, %346, %347, %348, %349 in 1 : vector<8x8xf32>, vector<8x8xf32>, vector<8x8xf32>, vector<8x8xf32>, vector<8x8xf32>, vector<8x8xf32>, vector<8x8xf32>, vector<8x8xf32> -> vector<8x64xf32>
    %351 = vector.extract_strided_slice %286 {offsets = [0, 56], sizes = [8, 8], strides = [1, 1]} : vector<64x64xf32> to vector<8x8xf32>
    %352 = vector.extract_strided_slice %286 {offsets = [8, 56], sizes = [8, 8], strides = [1, 1]} : vector<64x64xf32> to vector<8x8xf32>
    %353 = vector.extract_strided_slice %286 {offsets = [16, 56], sizes = [8, 8], strides = [1, 1]} : vector<64x64xf32> to vector<8x8xf32>
    %354 = vector.extract_strided_slice %286 {offsets = [24, 56], sizes = [8, 8], strides = [1, 1]} : vector<64x64xf32> to vector<8x8xf32>
    %355 = vector.extract_strided_slice %286 {offsets = [32, 56], sizes = [8, 8], strides = [1, 1]} : vector<64x64xf32> to vector<8x8xf32>
    %356 = vector.extract_strided_slice %286 {offsets = [40, 56], sizes = [8, 8], strides = [1, 1]} : vector<64x64xf32> to vector<8x8xf32>
    %357 = vector.extract_strided_slice %286 {offsets = [48, 56], sizes = [8, 8], strides = [1, 1]} : vector<64x64xf32> to vector<8x8xf32>
    %358 = vector.extract_strided_slice %286 {offsets = [56, 56], sizes = [8, 8], strides = [1, 1]} : vector<64x64xf32> to vector<8x8xf32>
    %359 = tpu.concatenate %351, %352, %353, %354, %355, %356, %357, %358 in 1 : vector<8x8xf32>, vector<8x8xf32>, vector<8x8xf32>, vector<8x8xf32>, vector<8x8xf32>, vector<8x8xf32>, vector<8x8xf32>, vector<8x8xf32> -> vector<8x64xf32>
    %360 = tpu.concatenate %296, %305, %314, %323, %332, %341, %350, %359 in 0 : vector<8x64xf32>, vector<8x64xf32>, vector<8x64xf32>, vector<8x64xf32>, vector<8x64xf32>, vector<8x64xf32>, vector<8x64xf32>, vector<8x64xf32> -> vector<64x64xf32>
    %361 = vector.extract_strided_slice %287 {offsets = [0, 0], sizes = [8, 8], strides = [1, 1]} : vector<64x64xf32> to vector<8x8xf32>
    %362 = vector.extract_strided_slice %287 {offsets = [8, 0], sizes = [8, 8], strides = [1, 1]} : vector<64x64xf32> to vector<8x8xf32>
    %363 = vector.extract_strided_slice %287 {offsets = [16, 0], sizes = [8, 8], strides = [1, 1]} : vector<64x64xf32> to vector<8x8xf32>
    %364 = vector.extract_strided_slice %287 {offsets = [24, 0], sizes = [8, 8], strides = [1, 1]} : vector<64x64xf32> to vector<8x8xf32>
    %365 = vector.extract_strided_slice %287 {offsets = [32, 0], sizes = [8, 8], strides = [1, 1]} : vector<64x64xf32> to vector<8x8xf32>
    %366 = vector.extract_strided_slice %287 {offsets = [40, 0], sizes = [8, 8], strides = [1, 1]} : vector<64x64xf32> to vector<8x8xf32>
    %367 = vector.extract_strided_slice %287 {offsets = [48, 0], sizes = [8, 8], strides = [1, 1]} : vector<64x64xf32> to vector<8x8xf32>
    %368 = vector.extract_strided_slice %287 {offsets = [56, 0], sizes = [8, 8], strides = [1, 1]} : vector<64x64xf32> to vector<8x8xf32>
    %369 = tpu.concatenate %361, %362, %363, %364, %365, %366, %367, %368 in 1 : vector<8x8xf32>, vector<8x8xf32>, vector<8x8xf32>, vector<8x8xf32>, vector<8x8xf32>, vector<8x8xf32>, vector<8x8xf32>, vector<8x8xf32> -> vector<8x64xf32>
    %370 = vector.extract_strided_slice %287 {offsets = [0, 8], sizes = [8, 8], strides = [1, 1]} : vector<64x64xf32> to vector<8x8xf32>
    %371 = vector.extract_strided_slice %287 {offsets = [8, 8], sizes = [8, 8], strides = [1, 1]} : vector<64x64xf32> to vector<8x8xf32>
    %372 = vector.extract_strided_slice %287 {offsets = [16, 8], sizes = [8, 8], strides = [1, 1]} : vector<64x64xf32> to vector<8x8xf32>
    %373 = vector.extract_strided_slice %287 {offsets = [24, 8], sizes = [8, 8], strides = [1, 1]} : vector<64x64xf32> to vector<8x8xf32>
    %374 = vector.extract_strided_slice %287 {offsets = [32, 8], sizes = [8, 8], strides = [1, 1]} : vector<64x64xf32> to vector<8x8xf32>
    %375 = vector.extract_strided_slice %287 {offsets = [40, 8], sizes = [8, 8], strides = [1, 1]} : vector<64x64xf32> to vector<8x8xf32>
    %376 = vector.extract_strided_slice %287 {offsets = [48, 8], sizes = [8, 8], strides = [1, 1]} : vector<64x64xf32> to vector<8x8xf32>
    %377 = vector.extract_strided_slice %287 {offsets = [56, 8], sizes = [8, 8], strides = [1, 1]} : vector<64x64xf32> to vector<8x8xf32>
    %378 = tpu.concatenate %370, %371, %372, %373, %374, %375, %376, %377 in 1 : vector<8x8xf32>, vector<8x8xf32>, vector<8x8xf32>, vector<8x8xf32>, vector<8x8xf32>, vector<8x8xf32>, vector<8x8xf32>, vector<8x8xf32> -> vector<8x64xf32>
    %379 = vector.extract_strided_slice %287 {offsets = [0, 16], sizes = [8, 8], strides = [1, 1]} : vector<64x64xf32> to vector<8x8xf32>
    %380 = vector.extract_strided_slice %287 {offsets = [8, 16], sizes = [8, 8], strides = [1, 1]} : vector<64x64xf32> to vector<8x8xf32>
    %381 = vector.extract_strided_slice %287 {offsets = [16, 16], sizes = [8, 8], strides = [1, 1]} : vector<64x64xf32> to vector<8x8xf32>
    %382 = vector.extract_strided_slice %287 {offsets = [24, 16], sizes = [8, 8], strides = [1, 1]} : vector<64x64xf32> to vector<8x8xf32>
    %383 = vector.extract_strided_slice %287 {offsets = [32, 16], sizes = [8, 8], strides = [1, 1]} : vector<64x64xf32> to vector<8x8xf32>
    %384 = vector.extract_strided_slice %287 {offsets = [40, 16], sizes = [8, 8], strides = [1, 1]} : vector<64x64xf32> to vector<8x8xf32>
    %385 = vector.extract_strided_slice %287 {offsets = [48, 16], sizes = [8, 8], strides = [1, 1]} : vector<64x64xf32> to vector<8x8xf32>
    %386 = vector.extract_strided_slice %287 {offsets = [56, 16], sizes = [8, 8], strides = [1, 1]} : vector<64x64xf32> to vector<8x8xf32>
    %387 = tpu.concatenate %379, %380, %381, %382, %383, %384, %385, %386 in 1 : vector<8x8xf32>, vector<8x8xf32>, vector<8x8xf32>, vector<8x8xf32>, vector<8x8xf32>, vector<8x8xf32>, vector<8x8xf32>, vector<8x8xf32> -> vector<8x64xf32>
    %388 = vector.extract_strided_slice %287 {offsets = [0, 24], sizes = [8, 8], strides = [1, 1]} : vector<64x64xf32> to vector<8x8xf32>
    %389 = vector.extract_strided_slice %287 {offsets = [8, 24], sizes = [8, 8], strides = [1, 1]} : vector<64x64xf32> to vector<8x8xf32>
    %390 = vector.extract_strided_slice %287 {offsets = [16, 24], sizes = [8, 8], strides = [1, 1]} : vector<64x64xf32> to vector<8x8xf32>
    %391 = vector.extract_strided_slice %287 {offsets = [24, 24], sizes = [8, 8], strides = [1, 1]} : vector<64x64xf32> to vector<8x8xf32>
    %392 = vector.extract_strided_slice %287 {offsets = [32, 24], sizes = [8, 8], strides = [1, 1]} : vector<64x64xf32> to vector<8x8xf32>
    %393 = vector.extract_strided_slice %287 {offsets = [40, 24], sizes = [8, 8], strides = [1, 1]} : vector<64x64xf32> to vector<8x8xf32>
    %394 = vector.extract_strided_slice %287 {offsets = [48, 24], sizes = [8, 8], strides = [1, 1]} : vector<64x64xf32> to vector<8x8xf32>
    %395 = vector.extract_strided_slice %287 {offsets = [56, 24], sizes = [8, 8], strides = [1, 1]} : vector<64x64xf32> to vector<8x8xf32>
    %396 = tpu.concatenate %388, %389, %390, %391, %392, %393, %394, %395 in 1 : vector<8x8xf32>, vector<8x8xf32>, vector<8x8xf32>, vector<8x8xf32>, vector<8x8xf32>, vector<8x8xf32>, vector<8x8xf32>, vector<8x8xf32> -> vector<8x64xf32>
    %397 = vector.extract_strided_slice %287 {offsets = [0, 32], sizes = [8, 8], strides = [1, 1]} : vector<64x64xf32> to vector<8x8xf32>
    %398 = vector.extract_strided_slice %287 {offsets = [8, 32], sizes = [8, 8], strides = [1, 1]} : vector<64x64xf32> to vector<8x8xf32>
    %399 = vector.extract_strided_slice %287 {offsets = [16, 32], sizes = [8, 8], strides = [1, 1]} : vector<64x64xf32> to vector<8x8xf32>
    %400 = vector.extract_strided_slice %287 {offsets = [24, 32], sizes = [8, 8], strides = [1, 1]} : vector<64x64xf32> to vector<8x8xf32>
    %401 = vector.extract_strided_slice %287 {offsets = [32, 32], sizes = [8, 8], strides = [1, 1]} : vector<64x64xf32> to vector<8x8xf32>
    %402 = vector.extract_strided_slice %287 {offsets = [40, 32], sizes = [8, 8], strides = [1, 1]} : vector<64x64xf32> to vector<8x8xf32>
    %403 = vector.extract_strided_slice %287 {offsets = [48, 32], sizes = [8, 8], strides = [1, 1]} : vector<64x64xf32> to vector<8x8xf32>
    %404 = vector.extract_strided_slice %287 {offsets = [56, 32], sizes = [8, 8], strides = [1, 1]} : vector<64x64xf32> to vector<8x8xf32>
    %405 = tpu.concatenate %397, %398, %399, %400, %401, %402, %403, %404 in 1 : vector<8x8xf32>, vector<8x8xf32>, vector<8x8xf32>, vector<8x8xf32>, vector<8x8xf32>, vector<8x8xf32>, vector<8x8xf32>, vector<8x8xf32> -> vector<8x64xf32>
    %406 = vector.extract_strided_slice %287 {offsets = [0, 40], sizes = [8, 8], strides = [1, 1]} : vector<64x64xf32> to vector<8x8xf32>
    %407 = vector.extract_strided_slice %287 {offsets = [8, 40], sizes = [8, 8], strides = [1, 1]} : vector<64x64xf32> to vector<8x8xf32>
    %408 = vector.extract_strided_slice %287 {offsets = [16, 40], sizes = [8, 8], strides = [1, 1]} : vector<64x64xf32> to vector<8x8xf32>
    %409 = vector.extract_strided_slice %287 {offsets = [24, 40], sizes = [8, 8], strides = [1, 1]} : vector<64x64xf32> to vector<8x8xf32>
    %410 = vector.extract_strided_slice %287 {offsets = [32, 40], sizes = [8, 8], strides = [1, 1]} : vector<64x64xf32> to vector<8x8xf32>
    %411 = vector.extract_strided_slice %287 {offsets = [40, 40], sizes = [8, 8], strides = [1, 1]} : vector<64x64xf32> to vector<8x8xf32>
    %412 = vector.extract_strided_slice %287 {offsets = [48, 40], sizes = [8, 8], strides = [1, 1]} : vector<64x64xf32> to vector<8x8xf32>
    %413 = vector.extract_strided_slice %287 {offsets = [56, 40], sizes = [8, 8], strides = [1, 1]} : vector<64x64xf32> to vector<8x8xf32>
    %414 = tpu.concatenate %406, %407, %408, %409, %410, %411, %412, %413 in 1 : vector<8x8xf32>, vector<8x8xf32>, vector<8x8xf32>, vector<8x8xf32>, vector<8x8xf32>, vector<8x8xf32>, vector<8x8xf32>, vector<8x8xf32> -> vector<8x64xf32>
    %415 = vector.extract_strided_slice %287 {offsets = [0, 48], sizes = [8, 8], strides = [1, 1]} : vector<64x64xf32> to vector<8x8xf32>
    %416 = vector.extract_strided_slice %287 {offsets = [8, 48], sizes = [8, 8], strides = [1, 1]} : vector<64x64xf32> to vector<8x8xf32>
    %417 = vector.extract_strided_slice %287 {offsets = [16, 48], sizes = [8, 8], strides = [1, 1]} : vector<64x64xf32> to vector<8x8xf32>
    %418 = vector.extract_strided_slice %287 {offsets = [24, 48], sizes = [8, 8], strides = [1, 1]} : vector<64x64xf32> to vector<8x8xf32>
    %419 = vector.extract_strided_slice %287 {offsets = [32, 48], sizes = [8, 8], strides = [1, 1]} : vector<64x64xf32> to vector<8x8xf32>
    %420 = vector.extract_strided_slice %287 {offsets = [40, 48], sizes = [8, 8], strides = [1, 1]} : vector<64x64xf32> to vector<8x8xf32>
    %421 = vector.extract_strided_slice %287 {offsets = [48, 48], sizes = [8, 8], strides = [1, 1]} : vector<64x64xf32> to vector<8x8xf32>
    %422 = vector.extract_strided_slice %287 {offsets = [56, 48], sizes = [8, 8], strides = [1, 1]} : vector<64x64xf32> to vector<8x8xf32>
    %423 = tpu.concatenate %415, %416, %417, %418, %419, %420, %421, %422 in 1 : vector<8x8xf32>, vector<8x8xf32>, vector<8x8xf32>, vector<8x8xf32>, vector<8x8xf32>, vector<8x8xf32>, vector<8x8xf32>, vector<8x8xf32> -> vector<8x64xf32>
    %424 = vector.extract_strided_slice %287 {offsets = [0, 56], sizes = [8, 8], strides = [1, 1]} : vector<64x64xf32> to vector<8x8xf32>
    %425 = vector.extract_strided_slice %287 {offsets = [8, 56], sizes = [8, 8], strides = [1, 1]} : vector<64x64xf32> to vector<8x8xf32>
    %426 = vector.extract_strided_slice %287 {offsets = [16, 56], sizes = [8, 8], strides = [1, 1]} : vector<64x64xf32> to vector<8x8xf32>
    %427 = vector.extract_strided_slice %287 {offsets = [24, 56], sizes = [8, 8], strides = [1, 1]} : vector<64x64xf32> to vector<8x8xf32>
    %428 = vector.extract_strided_slice %287 {offsets = [32, 56], sizes = [8, 8], strides = [1, 1]} : vector<64x64xf32> to vector<8x8xf32>
    %429 = vector.extract_strided_slice %287 {offsets = [40, 56], sizes = [8, 8], strides = [1, 1]} : vector<64x64xf32> to vector<8x8xf32>
    %430 = vector.extract_strided_slice %287 {offsets = [48, 56], sizes = [8, 8], strides = [1, 1]} : vector<64x64xf32> to vector<8x8xf32>
    %431 = vector.extract_strided_slice %287 {offsets = [56, 56], sizes = [8, 8], strides = [1, 1]} : vector<64x64xf32> to vector<8x8xf32>
    %432 = tpu.concatenate %424, %425, %426, %427, %428, %429, %430, %431 in 1 : vector<8x8xf32>, vector<8x8xf32>, vector<8x8xf32>, vector<8x8xf32>, vector<8x8xf32>, vector<8x8xf32>, vector<8x8xf32>, vector<8x8xf32> -> vector<8x64xf32>
    %433 = tpu.concatenate %369, %378, %387, %396, %405, %414, %423, %432 in 0 : vector<8x64xf32>, vector<8x64xf32>, vector<8x64xf32>, vector<8x64xf32>, vector<8x64xf32>, vector<8x64xf32>, vector<8x64xf32>, vector<8x64xf32> -> vector<64x64xf32>
    %434 = arith.truncf %22 : vector<64x16xf32> to vector<64x16xbf16>
    %435 = arith.truncf %24 : vector<64x16xf32> to vector<64x16xbf16>
    %436 = tpu.concatenate %121, %360, %433 in 0 : vector<64x64xf32>, vector<64x64xf32>, vector<64x64xf32> -> vector<192x64xf32>
    %437 = arith.truncf %436 : vector<192x64xf32> to vector<192x64xbf16>
    %cst_66 = arith.constant dense<0.000000e+00> : vector<192x16xf32>
    %438 = tpu.matmul %437, %434, %cst_66 {dimension_numbers = #tpu.dot_dimension_numbers<[1], [0], [0], [1], [0, 0, 1, 1], [], []>} : vector<192x64xbf16>, vector<64x16xbf16>, vector<192x16xf32> -> vector<192x16xf32>
    %439 = vector.extract_strided_slice %438 {offsets = [0, 0], sizes = [64, 16], strides = [1, 1]} : vector<192x16xf32> to vector<64x16xf32>
    %440 = vector.extract_strided_slice %438 {offsets = [64, 0], sizes = [64, 16], strides = [1, 1]} : vector<192x16xf32> to vector<64x16xf32>
    %441 = vector.extract_strided_slice %438 {offsets = [128, 0], sizes = [64, 16], strides = [1, 1]} : vector<192x16xf32> to vector<64x16xf32>
    %442 = arith.truncf %121 : vector<64x64xf32> to vector<64x64xbf16>
    %cst_67 = arith.constant dense<0.000000e+00> : vector<64x16xf32>
    %443 = tpu.matmul %442, %435, %cst_67 {dimension_numbers = #tpu.dot_dimension_numbers<[1], [0], [0], [1], [0, 0, 1, 1], [], []>} : vector<64x64xbf16>, vector<64x16xbf16>, vector<64x16xf32> -> vector<64x16xf32>
    %c0_68 = arith.constant 0 : index
    %c0_69 = arith.constant 0 : index
    %444 = vector.load %arg6[%c0_68, %c0_69] : memref<64x16xbf16, #tpu.memory_space<vmem>>, vector<64x16xbf16>
    %445 = arith.truncf %439 : vector<64x16xf32> to vector<64x16xbf16>
    %446 = vector.extract_strided_slice %444 {offsets = [0, 0], sizes = [16, 16], strides = [1, 1]} : vector<64x16xbf16> to vector<16x16xbf16>
    %cst_70 = arith.constant dense<0.000000e+00> : vector<64x16xf32>
    %447 = tpu.matmul %445, %446, %cst_70 {dimension_numbers = #tpu.dot_dimension_numbers<[1], [0], [0], [1], [0, 0, 1, 1], [], []>} : vector<64x16xbf16>, vector<16x16xbf16>, vector<64x16xf32> -> vector<64x16xf32>
    %448 = arith.truncf %443 : vector<64x16xf32> to vector<64x16xbf16>
    %449 = vector.extract_strided_slice %444 {offsets = [16, 0], sizes = [16, 16], strides = [1, 1]} : vector<64x16xbf16> to vector<16x16xbf16>
    %cst_71 = arith.constant dense<0.000000e+00> : vector<64x16xf32>
    %450 = tpu.matmul %448, %449, %cst_71 {dimension_numbers = #tpu.dot_dimension_numbers<[1], [0], [0], [1], [0, 0, 1, 1], [], []>} : vector<64x16xbf16>, vector<16x16xbf16>, vector<64x16xf32> -> vector<64x16xf32>
    %451 = arith.addf %447, %450 : vector<64x16xf32>
    %452 = arith.truncf %440 : vector<64x16xf32> to vector<64x16xbf16>
    %453 = vector.extract_strided_slice %444 {offsets = [32, 0], sizes = [16, 16], strides = [1, 1]} : vector<64x16xbf16> to vector<16x16xbf16>
    %cst_72 = arith.constant dense<0.000000e+00> : vector<64x16xf32>
    %454 = tpu.matmul %452, %453, %cst_72 {dimension_numbers = #tpu.dot_dimension_numbers<[1], [0], [0], [1], [0, 0, 1, 1], [], []>} : vector<64x16xbf16>, vector<16x16xbf16>, vector<64x16xf32> -> vector<64x16xf32>
    %455 = arith.addf %451, %454 : vector<64x16xf32>
    %456 = arith.truncf %441 : vector<64x16xf32> to vector<64x16xbf16>
    %457 = vector.extract_strided_slice %444 {offsets = [48, 0], sizes = [16, 16], strides = [1, 1]} : vector<64x16xbf16> to vector<16x16xbf16>
    %cst_73 = arith.constant dense<0.000000e+00> : vector<64x16xf32>
    %458 = tpu.matmul %456, %457, %cst_73 {dimension_numbers = #tpu.dot_dimension_numbers<[1], [0], [0], [1], [0, 0, 1, 1], [], []>} : vector<64x16xbf16>, vector<16x16xbf16>, vector<64x16xf32> -> vector<64x16xf32>
    %459 = arith.addf %455, %458 : vector<64x16xf32>
    %c0_74 = arith.constant 0 : index
    %c0_75 = arith.constant 0 : index
    %460 = vector.load %arg7[%c0_74, %c0_75] : memref<1x16xf32, #tpu.memory_space<vmem>>, vector<1x16xf32>
    %461 = vector.broadcast %460 : vector<1x16xf32> to vector<64x16xf32>
    %462 = arith.addf %459, %461 : vector<64x16xf32>
    %c0_76 = arith.constant 0 : index
    %463 = memref.load %arg8[%c0_76] : memref<1xf32, #tpu.memory_space<smem>>
    %464 = vector.broadcast %463 : f32 to vector<64x16xf32>
    %465 = arith.mulf %464, %462 : vector<64x16xf32>
    %466 = arith.addf %465, %1 : vector<64x16xf32>
    %c0_77 = arith.constant 0 : index
    %c0_78 = arith.constant 0 : index
    %c0_79 = arith.constant 0 : index
    %467 = vector.load %arg9[%c0_77, %c0_78, %c0_79] : memref<1x64x16xf32, #tpu.memory_space<vmem>>, vector<1x64x16xf32>
    %468 = vector.shape_cast %467 : vector<1x64x16xf32> to vector<64x16xf32>
    %469 = vector.shape_cast %466 : vector<64x16xf32> to vector<1x64x16xf32>
    tpu.vector_store %arg9[%c0_77, %c0_78, %c0_79], %469 {strides = array<i32>} : memref<1x64x16xf32, #tpu.memory_space<vmem>>, vector<1x64x16xf32>,
    return
  }
  func.func @transform_0(%arg0: i32) -> (i32, i32, i32) {
    %c0_i32 = arith.constant 0 : i32
    %c0_i32_0 = arith.constant 0 : i32
    %c0_i32_1 = arith.constant 0 : i32
    return %arg0, %c0_i32, %c0_i32_0 : i32, i32, i32
  }
  func.func @transform_1(%arg0: i32) -> (i32, i32, i32) {
    %c0_i32 = arith.constant 0 : i32
    %c0_i32_0 = arith.constant 0 : i32
    %c0_i32_1 = arith.constant 0 : i32
    return %arg0, %c0_i32, %c0_i32_0 : i32, i32, i32
  }
  func.func @transform_2(%arg0: i32) -> (i32, i32, i32) {
    %c0_i32 = arith.constant 0 : i32
    %c0_i32_0 = arith.constant 0 : i32
    %c0_i32_1 = arith.constant 0 : i32
    return %arg0, %c0_i32, %c0_i32_0 : i32, i32, i32
  }
  func.func @transform_3(%arg0: i32) -> (i32, i32) {
    %c0_i32 = arith.constant 0 : i32
    %c0_i32_0 = arith.constant 0 : i32
    %c0_i32_1 = arith.constant 0 : i32
    return %c0_i32, %c0_i32_0 : i32, i32
  }
  func.func @transform_4(%arg0: i32) -> (i32, i32) {
    %c0_i32 = arith.constant 0 : i32
    %c0_i32_0 = arith.constant 0 : i32
    %c0_i32_1 = arith.constant 0 : i32
    return %c0_i32, %c0_i32_0 : i32, i32
  }
  func.func @transform_5(%arg0: i32) -> (i32, i32) {
    %c0_i32 = arith.constant 0 : i32
    %c0_i32_0 = arith.constant 0 : i32
    %c0_i32_1 = arith.constant 0 : i32
    return %c0_i32, %c0_i32_0 : i32, i32
  }
  func.func @transform_6(%arg0: i32) -> (i32, i32) {
    %c0_i32 = arith.constant 0 : i32
    %c0_i32_0 = arith.constant 0 : i32
    %c0_i32_1 = arith.constant 0 : i32
    return %c0_i32, %c0_i32_0 : i32, i32
  }
  func.func @transform_7(%arg0: i32) -> i32 {
    %c0_i32 = arith.constant 0 : i32
    %c0_i32_0 = arith.constant 0 : i32
    return %c0_i32 : i32
  }
  func.func @transform_8(%arg0: i32) -> (i32, i32, i32) {
    %c0_i32 = arith.constant 0 : i32
    %c0_i32_0 = arith.constant 0 : i32
    %c0_i32_1 = arith.constant 0 : i32
    return %arg0, %c0_i32, %c0_i32_0 : i32, i32, i32
  }
}

</mosaic_0001>

<llo_original>
// kernel: tpu_custom_call.1
$region0: #{tpu_custom_call.1}
  #allocation0 [shape = 'u32[]', space=smem, size = 0x4, offset = 0x4, fixed_abs, tag = 'smem constant byte address 0x4 - core index']
  #allocation1 [shape = 'u32[144,128]{1,0:T(1,128)}', space=vmem, size = 0x12000, scoped, tag = 'internal scratch']
  #allocation2 [shape = 'f32[1]{0:T(128)S(6)}', space=smem, size = 0x200, scoped, tag = 'scoped memory for tpu_custom_call.1']
  %s0 = inlined_call_operand.vmem [shape: f32[2,64,16], index: 0, kind: input, shape index: {}]
  %s1 = inlined_call_operand.vmem [shape: f32[2,64,16], index: 1, kind: input, shape index: {}]
  %s2 = inlined_call_operand.vmem [shape: f32[2,64,16], index: 2, kind: input, shape index: {}]
  %s3 = inlined_call_operand.vmem [shape: bf16[16,20], index: 3, kind: input, shape index: {}]
  %s4 = inlined_call_operand.vmem [shape: f32[1,20], index: 4, kind: input, shape index: {}]
  %s5 = inlined_call_operand.vmem [shape: bf16[64,16], index: 5, kind: input, shape index: {}]
  %s6 = inlined_call_operand.vmem [shape: f32[1,16], index: 6, kind: input, shape index: {}]
  %s7 = inlined_call_operand.<no memory space> [shape: f32[1], index: 7, kind: input, shape index: {}]
  %s8 = inlined_call_operand.vmem [shape: f32[2,64,16], index: 8, kind: output, shape index: {}]
  %s9 = sld [smem:[#allocation0]]
  $region65: #{tpu_custom_call.1} parent=0
    _
  %s11 = ssub.s32 1, %s9
  %s12 = scalar_select 0, %s11, %s9
  %13 = sst [smem:[#allocation2]] %s7
  loop: start=0, step=1, limit=4
  $region2: #{tpu_custom_call.1} parent=0 // loop_pre_header
    _
  $region3: #{tpu_custom_call.1} parent=0 // loop_header
    %s15 = sphi 0, %s19
    %p16 = scmp.ge.s32.totalorder %s15, 4
    %s25 = sphi 0, %s27
    %s28 = sphi 0, %s25
    %s29 = sphi 0, %s28
    %s45 = sphi 0, %s29
    %s51 = sphi 0, %s53
    %s54 = sphi 0, %s51
    %s55 = sphi 0, %s54
    %s71 = sphi 0, %s55
    %s77 = sphi 0, %s79
    %s80 = sphi 0, %s77
    %s81 = sphi 0, %s80
    %s97 = sphi 0, %s81
    %s101 = sphi 0, %s101
    %s103 = sphi 0, %s101
    %s104 = sphi 0, %s103
    %s118 = sphi 0, %s104
    %s122 = sphi 0, %s122
    %s124 = sphi 0, %s122
    %s125 = sphi 0, %s124
    %s139 = sphi 0, %s125
    %s143 = sphi 0, %s143
    %s145 = sphi 0, %s143
    %s146 = sphi 0, %s145
    %s160 = sphi 0, %s146
    %s164 = sphi 0, %s164
    %s166 = sphi 0, %s164
    %s167 = sphi 0, %s166
    %s181 = sphi 0, %s167
    %s185 = sphi 0, %s185
    %s187 = sphi 0, %s185
    %s188 = sphi 0, %s187
    %s202 = sphi 0, %s188
    %s208 = sphi 0, %s210
    %s211 = sphi 0, %s208
    %s212 = sphi 0, %s211
    %s228 = sphi 0, %s212
  $region4: #{tpu_custom_call.1} parent=0 // loop_header_branch
    %18 = sbr.rel (%p16) target = $region8
  $region5: #{tpu_custom_call.1} parent=0 // loop_body
    %s20 = ssub.s32 %s15, 1
    %s21 = ssub.s32 %s15, 2
    %s22 = sadd.s32 %s15, 1
    %s23 = ssub.s32 %s15, %s22
    %p24 = scmp.eq.s32.totalorder %s23, 0
    %s26 = sadd.s32 %s25, 1
    %s27 = scalar_select %p24, %s25, %s26
    %p30 = pneg %p24
    %p31 = scmp.eq.s32.totalorder %s15, 1
    %p32 = por %p30, %p31
    %p33 = scmp.ne.s32.totalorder %s25, %s28
    %p34 = scmp.eq.s32.totalorder %s15, 0
    %p35 = por %p33, %p34
    %p36 = scmp.ne.s32.totalorder %s25, %s28
    %p37 = scmp.eq.s32.totalorder %s20, 1
    %p38 = por %p36, %p37
    %p39 = scmp.ne.s32.totalorder %s28, %s29
    %p40 = scmp.eq.s32.totalorder %s20, 0
    %p41 = por %p39, %p40
    %p42 = scmp.ne.s32.totalorder %s28, %s29
    %p43 = scmp.eq.s32.totalorder %s21, 1
    %p44 = por %p42, %p43
    %p46 = scmp.ne.s32.totalorder %s29, %s45
    %p47 = scmp.eq.s32.totalorder %s21, 0
    %p48 = por %p46, %p47
    %s49 = ssub.s32 %s15, %s22
    %p50 = scmp.eq.s32.totalorder %s49, 0
    %s52 = sadd.s32 %s51, 1
    %s53 = scalar_select %p50, %s51, %s52
    %p56 = pneg %p50
    %p57 = scmp.eq.s32.totalorder %s15, 1
    %p58 = por %p56, %p57
    %p59 = scmp.ne.s32.totalorder %s51, %s54
    %p60 = scmp.eq.s32.totalorder %s15, 0
    %p61 = por %p59, %p60
    %p62 = scmp.ne.s32.totalorder %s51, %s54
    %p63 = scmp.eq.s32.totalorder %s20, 1
    %p64 = por %p62, %p63
    %p65 = scmp.ne.s32.totalorder %s54, %s55
    %p66 = scmp.eq.s32.totalorder %s20, 0
    %p67 = por %p65, %p66
    %p68 = scmp.ne.s32.totalorder %s54, %s55
    %p69 = scmp.eq.s32.totalorder %s21, 1
    %p70 = por %p68, %p69
    %p72 = scmp.ne.s32.totalorder %s55, %s71
    %p73 = scmp.eq.s32.totalorder %s21, 0
    %p74 = por %p72, %p73
    %s75 = ssub.s32 %s15, %s22
    %p76 = scmp.eq.s32.totalorder %s75, 0
    %s78 = sadd.s32 %s77, 1
    %s79 = scalar_select %p76, %s77, %s78
    %p82 = pneg %p76
    %p83 = scmp.eq.s32.totalorder %s15, 1
    %p84 = por %p82, %p83
    %p85 = scmp.ne.s32.totalorder %s77, %s80
    %p86 = scmp.eq.s32.totalorder %s15, 0
    %p87 = por %p85, %p86
    %p88 = scmp.ne.s32.totalorder %s77, %s80
    %p89 = scmp.eq.s32.totalorder %s20, 1
    %p90 = por %p88, %p89
    %p91 = scmp.ne.s32.totalorder %s80, %s81
    %p92 = scmp.eq.s32.totalorder %s20, 0
    %p93 = por %p91, %p92
    %p94 = scmp.ne.s32.totalorder %s80, %s81
    %p95 = scmp.eq.s32.totalorder %s21, 1
    %p96 = por %p94, %p95
    %p98 = scmp.ne.s32.totalorder %s81, %s97
    %p99 = scmp.eq.s32.totalorder %s21, 0
    %p100 = por %p98, %p99
    %s102 = sadd.s32 %s101, 1
    %p105 = scmp.eq.s32.totalorder %s15, 1
    %p106 = scmp.ne.s32.totalorder %s101, %s103
    %p107 = scmp.eq.s32.totalorder %s15, 0
    %p108 = por %p106, %p107
    %p109 = scmp.ne.s32.totalorder %s101, %s103
    %p110 = scmp.eq.s32.totalorder %s20, 1
    %p111 = por %p109, %p110
    %p112 = scmp.ne.s32.totalorder %s103, %s104
    %p113 = scmp.eq.s32.totalorder %s20, 0
    %p114 = por %p112, %p113
    %p115 = scmp.ne.s32.totalorder %s103, %s104
    %p116 = scmp.eq.s32.totalorder %s21, 1
    %p117 = por %p115, %p116
    %p119 = scmp.ne.s32.totalorder %s104, %s118
    %p120 = scmp.eq.s32.totalorder %s21, 0
    %p121 = por %p119, %p120
    %s123 = sadd.s32 %s122, 1
    %p126 = scmp.eq.s32.totalorder %s15, 1
    %p127 = scmp.ne.s32.totalorder %s122, %s124
    %p128 = scmp.eq.s32.totalorder %s15, 0
    %p129 = por %p127, %p128
    %p130 = scmp.ne.s32.totalorder %s122, %s124
    %p131 = scmp.eq.s32.totalorder %s20, 1
    %p132 = por %p130, %p131
    %p133 = scmp.ne.s32.totalorder %s124, %s125
    %p134 = scmp.eq.s32.totalorder %s20, 0
    %p135 = por %p133, %p134
    %p136 = scmp.ne.s32.totalorder %s124, %s125
    %p137 = scmp.eq.s32.totalorder %s21, 1
    %p138 = por %p136, %p137
    %p140 = scmp.ne.s32.totalorder %s125, %s139
    %p141 = scmp.eq.s32.totalorder %s21, 0
    %p142 = por %p140, %p141
    %s144 = sadd.s32 %s143, 1
    %p147 = scmp.eq.s32.totalorder %s15, 1
    %p148 = scmp.ne.s32.totalorder %s143, %s145
    %p149 = scmp.eq.s32.totalorder %s15, 0
    %p150 = por %p148, %p149
    %p151 = scmp.ne.s32.totalorder %s143, %s145
    %p152 = scmp.eq.s32.totalorder %s20, 1
    %p153 = por %p151, %p152
    %p154 = scmp.ne.s32.totalorder %s145, %s146
    %p155 = scmp.eq.s32.totalorder %s20, 0
    %p156 = por %p154, %p155
    %p157 = scmp.ne.s32.totalorder %s145, %s146
    %p158 = scmp.eq.s32.totalorder %s21, 1
    %p159 = por %p157, %p158
    %p161 = scmp.ne.s32.totalorder %s146, %s160
    %p162 = scmp.eq.s32.totalorder %s21, 0
    %p163 = por %p161, %p162
    %s165 = sadd.s32 %s164, 1
    %p168 = scmp.eq.s32.totalorder %s15, 1
    %p169 = scmp.ne.s32.totalorder %s164, %s166
    %p170 = scmp.eq.s32.totalorder %s15, 0
    %p171 = por %p169, %p170
    %p172 = scmp.ne.s32.totalorder %s164, %s166
    %p173 = scmp.eq.s32.totalorder %s20, 1
    %p174 = por %p172, %p173
    %p175 = scmp.ne.s32.totalorder %s166, %s167
    %p176 = scmp.eq.s32.totalorder %s20, 0
    %p177 = por %p175, %p176
    %p178 = scmp.ne.s32.totalorder %s166, %s167
    %p179 = scmp.eq.s32.totalorder %s21, 1
    %p180 = por %p178, %p179
    %p182 = scmp.ne.s32.totalorder %s167, %s181
    %p183 = scmp.eq.s32.totalorder %s21, 0
    %p184 = por %p182, %p183
    %s186 = sadd.s32 %s185, 1
    %p189 = scmp.eq.s32.totalorder %s15, 1
    %p190 = scmp.ne.s32.totalorder %s185, %s187
    %p191 = scmp.eq.s32.totalorder %s15, 0
    %p192 = por %p190, %p191
    %p193 = scmp.ne.s32.totalorder %s185, %s187
    %p194 = scmp.eq.s32.totalorder %s20, 1
    %p195 = por %p193, %p194
    %p196 = scmp.ne.s32.totalorder %s187, %s188
    %p197 = scmp.eq.s32.totalorder %s20, 0
    %p198 = por %p196, %p197
    %p199 = scmp.ne.s32.totalorder %s187, %s188
    %p200 = scmp.eq.s32.totalorder %s21, 1
    %p201 = por %p199, %p200
    %p203 = scmp.ne.s32.totalorder %s188, %s202
    %p204 = scmp.eq.s32.totalorder %s21, 0
    %p205 = por %p203, %p204
    %s206 = ssub.s32 %s15, %s22
    %p207 = scmp.eq.s32.totalorder %s206, 0
    %s209 = sadd.s32 %s208, 1
    %s210 = scalar_select %p207, %s208, %s209
    %p213 = pneg %p207
    %p214 = scmp.eq.s32.totalorder %s15, 1
    %p215 = por %p213, %p214
    %p216 = scmp.ne.s32.totalorder %s208, %s211
    %p217 = scmp.eq.s32.totalorder %s15, 0
    %p218 = por %p216, %p217
    %p219 = scmp.ne.s32.totalorder %s208, %s211
    %p220 = scmp.eq.s32.totalorder %s20, 1
    %p221 = por %p219, %p220
    %p222 = scmp.ne.s32.totalorder %s211, %s212
    %p223 = scmp.eq.s32.totalorder %s20, 0
    %p224 = por %p222, %p223
    %p225 = scmp.ne.s32.totalorder %s211, %s212
    %p226 = scmp.eq.s32.totalorder %s21, 1
    %p227 = por %p225, %p226
    %p229 = scmp.ne.s32.totalorder %s212, %s228
    %p230 = scmp.eq.s32.totalorder %s21, 0
    %p231 = por %p229, %p230
    %p232 = scmp.le.s32.totalorder 1, %s15
    %p233 = scmp.lt.s32.totalorder %s15, 3
    %p234 = pnand %p232, %p233
    %p235 = pneg %p234
    // Predicated region
    $region9: #{tpu_custom_call.1} parent=5 // pred_check
      _
    $region10: #{tpu_custom_call.1} parent=5 // pred_check_branch
      %237 = sbr.rel (%p234) target = $region12
    $region11: #{tpu_custom_call.1} parent=5 // pred_region
      %s238 = ssub.s32 %s15, 1
      // Predicated region
      $region13: #{tpu_custom_call.1} parent=11 // pred_check
        %p239 = pneg %p114
      $region14: #{tpu_custom_call.1} parent=11 // pred_check_branch
        %241 = sbr.rel (%p239) target = $region16
      $region15: #{tpu_custom_call.1} parent=11 // pred_region
        _
      $region16: #{tpu_custom_call.1} parent=11 // pred_fallthru
        _
      // Predicated region
      $region17: #{tpu_custom_call.1} parent=11 // pred_check
        %p242 = pneg %p135
      $region18: #{tpu_custom_call.1} parent=11 // pred_check_branch
        %244 = sbr.rel (%p242) target = $region20
      $region19: #{tpu_custom_call.1} parent=11 // pred_region
        _
      $region20: #{tpu_custom_call.1} parent=11 // pred_fallthru
        _
      // Predicated region
      $region21: #{tpu_custom_call.1} parent=11 // pred_check
        %p245 = pneg %p156
      $region22: #{tpu_custom_call.1} parent=11 // pred_check_branch
        %247 = sbr.rel (%p245) target = $region24
      $region23: #{tpu_custom_call.1} parent=11 // pred_region
        _
      $region24: #{tpu_custom_call.1} parent=11 // pred_fallthru
        _
      // Predicated region
      $region25: #{tpu_custom_call.1} parent=11 // pred_check
        %p248 = pneg %p177
      $region26: #{tpu_custom_call.1} parent=11 // pred_check_branch
        %250 = sbr.rel (%p248) target = $region28
      $region27: #{tpu_custom_call.1} parent=11 // pred_region
        _
      $region28: #{tpu_custom_call.1} parent=11 // pred_fallthru
        _
      // Predicated region
      $region29: #{tpu_custom_call.1} parent=11 // pred_check
        %p251 = pneg %p198
      $region30: #{tpu_custom_call.1} parent=11 // pred_check_branch
        %253 = sbr.rel (%p251) target = $region32
      $region31: #{tpu_custom_call.1} parent=11 // pred_region
        _
      $region32: #{tpu_custom_call.1} parent=11 // pred_fallthru
        _
    $region12: #{tpu_custom_call.1} parent=5 // pred_fallthru
      _
    %p254 = scmp.lt.s32.totalorder %s15, 2
    // Predicated region
    $region33: #{tpu_custom_call.1} parent=5 // pred_check
      %p255 = pneg %p254
    $region34: #{tpu_custom_call.1} parent=5 // pred_check_branch
      %257 = sbr.rel (%p255) target = $region36
    $region35: #{tpu_custom_call.1} parent=5 // pred_region
      // Predicated region
      $region37: #{tpu_custom_call.1} parent=35 // pred_check
        %p258 = pneg %p35
      $region38: #{tpu_custom_call.1} parent=35 // pred_check_branch
        %260 = sbr.rel (%p258) target = $region40
      $region39: #{tpu_custom_call.1} parent=35 // pred_region
        %p261 = scmp.lt.s32.totalorder %s15, 1
        %s262 = scalar_select %p261, %s15, 1
        %s263 = smul.addr %s262, 8
        %s264 = smul.addr %s263, 8
        %s265 = scalar_lea.vmem %s0, %s264
      $region40: #{tpu_custom_call.1} parent=35 // pred_fallthru
        _
      // Predicated region
      $region41: #{tpu_custom_call.1} parent=35 // pred_check
        %p266 = pneg %p61
      $region42: #{tpu_custom_call.1} parent=35 // pred_check_branch
        %268 = sbr.rel (%p266) target = $region44
      $region43: #{tpu_custom_call.1} parent=35 // pred_region
        %p269 = scmp.lt.s32.totalorder %s15, 1
        %s270 = scalar_select %p269, %s15, 1
        %s271 = smul.addr %s270, 8
        %s272 = smul.addr %s271, 8
        %s273 = scalar_lea.vmem %s1, %s272
      $region44: #{tpu_custom_call.1} parent=35 // pred_fallthru
        _
      // Predicated region
      $region45: #{tpu_custom_call.1} parent=35 // pred_check
        %p274 = pneg %p87
      $region46: #{tpu_custom_call.1} parent=35 // pred_check_branch
        %276 = sbr.rel (%p274) target = $region48
      $region47: #{tpu_custom_call.1} parent=35 // pred_region
        %p277 = scmp.lt.s32.totalorder %s15, 1
        %s278 = scalar_select %p277, %s15, 1
        %s279 = smul.addr %s278, 8
        %s280 = smul.addr %s279, 8
        %s281 = scalar_lea.vmem %s2, %s280
      $region48: #{tpu_custom_call.1} parent=35 // pred_fallthru
        _
    $region36: #{tpu_custom_call.1} parent=5 // pred_fallthru
      _
    %p282 = scmp.le.s32.totalorder 1, %s15
    %p283 = scmp.lt.s32.totalorder %s15, 3
    %p284 = pnand %p282, %p283
    %p285 = pneg %p284
    // Predicated region
    $region49: #{tpu_custom_call.1} parent=5 // pred_check
      _
    $region50: #{tpu_custom_call.1} parent=5 // pred_check_branch
      %287 = sbr.rel (%p284) target = $region52
    $region51: #{tpu_custom_call.1} parent=5 // pred_region
      %s288 = ssub.s32 %s15, 1
      %p289 = scmp.lt.s32.totalorder %s20, 1
      %s290 = scalar_select %p289, %s20, 1
      %s291 = smul.addr %s290, 8
      %s292 = smul.addr %s291, 8
      %s293 = scalar_lea.vmem %s0, %s292
      %p294 = pneg %p41
      %p295 = pneg %p38
      %p296 = scmp.lt.s32.totalorder %s20, 1
      %s297 = scalar_select %p296, %s20, 1
      %s298 = smul.addr %s297, 8
      %s299 = smul.addr %s298, 8
      %s300 = scalar_lea.vmem %s1, %s299
      %p301 = pneg %p67
      %p302 = pneg %p64
      %p303 = scmp.lt.s32.totalorder %s20, 1
      %s304 = scalar_select %p303, %s20, 1
      %s305 = smul.addr %s304, 8
      %s306 = smul.addr %s305, 8
      %s307 = scalar_lea.vmem %s2, %s306
      %p308 = pneg %p93
      %p309 = pneg %p90
      %p310 = pneg %p114
      %p311 = pneg %p111
      %p312 = pneg %p135
      %p313 = pneg %p132
      %p314 = pneg %p156
      %p315 = pneg %p153
      %p316 = pneg %p177
      %p317 = pneg %p174
      %p318 = pneg %p198
      %p319 = pneg %p195
      %p320 = pneg %p224
      %p321 = pneg %p221
      %p322 = scmp.lt.s32.totalorder %s20, 1
      %s323 = scalar_select %p322, %s20, 1
      %s324 = smul.addr %s323, 8
      %s325 = smul.addr %s324, 8
      %s326 = scalar_lea.vmem %s8, %s325
      %p327 = scmp.lt.s32.totalorder %s20, 1
      %s328 = scalar_select %p327, %s20, 1
      %s329 = smul.addr %s328, 8
      %s330 = smul.addr %s329, 8
      %s331 = scalar_lea.vmem %s0, %s330
      %p332 = scmp.lt.s32.totalorder %s20, 1
      %s333 = scalar_select %p332, %s20, 1
      %s334 = smul.addr %s333, 8
      %s335 = smul.addr %s334, 8
      %s336 = scalar_lea.vmem %s1, %s335
      %p337 = scmp.lt.s32.totalorder %s20, 1
      %s338 = scalar_select %p337, %s20, 1
      %s339 = smul.addr %s338, 8
      %s340 = smul.addr %s339, 8
      %s341 = scalar_lea.vmem %s2, %s340
      %p342 = scmp.lt.s32.totalorder %s20, 1
      %s343 = scalar_select %p342, %s20, 1
      %s344 = smul.addr %s343, 8
      %s345 = smul.addr %s344, 8
      %s346 = scalar_lea.vmem %s8, %s345
      %v348 = vld [vmem:[%s331] sm:$0xff]
      %v349 = vld [vmem:[%s331 + $0x8] sm:$0xff]
      %v350 = vld [vmem:[%s331 + $0x10] sm:$0xff]
      %v351 = vld [vmem:[%s331 + $0x18] sm:$0xff]
      %v352 = vld [vmem:[%s331 + $0x20] sm:$0xff]
      %v353 = vld [vmem:[%s331 + $0x28] sm:$0xff]
      %v354 = vld [vmem:[%s331 + $0x30] sm:$0xff]
      %v355 = vld [vmem:[%s331 + $0x38] sm:$0xff]
      %v356 = vld [vmem:[%s336] sm:$0xff]
      %v357 = vld [vmem:[%s336 + $0x8] sm:$0xff]
      %v358 = vld [vmem:[%s336 + $0x10] sm:$0xff]
      %v359 = vld [vmem:[%s336 + $0x18] sm:$0xff]
      %v360 = vld [vmem:[%s336 + $0x20] sm:$0xff]
      %v361 = vld [vmem:[%s336 + $0x28] sm:$0xff]
      %v362 = vld [vmem:[%s336 + $0x30] sm:$0xff]
      %v363 = vld [vmem:[%s336 + $0x38] sm:$0xff]
      %v364 = vld [vmem:[%s341] sm:$0xff]
      %v365 = vld [vmem:[%s341 + $0x8] sm:$0xff]
      %v366 = vld [vmem:[%s341 + $0x10] sm:$0xff]
      %v367 = vld [vmem:[%s341 + $0x18] sm:$0xff]
      %v368 = vld [vmem:[%s341 + $0x20] sm:$0xff]
      %v369 = vld [vmem:[%s341 + $0x28] sm:$0xff]
      %v370 = vld [vmem:[%s341 + $0x30] sm:$0xff]
      %v371 = vld [vmem:[%s341 + $0x38] sm:$0xff]
      %v372 = vld [vmem:[%s3] sm:$0xf]
      %v373 = vld [vmem:[%s3 + $0x4] sm:$0xf]
      %v374 = vld [vmem:[%s4] sm:$0x1]
      %v375 = vpack.c.bf16 %v349, %v348
      %v376 = vpack.c.bf16 %v351, %v350
      %v377 = vpack.c.bf16 %v353, %v352
      %v378 = vpack.c.bf16 %v355, %v354
      %v380 = vlaneseq
      %v381 = vshrl.u32 %v380, 7
      %v382 = vsub.s32 0, %v381
      %v383 = vrot.slane %v374, %v382
      %v387 = vunpack.c.l.b16 %v372
      %v388 = vunpack.c.l.b16 %v373
      %v389 = vpack.c.b16 %v388, %v387
      %vm391 = vcmask 130048
      %v393 = vsel %vm391, %v375, 0
      %v396 = vsel %vm391, %v376, 0
      %v399 = vsel %vm391, %v377, 0
      %v402 = vsel %vm391, %v378, 0
      %404 = vmatprep.subr.bf16.mxu0 0
      %405 = vmatpush1.bf16.msra.mxu0 %v389
      %406 = vmatprep.subr.bf16.mxu0 0
      %407 = vmatpush1.bf16.msra.mxu0 0
      %408 = vmatprep.subr.bf16.mxu0 0
      %409 = vmatpush1.bf16.msra.mxu0 0
      %410 = vmatprep.subr.bf16.mxu0 0
      %411 = vmatpush1.bf16.msra.mxu0 0
      %412 = vmatprep.subr.bf16.mxu0 0
      %413 = vmatpush1.bf16.msra.mxu0 0
      %414 = vmatprep.subr.bf16.mxu0 0
      %415 = vmatpush1.bf16.msra.mxu0 0
      %416 = vmatprep.subr.bf16.mxu0 0
      %417 = vmatpush1.bf16.msra.mxu0 0
      %418 = vmatprep.subr.bf16.mxu0 0
      %419 = vmatpush1.bf16.msra.mxu0 0
      %420 = vmatprep.subr.bf16.mxu0 0
      %421 = vmatpush1.bf16.msra.mxu0 0
      %422 = vmatprep.subr.bf16.mxu0 0
      %423 = vmatpush1.bf16.msra.mxu0 0
      %424 = vmatprep.subr.bf16.mxu0 0
      %425 = vmatpush1.bf16.msra.mxu0 0
      %426 = vmatprep.subr.bf16.mxu0 0
      %427 = vmatpush1.bf16.msra.mxu0 0
      %428 = vmatprep.subr.bf16.mxu0 0
      %429 = vmatpush1.bf16.msra.mxu0 0
      %430 = vmatprep.subr.bf16.mxu0 0
      %431 = vmatpush1.bf16.msra.mxu0 0
      %432 = vmatprep.subr.bf16.mxu0 0
      %433 = vmatpush1.bf16.msra.mxu0 0
      %434 = vmatprep.subr.bf16.mxu0 0
      %435 = vmatpush1.bf16.msra.mxu0 0
      %436 = vmatprep.mubr.bf16.mxu0 0
      %437 = vmatmul.mubr.bf16.gmra.mrb[0].mxu0 %v393
      %v438 = vpop.f32.mrb[0].mxu0
      %v439 = vadd.f32 %v383, %v438
      %v440 = vpop.f32.mrb[0].mxu0
      %v441 = vpop.f32.mrb[0].mxu0
      %v442 = vadd.f32 %v383, %v441
      %v443 = vpop.f32.mrb[0].mxu0
      %444 = vmatprep.mubr.bf16.mxu0 0
      %445 = vmatmul.mubr.bf16.gmra.mrb[0].mxu0 %v396
      %v446 = vpop.f32.mrb[0].mxu0
      %v447 = vadd.f32 %v383, %v446
      %v448 = vpop.f32.mrb[0].mxu0
      %v449 = vpop.f32.mrb[0].mxu0
      %v450 = vadd.f32 %v383, %v449
      %v451 = vpop.f32.mrb[0].mxu0
      %452 = vmatprep.mubr.bf16.mxu0 0
      %453 = vmatmul.mubr.bf16.gmra.mrb[0].mxu0 %v399
      %v454 = vpop.f32.mrb[0].mxu0
      %v455 = vadd.f32 %v383, %v454
      %v456 = vpop.f32.mrb[0].mxu0
      %v457 = vpop.f32.mrb[0].mxu0
      %v458 = vadd.f32 %v383, %v457
      %v459 = vpop.f32.mrb[0].mxu0
      %460 = vmatprep.mubr.bf16.mxu0 0
      %461 = vmatmul.mubr.bf16.gmra.mrb[0].mxu0 %v402
      %v462 = vpop.f32.mrb[0].mxu0
      %v463 = vadd.f32 %v383, %v462
      %v464 = vpop.f32.mrb[0].mxu0
      %v465 = vpop.f32.mrb[0].mxu0
      %v466 = vadd.f32 %v383, %v465
      %v467 = vpop.f32.mrb[0].mxu0
      %468 = vdwg.mxu0
      %v469 = vpack.c.bf16 %v357, %v356
      %v470 = vpack.c.bf16 %v359, %v358
      %v471 = vpack.c.bf16 %v361, %v360
      %v472 = vpack.c.bf16 %v363, %v362
      %v474 = vsel %vm391, %v469, 0
      %v477 = vsel %vm391, %v470, 0
      %v480 = vsel %vm391, %v471, 0
      %v483 = vsel %vm391, %v472, 0
      %485 = vmatprep.subr.bf16.mxu0 0
      %486 = vmatpush1.bf16.msra.mxu0 %v389
      %487 = vmatprep.subr.bf16.mxu0 0
      %488 = vmatpush1.bf16.msra.mxu0 0
      %489 = vmatprep.subr.bf16.mxu0 0
      %490 = vmatpush1.bf16.msra.mxu0 0
      %491 = vmatprep.subr.bf16.mxu0 0
      %492 = vmatpush1.bf16.msra.mxu0 0
      %493 = vmatprep.subr.bf16.mxu0 0
      %494 = vmatpush1.bf16.msra.mxu0 0
      %495 = vmatprep.subr.bf16.mxu0 0
      %496 = vmatpush1.bf16.msra.mxu0 0
      %497 = vmatprep.subr.bf16.mxu0 0
      %498 = vmatpush1.bf16.msra.mxu0 0
      %499 = vmatprep.subr.bf16.mxu0 0
      %500 = vmatpush1.bf16.msra.mxu0 0
      %501 = vmatprep.subr.bf16.mxu0 0
      %502 = vmatpush1.bf16.msra.mxu0 0
      %503 = vmatprep.subr.bf16.mxu0 0
      %504 = vmatpush1.bf16.msra.mxu0 0
      %505 = vmatprep.subr.bf16.mxu0 0
      %506 = vmatpush1.bf16.msra.mxu0 0
      %507 = vmatprep.subr.bf16.mxu0 0
      %508 = vmatpush1.bf16.msra.mxu0 0
      %509 = vmatprep.subr.bf16.mxu0 0
      %510 = vmatpush1.bf16.msra.mxu0 0
      %511 = vmatprep.subr.bf16.mxu0 0
      %512 = vmatpush1.bf16.msra.mxu0 0
      %513 = vmatprep.subr.bf16.mxu0 0
      %514 = vmatpush1.bf16.msra.mxu0 0
      %515 = vmatprep.subr.bf16.mxu0 0
      %516 = vmatpush1.bf16.msra.mxu0 0
      %517 = vmatprep.mubr.bf16.mxu0 0
      %518 = vmatmul.mubr.bf16.gmra.mrb[0].mxu0 %v474
      %v519 = vpop.f32.mrb[0].mxu0
      %v520 = vadd.f32 %v383, %v519
      %v521 = vpop.f32.mrb[0].mxu0
      %v522 = vpop.f32.mrb[0].mxu0
      %v523 = vadd.f32 %v383, %v522
      %v524 = vpop.f32.mrb[0].mxu0
      %525 = vmatprep.mubr.bf16.mxu0 0
      %526 = vmatmul.mubr.bf16.gmra.mrb[0].mxu0 %v477
      %v527 = vpop.f32.mrb[0].mxu0
      %v528 = vadd.f32 %v383, %v527
      %v529 = vpop.f32.mrb[0].mxu0
      %v530 = vpop.f32.mrb[0].mxu0
      %v531 = vadd.f32 %v383, %v530
      %v532 = vpop.f32.mrb[0].mxu0
      %533 = vmatprep.mubr.bf16.mxu0 0
      %534 = vmatmul.mubr.bf16.gmra.mrb[0].mxu0 %v480
      %v535 = vpop.f32.mrb[0].mxu0
      %v536 = vadd.f32 %v383, %v535
      %v537 = vpop.f32.mrb[0].mxu0
      %v538 = vpop.f32.mrb[0].mxu0
      %v539 = vadd.f32 %v383, %v538
      %v540 = vpop.f32.mrb[0].mxu0
      %541 = vmatprep.mubr.bf16.mxu0 0
      %542 = vmatmul.mubr.bf16.gmra.mrb[0].mxu0 %v483
      %v543 = vpop.f32.mrb[0].mxu0
      %v544 = vadd.f32 %v383, %v543
      %v545 = vpop.f32.mrb[0].mxu0
      %v546 = vpop.f32.mrb[0].mxu0
      %v547 = vadd.f32 %v383, %v546
      %v548 = vpop.f32.mrb[0].mxu0
      %549 = vdwg.mxu0
      %v550 = vpack.c.bf16 %v365, %v364
      %v551 = vpack.c.bf16 %v367, %v366
      %v552 = vpack.c.bf16 %v369, %v368
      %v553 = vpack.c.bf16 %v371, %v370
      %v555 = vsel %vm391, %v550, 0
      %v558 = vsel %vm391, %v551, 0
      %v561 = vsel %vm391, %v552, 0
      %v564 = vsel %vm391, %v553, 0
      %566 = vmatprep.subr.bf16.mxu0 0
      %567 = vmatpush1.bf16.msra.mxu0 %v389
      %568 = vmatprep.subr.bf16.mxu0 0
      %569 = vmatpush1.bf16.msra.mxu0 0
      %570 = vmatprep.subr.bf16.mxu0 0
      %571 = vmatpush1.bf16.msra.mxu0 0
      %572 = vmatprep.subr.bf16.mxu0 0
      %573 = vmatpush1.bf16.msra.mxu0 0
      %574 = vmatprep.subr.bf16.mxu0 0
      %575 = vmatpush1.bf16.msra.mxu0 0
      %576 = vmatprep.subr.bf16.mxu0 0
      %577 = vmatpush1.bf16.msra.mxu0 0
      %578 = vmatprep.subr.bf16.mxu0 0
      %579 = vmatpush1.bf16.msra.mxu0 0
      %580 = vmatprep.subr.bf16.mxu0 0
      %581 = vmatpush1.bf16.msra.mxu0 0
      %582 = vmatprep.subr.bf16.mxu0 0
      %583 = vmatpush1.bf16.msra.mxu0 0
      %584 = vmatprep.subr.bf16.mxu0 0
      %585 = vmatpush1.bf16.msra.mxu0 0
      %586 = vmatprep.subr.bf16.mxu0 0
      %587 = vmatpush1.bf16.msra.mxu0 0
      %588 = vmatprep.subr.bf16.mxu0 0
      %589 = vmatpush1.bf16.msra.mxu0 0
      %590 = vmatprep.subr.bf16.mxu0 0
      %591 = vmatpush1.bf16.msra.mxu0 0
      %592 = vmatprep.subr.bf16.mxu0 0
      %593 = vmatpush1.bf16.msra.mxu0 0
      %594 = vmatprep.subr.bf16.mxu0 0
      %595 = vmatpush1.bf16.msra.mxu0 0
      %596 = vmatprep.subr.bf16.mxu0 0
      %597 = vmatpush1.bf16.msra.mxu0 0
      %598 = vmatprep.mubr.bf16.mxu0 0
      %599 = vmatmul.mubr.bf16.gmra.mrb[0].mxu0 %v555
      %v600 = vpop.f32.mrb[0].mxu0
      %v601 = vadd.f32 %v383, %v600
      %v602 = vpop.f32.mrb[0].mxu0
      %v603 = vpop.f32.mrb[0].mxu0
      %v604 = vadd.f32 %v383, %v603
      %v605 = vpop.f32.mrb[0].mxu0
      %606 = vmatprep.mubr.bf16.mxu0 0
      %607 = vmatmul.mubr.bf16.gmra.mrb[0].mxu0 %v558
      %v608 = vpop.f32.mrb[0].mxu0
      %v609 = vadd.f32 %v383, %v608
      %v610 = vpop.f32.mrb[0].mxu0
      %v611 = vpop.f32.mrb[0].mxu0
      %v612 = vadd.f32 %v383, %v611
      %v613 = vpop.f32.mrb[0].mxu0
      %614 = vmatprep.mubr.bf16.mxu0 0
      %615 = vmatmul.mubr.bf16.gmra.mrb[0].mxu0 %v561
      %v616 = vpop.f32.mrb[0].mxu0
      %v617 = vadd.f32 %v383, %v616
      %v618 = vpop.f32.mrb[0].mxu0
      %v619 = vpop.f32.mrb[0].mxu0
      %v620 = vadd.f32 %v383, %v619
      %v621 = vpop.f32.mrb[0].mxu0
      %622 = vmatprep.mubr.bf16.mxu0 0
      %623 = vmatmul.mubr.bf16.gmra.mrb[0].mxu0 %v564
      %v624 = vpop.f32.mrb[0].mxu0
      %v625 = vadd.f32 %v383, %v624
      %v626 = vpop.f32.mrb[0].mxu0
      %v627 = vpop.f32.mrb[0].mxu0
      %v628 = vadd.f32 %v383, %v627
      %v629 = vpop.f32.mrb[0].mxu0
      %630 = vdwg.mxu0
      %v631 = vpack.c.bf16 %v442, %v439
      %v632 = vpack.c.bf16 %v450, %v447
      %v633 = vpack.c.bf16 %v458, %v455
      %v634 = vpack.c.bf16 %v466, %v463
      %v635 = vpack.c.bf16 %v523, %v520
      %v636 = vpack.c.bf16 %v531, %v528
      %v637 = vpack.c.bf16 %v539, %v536
      %v638 = vpack.c.bf16 %v547, %v544
      %v639 = vpack.c.bf16 %v604, %v601
      %v640 = vpack.c.bf16 %v612, %v609
      %v641 = vpack.c.bf16 %v620, %v617
      %v642 = vpack.c.bf16 %v628, %v625
      %647 = vrot.lane.b32.xlu0 %v631, 126
      %v648 = vpop.permute.xlu0 %647
      %649 = vrot.lane.b32.xlu0 %v632, 126
      %v650 = vpop.permute.xlu0 %649
      %651 = vrot.lane.b32.xlu0 %v633, 126
      %v652 = vpop.permute.xlu0 %651
      %653 = vrot.lane.b32.xlu0 %v634, 126
      %v654 = vpop.permute.xlu0 %653
      %vm655 = vcmask 15360
      %v657 = vsel %vm655, %v631, 0
      %v660 = vsel %vm655, %v632, 0
      %v663 = vsel %vm655, %v633, 0
      %v666 = vsel %vm655, %v634, 0
      %v669 = vsel %vm655, %v648, 0
      %v672 = vsel %vm655, %v650, 0
      %v675 = vsel %vm655, %v652, 0
      %v678 = vsel %vm655, %v654, 0
      %680 = vmatprep.subr.bf16.mxu0 0
      %681 = vmatpush1.bf16.xpose.msra.mxu0 %v669
      %682 = vmatprep.subr.bf16.mxu0 0
      %683 = vmatpush1.bf16.xpose.msra.mxu0 %v672
      %684 = vmatprep.subr.bf16.mxu0 0
      %685 = vmatpush1.bf16.xpose.msra.mxu0 %v675
      %686 = vmatprep.subr.bf16.mxu0 0
      %687 = vmatpush1.bf16.xpose.msra.mxu0 %v678
      %688 = vmatprep.subr.bf16.mxu0 0
      %689 = vmatpush1.bf16.xpose.msra.mxu0 0
      %690 = vmatprep.subr.bf16.mxu0 0
      %691 = vmatpush1.bf16.xpose.msra.mxu0 0
      %692 = vmatprep.subr.bf16.mxu0 0
      %693 = vmatpush1.bf16.xpose.msra.mxu0 0
      %694 = vmatprep.subr.bf16.mxu0 0
      %695 = vmatpush1.bf16.xpose.msra.mxu0 0
      %696 = vmatprep.subr.bf16.mxu0 0
      %697 = vmatpush1.bf16.xpose.msra.mxu0 0
      %698 = vmatprep.subr.bf16.mxu0 0
      %699 = vmatpush1.bf16.xpose.msra.mxu0 0
      %700 = vmatprep.subr.bf16.mxu0 0
      %701 = vmatpush1.bf16.xpose.msra.mxu0 0
      %702 = vmatprep.subr.bf16.mxu0 0
      %703 = vmatpush1.bf16.xpose.msra.mxu0 0
      %704 = vmatprep.subr.bf16.mxu0 0
      %705 = vmatpush1.bf16.xpose.msra.mxu0 0
      %706 = vmatprep.subr.bf16.mxu0 0
      %707 = vmatpush1.bf16.xpose.msra.mxu0 0
      %708 = vmatprep.subr.bf16.mxu0 0
      %709 = vmatpush1.bf16.xpose.msra.mxu0 0
      %710 = vmatprep.subr.bf16.mxu0 0
      %711 = vmatpush1.bf16.xpose.msra.mxu0 0
      %712 = vmatprep.mubr.bf16.mxu0 0
      %713 = vmatmul.mubr.bf16.gmra.mrb[0].mxu0 %v657
      %v714 = vpop.f32.mrb[0].mxu0
      %v715 = vadd.f32 0.0, %v714
      %v716 = vpop.f32.mrb[0].mxu0
      %v717 = vpop.f32.mrb[0].mxu0
      %v718 = vadd.f32 0.0, %v717
      %v719 = vpop.f32.mrb[0].mxu0
      %720 = vmatprep.mubr.bf16.mxu0 0
      %721 = vmatmul.mubr.bf16.gmra.mrb[0].mxu0 %v660
      %v722 = vpop.f32.mrb[0].mxu0
      %v723 = vadd.f32 0.0, %v722
      %v724 = vpop.f32.mrb[0].mxu0
      %v725 = vpop.f32.mrb[0].mxu0
      %v726 = vadd.f32 0.0, %v725
      %v727 = vpop.f32.mrb[0].mxu0
      %728 = vmatprep.mubr.bf16.mxu0 0
      %729 = vmatmul.mubr.bf16.gmra.mrb[0].mxu0 %v663
      %v730 = vpop.f32.mrb[0].mxu0
      %v731 = vadd.f32 0.0, %v730
      %v732 = vpop.f32.mrb[0].mxu0
      %v733 = vpop.f32.mrb[0].mxu0
      %v734 = vadd.f32 0.0, %v733
      %v735 = vpop.f32.mrb[0].mxu0
      %736 = vmatprep.mubr.bf16.mxu0 0
      %737 = vmatmul.mubr.bf16.gmra.mrb[0].mxu0 %v666
      %v738 = vpop.f32.mrb[0].mxu0
      %v739 = vadd.f32 0.0, %v738
      %v740 = vpop.f32.mrb[0].mxu0
      %v741 = vpop.f32.mrb[0].mxu0
      %v742 = vadd.f32 0.0, %v741
      %v743 = vpop.f32.mrb[0].mxu0
      %744 = vdwg.mxu0
      %vm745 = vcmask 64512
      %v746 = vsel %vm745, %v715, -inf
      %747 = vmax.xlane.f32.xlu0 %v746
      %v748 = vpop.xlane.xlu0 %747
      %v749 = vsel %vm745, %v718, -inf
      %750 = vmax.xlane.f32.xlu0 %v749
      %v751 = vpop.xlane.xlu0 %750
      %v752 = vsel %vm745, %v723, -inf
      %753 = vmax.xlane.f32.xlu0 %v752
      %v754 = vpop.xlane.xlu0 %753
      %v755 = vsel %vm745, %v726, -inf
      %756 = vmax.xlane.f32.xlu0 %v755
      %v757 = vpop.xlane.xlu0 %756
      %v758 = vsel %vm745, %v731, -inf
      %759 = vmax.xlane.f32.xlu0 %v758
      %v760 = vpop.xlane.xlu0 %759
      %v761 = vsel %vm745, %v734, -inf
      %762 = vmax.xlane.f32.xlu0 %v761
      %v763 = vpop.xlane.xlu0 %762
      %v764 = vsel %vm745, %v739, -inf
      %765 = vmax.xlane.f32.xlu0 %v764
      %v766 = vpop.xlane.xlu0 %765
      %v767 = vsel %vm745, %v742, -inf
      %768 = vmax.xlane.f32.xlu0 %v767
      %v769 = vpop.xlane.xlu0 %768
      %v770 = vsub.f32 %v715, %v748
      %v771 = vsub.f32 %v718, %v751
      %v772 = vsub.f32 %v723, %v754
      %v773 = vsub.f32 %v726, %v757
      %v774 = vsub.f32 %v731, %v760
      %v775 = vsub.f32 %v734, %v763
      %v776 = vsub.f32 %v739, %v766
      %v777 = vsub.f32 %v742, %v769
      %v778 = vmul.f32 %v770, 1.442695
      %v779 = vpow.pop %v778
      %v780 = vmul.f32 %v771, 1.442695
      %v781 = vpow.pop %v780
      %v782 = vmul.f32 %v772, 1.442695
      %v783 = vpow.pop %v782
      %v784 = vmul.f32 %v773, 1.442695
      %v785 = vpow.pop %v784
      %v786 = vmul.f32 %v774, 1.442695
      %v787 = vpow.pop %v786
      %v788 = vmul.f32 %v775, 1.442695
      %v789 = vpow.pop %v788
      %v790 = vmul.f32 %v776, 1.442695
      %v791 = vpow.pop %v790
      %v792 = vmul.f32 %v777, 1.442695
      %v793 = vpow.pop %v792
      %v794 = vsel %vm745, %v779, 0.0
      %795 = vadd.xlane.f32.xlu0 %v794
      %v796 = vpop.xlane.xlu0 %795
      %v797 = vsel %vm745, %v781, 0.0
      %798 = vadd.xlane.f32.xlu0 %v797
      %v799 = vpop.xlane.xlu0 %798
      %v800 = vsel %vm745, %v783, 0.0
      %801 = vadd.xlane.f32.xlu0 %v800
      %v802 = vpop.xlane.xlu0 %801
      %v803 = vsel %vm745, %v785, 0.0
      %804 = vadd.xlane.f32.xlu0 %v803
      %v805 = vpop.xlane.xlu0 %804
      %v806 = vsel %vm745, %v787, 0.0
      %807 = vadd.xlane.f32.xlu0 %v806
      %v808 = vpop.xlane.xlu0 %807
      %v809 = vsel %vm745, %v789, 0.0
      %810 = vadd.xlane.f32.xlu0 %v809
      %v811 = vpop.xlane.xlu0 %810
      %v812 = vsel %vm745, %v791, 0.0
      %813 = vadd.xlane.f32.xlu0 %v812
      %v814 = vpop.xlane.xlu0 %813
      %v815 = vsel %vm745, %v793, 0.0
      %816 = vadd.xlane.f32.xlu0 %v815
      %v817 = vpop.xlane.xlu0 %816
      %v818 = vrcp.pop %v796
      %v819 = vrcp.pop %v799
      %v820 = vrcp.pop %v802
      %v821 = vrcp.pop %v805
      %v822 = vrcp.pop %v808
      %v823 = vrcp.pop %v811
      %v824 = vrcp.pop %v814
      %v825 = vrcp.pop %v817
      %v826 = vmul.f32 %v779, %v818
      %v827 = vmul.f32 %v781, %v819
      %v828 = vmul.f32 %v783, %v820
      %v829 = vmul.f32 %v785, %v821
      %v830 = vmul.f32 %v787, %v822
      %v831 = vmul.f32 %v789, %v823
      %v832 = vmul.f32 %v791, %v824
      %v833 = vmul.f32 %v793, %v825
      %vm834 = vcmask 130112
      %v835 = vsel %vm834, %v715, -inf
      %836 = vmax.xlane.f32.xlu0 %v835
      %v837 = vpop.xlane.xlu0 %836
      %v838 = vsel %vm834, %v718, -inf
      %839 = vmax.xlane.f32.xlu0 %v838
      %v840 = vpop.xlane.xlu0 %839
      %v841 = vsel %vm834, %v723, -inf
      %842 = vmax.xlane.f32.xlu0 %v841
      %v843 = vpop.xlane.xlu0 %842
      %v844 = vsel %vm834, %v726, -inf
      %845 = vmax.xlane.f32.xlu0 %v844
      %v846 = vpop.xlane.xlu0 %845
      %v847 = vsel %vm834, %v731, -inf
      %848 = vmax.xlane.f32.xlu0 %v847
      %v849 = vpop.xlane.xlu0 %848
      %v850 = vsel %vm834, %v734, -inf
      %851 = vmax.xlane.f32.xlu0 %v850
      %v852 = vpop.xlane.xlu0 %851
      %v853 = vsel %vm834, %v739, -inf
      %854 = vmax.xlane.f32.xlu0 %v853
      %v855 = vpop.xlane.xlu0 %854
      %v856 = vsel %vm834, %v742, -inf
      %857 = vmax.xlane.f32.xlu0 %v856
      %v858 = vpop.xlane.xlu0 %857
      %v859 = vsub.f32 %v715, %v837
      %v860 = vsub.f32 %v718, %v840
      %v861 = vsub.f32 %v723, %v843
      %v862 = vsub.f32 %v726, %v846
      %v863 = vsub.f32 %v731, %v849
      %v864 = vsub.f32 %v734, %v852
      %v865 = vsub.f32 %v739, %v855
      %v866 = vsub.f32 %v742, %v858
      %v867 = vmul.f32 %v859, 1.442695
      %v868 = vpow.pop %v867
      %v869 = vmul.f32 %v860, 1.442695
      %v870 = vpow.pop %v869
      %v871 = vmul.f32 %v861, 1.442695
      %v872 = vpow.pop %v871
      %v873 = vmul.f32 %v862, 1.442695
      %v874 = vpow.pop %v873
      %v875 = vmul.f32 %v863, 1.442695
      %v876 = vpow.pop %v875
      %v877 = vmul.f32 %v864, 1.442695
      %v878 = vpow.pop %v877
      %v879 = vmul.f32 %v865, 1.442695
      %v880 = vpow.pop %v879
      %v881 = vmul.f32 %v866, 1.442695
      %v882 = vpow.pop %v881
      %891 = vrot.lane.b32.xlu0 %v868, 120
      %v892 = vpop.permute.xlu0 %891
      %893 = vrot.lane.b32.xlu0 %v870, 120
      %v894 = vpop.permute.xlu0 %893
      %895 = vrot.lane.b32.xlu0 %v872, 120
      %v896 = vpop.permute.xlu0 %895
      %897 = vrot.lane.b32.xlu0 %v874, 120
      %v898 = vpop.permute.xlu0 %897
      %899 = vrot.lane.b32.xlu0 %v876, 120
      %v900 = vpop.permute.xlu0 %899
      %901 = vrot.lane.b32.xlu0 %v878, 120
      %v902 = vpop.permute.xlu0 %901
      %903 = vrot.lane.b32.xlu0 %v880, 120
      %v904 = vpop.permute.xlu0 %903
      %905 = vrot.lane.b32.xlu0 %v882, 120
      %v906 = vpop.permute.xlu0 %905
      %v915 = vsel %vm745, %v892, 0.0
      %916 = vadd.xlane.f32.xlu0 %v915
      %v917 = vpop.xlane.xlu0 %916
      %v918 = vsel %vm745, %v894, 0.0
      %919 = vadd.xlane.f32.xlu0 %v918
      %v920 = vpop.xlane.xlu0 %919
      %v921 = vsel %vm745, %v896, 0.0
      %922 = vadd.xlane.f32.xlu0 %v921
      %v923 = vpop.xlane.xlu0 %922
      %v924 = vsel %vm745, %v898, 0.0
      %925 = vadd.xlane.f32.xlu0 %v924
      %v926 = vpop.xlane.xlu0 %925
      %v927 = vsel %vm745, %v900, 0.0
      %928 = vadd.xlane.f32.xlu0 %v927
      %v929 = vpop.xlane.xlu0 %928
      %v930 = vsel %vm745, %v902, 0.0
      %931 = vadd.xlane.f32.xlu0 %v930
      %v932 = vpop.xlane.xlu0 %931
      %v933 = vsel %vm745, %v904, 0.0
      %934 = vadd.xlane.f32.xlu0 %v933
      %v935 = vpop.xlane.xlu0 %934
      %v936 = vsel %vm745, %v906, 0.0
      %937 = vadd.xlane.f32.xlu0 %v936
      %v938 = vpop.xlane.xlu0 %937
      %v939 = vrcp.pop %v917
      %v940 = vrcp.pop %v920
      %v941 = vrcp.pop %v923
      %v942 = vrcp.pop %v926
      %v943 = vrcp.pop %v929
      %v944 = vrcp.pop %v932
      %v945 = vrcp.pop %v935
      %v946 = vrcp.pop %v938
      %v947 = vmul.f32 %v868, %v939
      %v948 = vmul.f32 %v870, %v940
      %v949 = vmul.f32 %v872, %v941
      %v950 = vmul.f32 %v874, %v942
      %v951 = vmul.f32 %v876, %v943
      %v952 = vmul.f32 %v878, %v944
      %v953 = vmul.f32 %v880, %v945
      %v954 = vmul.f32 %v882, %v946
      %vm955 = vcmask 195712
      %v956 = vsel %vm955, %v715, -inf
      %957 = vmax.xlane.f32.xlu0 %v956
      %v958 = vpop.xlane.xlu0 %957
      %v959 = vsel %vm955, %v718, -inf
      %960 = vmax.xlane.f32.xlu0 %v959
      %v961 = vpop.xlane.xlu0 %960
      %v962 = vsel %vm955, %v723, -inf
      %963 = vmax.xlane.f32.xlu0 %v962
      %v964 = vpop.xlane.xlu0 %963
      %v965 = vsel %vm955, %v726, -inf
      %966 = vmax.xlane.f32.xlu0 %v965
      %v967 = vpop.xlane.xlu0 %966
      %v968 = vsel %vm955, %v731, -inf
      %969 = vmax.xlane.f32.xlu0 %v968
      %v970 = vpop.xlane.xlu0 %969
      %v971 = vsel %vm955, %v734, -inf
      %972 = vmax.xlane.f32.xlu0 %v971
      %v973 = vpop.xlane.xlu0 %972
      %v974 = vsel %vm955, %v739, -inf
      %975 = vmax.xlane.f32.xlu0 %v974
      %v976 = vpop.xlane.xlu0 %975
      %v977 = vsel %vm955, %v742, -inf
      %978 = vmax.xlane.f32.xlu0 %v977
      %v979 = vpop.xlane.xlu0 %978
      %v980 = vsub.f32 %v715, %v958
      %v981 = vsub.f32 %v718, %v961
      %v982 = vsub.f32 %v723, %v964
      %v983 = vsub.f32 %v726, %v967
      %v984 = vsub.f32 %v731, %v970
      %v985 = vsub.f32 %v734, %v973
      %v986 = vsub.f32 %v739, %v976
      %v987 = vsub.f32 %v742, %v979
      %v988 = vmul.f32 %v980, 1.442695
      %v989 = vpow.pop %v988
      %v990 = vmul.f32 %v981, 1.442695
      %v991 = vpow.pop %v990
      %v992 = vmul.f32 %v982, 1.442695
      %v993 = vpow.pop %v992
      %v994 = vmul.f32 %v983, 1.442695
      %v995 = vpow.pop %v994
      %v996 = vmul.f32 %v984, 1.442695
      %v997 = vpow.pop %v996
      %v998 = vmul.f32 %v985, 1.442695
      %v999 = vpow.pop %v998
      %v1000 = vmul.f32 %v986, 1.442695
      %v1001 = vpow.pop %v1000
      %v1002 = vmul.f32 %v987, 1.442695
      %v1003 = vpow.pop %v1002
      %1012 = vrot.lane.b32.xlu0 %v989, 112
      %v1013 = vpop.permute.xlu0 %1012
      %1014 = vrot.lane.b32.xlu0 %v991, 112
      %v1015 = vpop.permute.xlu0 %1014
      %1016 = vrot.lane.b32.xlu0 %v993, 112
      %v1017 = vpop.permute.xlu0 %1016
      %1018 = vrot.lane.b32.xlu0 %v995, 112
      %v1019 = vpop.permute.xlu0 %1018
      %1020 = vrot.lane.b32.xlu0 %v997, 112
      %v1021 = vpop.permute.xlu0 %1020
      %1022 = vrot.lane.b32.xlu0 %v999, 112
      %v1023 = vpop.permute.xlu0 %1022
      %1024 = vrot.lane.b32.xlu0 %v1001, 112
      %v1025 = vpop.permute.xlu0 %1024
      %1026 = vrot.lane.b32.xlu0 %v1003, 112
      %v1027 = vpop.permute.xlu0 %1026
      %v1036 = vsel %vm745, %v1013, 0.0
      %1037 = vadd.xlane.f32.xlu0 %v1036
      %v1038 = vpop.xlane.xlu0 %1037
      %v1039 = vsel %vm745, %v1015, 0.0
      %1040 = vadd.xlane.f32.xlu0 %v1039
      %v1041 = vpop.xlane.xlu0 %1040
      %v1042 = vsel %vm745, %v1017, 0.0
      %1043 = vadd.xlane.f32.xlu0 %v1042
      %v1044 = vpop.xlane.xlu0 %1043
      %v1045 = vsel %vm745, %v1019, 0.0
      %1046 = vadd.xlane.f32.xlu0 %v1045
      %v1047 = vpop.xlane.xlu0 %1046
      %v1048 = vsel %vm745, %v1021, 0.0
      %1049 = vadd.xlane.f32.xlu0 %v1048
      %v1050 = vpop.xlane.xlu0 %1049
      %v1051 = vsel %vm745, %v1023, 0.0
      %1052 = vadd.xlane.f32.xlu0 %v1051
      %v1053 = vpop.xlane.xlu0 %1052
      %v1054 = vsel %vm745, %v1025, 0.0
      %1055 = vadd.xlane.f32.xlu0 %v1054
      %v1056 = vpop.xlane.xlu0 %1055
      %v1057 = vsel %vm745, %v1027, 0.0
      %1058 = vadd.xlane.f32.xlu0 %v1057
      %v1059 = vpop.xlane.xlu0 %1058
      %v1060 = vrcp.pop %v1038
      %v1061 = vrcp.pop %v1041
      %v1062 = vrcp.pop %v1044
      %v1063 = vrcp.pop %v1047
      %v1064 = vrcp.pop %v1050
      %v1065 = vrcp.pop %v1053
      %v1066 = vrcp.pop %v1056
      %v1067 = vrcp.pop %v1059
      %v1068 = vmul.f32 %v989, %v1060
      %v1069 = vmul.f32 %v991, %v1061
      %v1070 = vmul.f32 %v993, %v1062
      %v1071 = vmul.f32 %v995, %v1063
      %v1072 = vmul.f32 %v997, %v1064
      %v1073 = vmul.f32 %v999, %v1065
      %v1074 = vmul.f32 %v1001, %v1066
      %v1075 = vmul.f32 %v1003, %v1067
      %vm1076 = vcmask 261312
      %v1077 = vsel %vm1076, %v715, -inf
      %1078 = vmax.xlane.f32.xlu0 %v1077
      %v1079 = vpop.xlane.xlu0 %1078
      %v1080 = vsel %vm1076, %v718, -inf
      %1081 = vmax.xlane.f32.xlu0 %v1080
      %v1082 = vpop.xlane.xlu0 %1081
      %v1083 = vsel %vm1076, %v723, -inf
      %1084 = vmax.xlane.f32.xlu0 %v1083
      %v1085 = vpop.xlane.xlu0 %1084
      %v1086 = vsel %vm1076, %v726, -inf
      %1087 = vmax.xlane.f32.xlu0 %v1086
      %v1088 = vpop.xlane.xlu0 %1087
      %v1089 = vsel %vm1076, %v731, -inf
      %1090 = vmax.xlane.f32.xlu0 %v1089
      %v1091 = vpop.xlane.xlu0 %1090
      %v1092 = vsel %vm1076, %v734, -inf
      %1093 = vmax.xlane.f32.xlu0 %v1092
      %v1094 = vpop.xlane.xlu0 %1093
      %v1095 = vsel %vm1076, %v739, -inf
      %1096 = vmax.xlane.f32.xlu0 %v1095
      %v1097 = vpop.xlane.xlu0 %1096
      %v1098 = vsel %vm1076, %v742, -inf
      %1099 = vmax.xlane.f32.xlu0 %v1098
      %v1100 = vpop.xlane.xlu0 %1099
      %v1101 = vsub.f32 %v715, %v1079
      %v1102 = vsub.f32 %v718, %v1082
      %v1103 = vsub.f32 %v723, %v1085
      %v1104 = vsub.f32 %v726, %v1088
      %v1105 = vsub.f32 %v731, %v1091
      %v1106 = vsub.f32 %v734, %v1094
      %v1107 = vsub.f32 %v739, %v1097
      %v1108 = vsub.f32 %v742, %v1100
      %v1109 = vmul.f32 %v1101, 1.442695
      %v1110 = vpow.pop %v1109
      %v1111 = vmul.f32 %v1102, 1.442695
      %v1112 = vpow.pop %v1111
      %v1113 = vmul.f32 %v1103, 1.442695
      %v1114 = vpow.pop %v1113
      %v1115 = vmul.f32 %v1104, 1.442695
      %v1116 = vpow.pop %v1115
      %v1117 = vmul.f32 %v1105, 1.442695
      %v1118 = vpow.pop %v1117
      %v1119 = vmul.f32 %v1106, 1.442695
      %v1120 = vpow.pop %v1119
      %v1121 = vmul.f32 %v1107, 1.442695
      %v1122 = vpow.pop %v1121
      %v1123 = vmul.f32 %v1108, 1.442695
      %v1124 = vpow.pop %v1123
      %1133 = vrot.lane.b32.xlu0 %v1110, 104
      %v1134 = vpop.permute.xlu0 %1133
      %1135 = vrot.lane.b32.xlu0 %v1112, 104
      %v1136 = vpop.permute.xlu0 %1135
      %1137 = vrot.lane.b32.xlu0 %v1114, 104
      %v1138 = vpop.permute.xlu0 %1137
      %1139 = vrot.lane.b32.xlu0 %v1116, 104
      %v1140 = vpop.permute.xlu0 %1139
      %1141 = vrot.lane.b32.xlu0 %v1118, 104
      %v1142 = vpop.permute.xlu0 %1141
      %1143 = vrot.lane.b32.xlu0 %v1120, 104
      %v1144 = vpop.permute.xlu0 %1143
      %1145 = vrot.lane.b32.xlu0 %v1122, 104
      %v1146 = vpop.permute.xlu0 %1145
      %1147 = vrot.lane.b32.xlu0 %v1124, 104
      %v1148 = vpop.permute.xlu0 %1147
      %v1157 = vsel %vm745, %v1134, 0.0
      %1158 = vadd.xlane.f32.xlu0 %v1157
      %v1159 = vpop.xlane.xlu0 %1158
      %v1160 = vsel %vm745, %v1136, 0.0
      %1161 = vadd.xlane.f32.xlu0 %v1160
      %v1162 = vpop.xlane.xlu0 %1161
      %v1163 = vsel %vm745, %v1138, 0.0
      %1164 = vadd.xlane.f32.xlu0 %v1163
      %v1165 = vpop.xlane.xlu0 %1164
      %v1166 = vsel %vm745, %v1140, 0.0
      %1167 = vadd.xlane.f32.xlu0 %v1166
      %v1168 = vpop.xlane.xlu0 %1167
      %v1169 = vsel %vm745, %v1142, 0.0
      %1170 = vadd.xlane.f32.xlu0 %v1169
      %v1171 = vpop.xlane.xlu0 %1170
      %v1172 = vsel %vm745, %v1144, 0.0
      %1173 = vadd.xlane.f32.xlu0 %v1172
      %v1174 = vpop.xlane.xlu0 %1173
      %v1175 = vsel %vm745, %v1146, 0.0
      %1176 = vadd.xlane.f32.xlu0 %v1175
      %v1177 = vpop.xlane.xlu0 %1176
      %v1178 = vsel %vm745, %v1148, 0.0
      %1179 = vadd.xlane.f32.xlu0 %v1178
      %v1180 = vpop.xlane.xlu0 %1179
      %v1181 = vrcp.pop %v1159
      %v1182 = vrcp.pop %v1162
      %v1183 = vrcp.pop %v1165
      %v1184 = vrcp.pop %v1168
      %v1185 = vrcp.pop %v1171
      %v1186 = vrcp.pop %v1174
      %v1187 = vrcp.pop %v1177
      %v1188 = vrcp.pop %v1180
      %v1189 = vmul.f32 %v1110, %v1181
      %v1190 = vmul.f32 %v1112, %v1182
      %v1191 = vmul.f32 %v1114, %v1183
      %v1192 = vmul.f32 %v1116, %v1184
      %v1193 = vmul.f32 %v1118, %v1185
      %v1194 = vmul.f32 %v1120, %v1186
      %v1195 = vmul.f32 %v1122, %v1187
      %v1196 = vmul.f32 %v1124, %v1188
      %vm1197 = vcmask 326912
      %v1198 = vsel %vm1197, %v715, -inf
      %1199 = vmax.xlane.f32.xlu0 %v1198
      %v1200 = vpop.xlane.xlu0 %1199
      %v1201 = vsel %vm1197, %v718, -inf
      %1202 = vmax.xlane.f32.xlu0 %v1201
      %v1203 = vpop.xlane.xlu0 %1202
      %v1204 = vsel %vm1197, %v723, -inf
      %1205 = vmax.xlane.f32.xlu0 %v1204
      %v1206 = vpop.xlane.xlu0 %1205
      %v1207 = vsel %vm1197, %v726, -inf
      %1208 = vmax.xlane.f32.xlu0 %v1207
      %v1209 = vpop.xlane.xlu0 %1208
      %v1210 = vsel %vm1197, %v731, -inf
      %1211 = vmax.xlane.f32.xlu0 %v1210
      %v1212 = vpop.xlane.xlu0 %1211
      %v1213 = vsel %vm1197, %v734, -inf
      %1214 = vmax.xlane.f32.xlu0 %v1213
      %v1215 = vpop.xlane.xlu0 %1214
      %v1216 = vsel %vm1197, %v739, -inf
      %1217 = vmax.xlane.f32.xlu0 %v1216
      %v1218 = vpop.xlane.xlu0 %1217
      %v1219 = vsel %vm1197, %v742, -inf
      %1220 = vmax.xlane.f32.xlu0 %v1219
      %v1221 = vpop.xlane.xlu0 %1220
      %v1222 = vsub.f32 %v715, %v1200
      %v1223 = vsub.f32 %v718, %v1203
      %v1224 = vsub.f32 %v723, %v1206
      %v1225 = vsub.f32 %v726, %v1209
      %v1226 = vsub.f32 %v731, %v1212
      %v1227 = vsub.f32 %v734, %v1215
      %v1228 = vsub.f32 %v739, %v1218
      %v1229 = vsub.f32 %v742, %v1221
      %v1230 = vmul.f32 %v1222, 1.442695
      %v1231 = vpow.pop %v1230
      %v1232 = vmul.f32 %v1223, 1.442695
      %v1233 = vpow.pop %v1232
      %v1234 = vmul.f32 %v1224, 1.442695
      %v1235 = vpow.pop %v1234
      %v1236 = vmul.f32 %v1225, 1.442695
      %v1237 = vpow.pop %v1236
      %v1238 = vmul.f32 %v1226, 1.442695
      %v1239 = vpow.pop %v1238
      %v1240 = vmul.f32 %v1227, 1.442695
      %v1241 = vpow.pop %v1240
      %v1242 = vmul.f32 %v1228, 1.442695
      %v1243 = vpow.pop %v1242
      %v1244 = vmul.f32 %v1229, 1.442695
      %v1245 = vpow.pop %v1244
      %1254 = vrot.lane.b32.xlu0 %v1231, 96
      %v1255 = vpop.permute.xlu0 %1254
      %1256 = vrot.lane.b32.xlu0 %v1233, 96
      %v1257 = vpop.permute.xlu0 %1256
      %1258 = vrot.lane.b32.xlu0 %v1235, 96
      %v1259 = vpop.permute.xlu0 %1258
      %1260 = vrot.lane.b32.xlu0 %v1237, 96
      %v1261 = vpop.permute.xlu0 %1260
      %1262 = vrot.lane.b32.xlu0 %v1239, 96
      %v1263 = vpop.permute.xlu0 %1262
      %1264 = vrot.lane.b32.xlu0 %v1241, 96
      %v1265 = vpop.permute.xlu0 %1264
      %1266 = vrot.lane.b32.xlu0 %v1243, 96
      %v1267 = vpop.permute.xlu0 %1266
      %1268 = vrot.lane.b32.xlu0 %v1245, 96
      %v1269 = vpop.permute.xlu0 %1268
      %v1278 = vsel %vm745, %v1255, 0.0
      %1279 = vadd.xlane.f32.xlu0 %v1278
      %v1280 = vpop.xlane.xlu0 %1279
      %v1281 = vsel %vm745, %v1257, 0.0
      %1282 = vadd.xlane.f32.xlu0 %v1281
      %v1283 = vpop.xlane.xlu0 %1282
      %v1284 = vsel %vm745, %v1259, 0.0
      %1285 = vadd.xlane.f32.xlu0 %v1284
      %v1286 = vpop.xlane.xlu0 %1285
      %v1287 = vsel %vm745, %v1261, 0.0
      %1288 = vadd.xlane.f32.xlu0 %v1287
      %v1289 = vpop.xlane.xlu0 %1288
      %v1290 = vsel %vm745, %v1263, 0.0
      %1291 = vadd.xlane.f32.xlu0 %v1290
      %v1292 = vpop.xlane.xlu0 %1291
      %v1293 = vsel %vm745, %v1265, 0.0
      %1294 = vadd.xlane.f32.xlu0 %v1293
      %v1295 = vpop.xlane.xlu0 %1294
      %v1296 = vsel %vm745, %v1267, 0.0
      %1297 = vadd.xlane.f32.xlu0 %v1296
      %v1298 = vpop.xlane.xlu0 %1297
      %v1299 = vsel %vm745, %v1269, 0.0
      %1300 = vadd.xlane.f32.xlu0 %v1299
      %v1301 = vpop.xlane.xlu0 %1300
      %v1302 = vrcp.pop %v1280
      %v1303 = vrcp.pop %v1283
      %v1304 = vrcp.pop %v1286
      %v1305 = vrcp.pop %v1289
      %v1306 = vrcp.pop %v1292
      %v1307 = vrcp.pop %v1295
      %v1308 = vrcp.pop %v1298
      %v1309 = vrcp.pop %v1301
      %v1310 = vmul.f32 %v1231, %v1302
      %v1311 = vmul.f32 %v1233, %v1303
      %v1312 = vmul.f32 %v1235, %v1304
      %v1313 = vmul.f32 %v1237, %v1305
      %v1314 = vmul.f32 %v1239, %v1306
      %v1315 = vmul.f32 %v1241, %v1307
      %v1316 = vmul.f32 %v1243, %v1308
      %v1317 = vmul.f32 %v1245, %v1309
      %vm1318 = vcmask 392512
      %v1319 = vsel %vm1318, %v715, -inf
      %1320 = vmax.xlane.f32.xlu0 %v1319
      %v1321 = vpop.xlane.xlu0 %1320
      %v1322 = vsel %vm1318, %v718, -inf
      %1323 = vmax.xlane.f32.xlu0 %v1322
      %v1324 = vpop.xlane.xlu0 %1323
      %v1325 = vsel %vm1318, %v723, -inf
      %1326 = vmax.xlane.f32.xlu0 %v1325
      %v1327 = vpop.xlane.xlu0 %1326
      %v1328 = vsel %vm1318, %v726, -inf
      %1329 = vmax.xlane.f32.xlu0 %v1328
      %v1330 = vpop.xlane.xlu0 %1329
      %v1331 = vsel %vm1318, %v731, -inf
      %1332 = vmax.xlane.f32.xlu0 %v1331
      %v1333 = vpop.xlane.xlu0 %1332
      %v1334 = vsel %vm1318, %v734, -inf
      %1335 = vmax.xlane.f32.xlu0 %v1334
      %v1336 = vpop.xlane.xlu0 %1335
      %v1337 = vsel %vm1318, %v739, -inf
      %1338 = vmax.xlane.f32.xlu0 %v1337
      %v1339 = vpop.xlane.xlu0 %1338
      %v1340 = vsel %vm1318, %v742, -inf
      %1341 = vmax.xlane.f32.xlu0 %v1340
      %v1342 = vpop.xlane.xlu0 %1341
      %v1343 = vsub.f32 %v715, %v1321
      %v1344 = vsub.f32 %v718, %v1324
      %v1345 = vsub.f32 %v723, %v1327
      %v1346 = vsub.f32 %v726, %v1330
      %v1347 = vsub.f32 %v731, %v1333
      %v1348 = vsub.f32 %v734, %v1336
      %v1349 = vsub.f32 %v739, %v1339
      %v1350 = vsub.f32 %v742, %v1342
      %v1351 = vmul.f32 %v1343, 1.442695
      %v1352 = vpow.pop %v1351
      %v1353 = vmul.f32 %v1344, 1.442695
      %v1354 = vpow.pop %v1353
      %v1355 = vmul.f32 %v1345, 1.442695
      %v1356 = vpow.pop %v1355
      %v1357 = vmul.f32 %v1346, 1.442695
      %v1358 = vpow.pop %v1357
      %v1359 = vmul.f32 %v1347, 1.442695
      %v1360 = vpow.pop %v1359
      %v1361 = vmul.f32 %v1348, 1.442695
      %v1362 = vpow.pop %v1361
      %v1363 = vmul.f32 %v1349, 1.442695
      %v1364 = vpow.pop %v1363
      %v1365 = vmul.f32 %v1350, 1.442695
      %v1366 = vpow.pop %v1365
      %1375 = vrot.lane.b32.xlu0 %v1352, 88
      %v1376 = vpop.permute.xlu0 %1375
      %1377 = vrot.lane.b32.xlu0 %v1354, 88
      %v1378 = vpop.permute.xlu0 %1377
      %1379 = vrot.lane.b32.xlu0 %v1356, 88
      %v1380 = vpop.permute.xlu0 %1379
      %1381 = vrot.lane.b32.xlu0 %v1358, 88
      %v1382 = vpop.permute.xlu0 %1381
      %1383 = vrot.lane.b32.xlu0 %v1360, 88
      %v1384 = vpop.permute.xlu0 %1383
      %1385 = vrot.lane.b32.xlu0 %v1362, 88
      %v1386 = vpop.permute.xlu0 %1385
      %1387 = vrot.lane.b32.xlu0 %v1364, 88
      %v1388 = vpop.permute.xlu0 %1387
      %1389 = vrot.lane.b32.xlu0 %v1366, 88
      %v1390 = vpop.permute.xlu0 %1389
      %v1399 = vsel %vm745, %v1376, 0.0
      %1400 = vadd.xlane.f32.xlu0 %v1399
      %v1401 = vpop.xlane.xlu0 %1400
      %v1402 = vsel %vm745, %v1378, 0.0
      %1403 = vadd.xlane.f32.xlu0 %v1402
      %v1404 = vpop.xlane.xlu0 %1403
      %v1405 = vsel %vm745, %v1380, 0.0
      %1406 = vadd.xlane.f32.xlu0 %v1405
      %v1407 = vpop.xlane.xlu0 %1406
      %v1408 = vsel %vm745, %v1382, 0.0
      %1409 = vadd.xlane.f32.xlu0 %v1408
      %v1410 = vpop.xlane.xlu0 %1409
      %v1411 = vsel %vm745, %v1384, 0.0
      %1412 = vadd.xlane.f32.xlu0 %v1411
      %v1413 = vpop.xlane.xlu0 %1412
      %v1414 = vsel %vm745, %v1386, 0.0
      %1415 = vadd.xlane.f32.xlu0 %v1414
      %v1416 = vpop.xlane.xlu0 %1415
      %v1417 = vsel %vm745, %v1388, 0.0
      %1418 = vadd.xlane.f32.xlu0 %v1417
      %v1419 = vpop.xlane.xlu0 %1418
      %v1420 = vsel %vm745, %v1390, 0.0
      %1421 = vadd.xlane.f32.xlu0 %v1420
      %v1422 = vpop.xlane.xlu0 %1421
      %v1423 = vrcp.pop %v1401
      %v1424 = vrcp.pop %v1404
      %v1425 = vrcp.pop %v1407
      %v1426 = vrcp.pop %v1410
      %v1427 = vrcp.pop %v1413
      %v1428 = vrcp.pop %v1416
      %v1429 = vrcp.pop %v1419
      %v1430 = vrcp.pop %v1422
      %v1431 = vmul.f32 %v1352, %v1423
      %v1432 = vmul.f32 %v1354, %v1424
      %v1433 = vmul.f32 %v1356, %v1425
      %v1434 = vmul.f32 %v1358, %v1426
      %v1435 = vmul.f32 %v1360, %v1427
      %v1436 = vmul.f32 %v1362, %v1428
      %v1437 = vmul.f32 %v1364, %v1429
      %v1438 = vmul.f32 %v1366, %v1430
      %vm1439 = vcmask 458112
      %v1440 = vsel %vm1439, %v715, -inf
      %1441 = vmax.xlane.f32.xlu0 %v1440
      %v1442 = vpop.xlane.xlu0 %1441
      %v1443 = vsel %vm1439, %v718, -inf
      %1444 = vmax.xlane.f32.xlu0 %v1443
      %v1445 = vpop.xlane.xlu0 %1444
      %v1446 = vsel %vm1439, %v723, -inf
      %1447 = vmax.xlane.f32.xlu0 %v1446
      %v1448 = vpop.xlane.xlu0 %1447
      %v1449 = vsel %vm1439, %v726, -inf
      %1450 = vmax.xlane.f32.xlu0 %v1449
      %v1451 = vpop.xlane.xlu0 %1450
      %v1452 = vsel %vm1439, %v731, -inf
      %1453 = vmax.xlane.f32.xlu0 %v1452
      %v1454 = vpop.xlane.xlu0 %1453
      %v1455 = vsel %vm1439, %v734, -inf
      %1456 = vmax.xlane.f32.xlu0 %v1455
      %v1457 = vpop.xlane.xlu0 %1456
      %v1458 = vsel %vm1439, %v739, -inf
      %1459 = vmax.xlane.f32.xlu0 %v1458
      %v1460 = vpop.xlane.xlu0 %1459
      %v1461 = vsel %vm1439, %v742, -inf
      %1462 = vmax.xlane.f32.xlu0 %v1461
      %v1463 = vpop.xlane.xlu0 %1462
      %v1464 = vsub.f32 %v715, %v1442
      %v1465 = vsub.f32 %v718, %v1445
      %v1466 = vsub.f32 %v723, %v1448
      %v1467 = vsub.f32 %v726, %v1451
      %v1468 = vsub.f32 %v731, %v1454
      %v1469 = vsub.f32 %v734, %v1457
      %v1470 = vsub.f32 %v739, %v1460
      %v1471 = vsub.f32 %v742, %v1463
      %v1472 = vmul.f32 %v1464, 1.442695
      %v1473 = vpow.pop %v1472
      %v1474 = vmul.f32 %v1465, 1.442695
      %v1475 = vpow.pop %v1474
      %v1476 = vmul.f32 %v1466, 1.442695
      %v1477 = vpow.pop %v1476
      %v1478 = vmul.f32 %v1467, 1.442695
      %v1479 = vpow.pop %v1478
      %v1480 = vmul.f32 %v1468, 1.442695
      %v1481 = vpow.pop %v1480
      %v1482 = vmul.f32 %v1469, 1.442695
      %v1483 = vpow.pop %v1482
      %v1484 = vmul.f32 %v1470, 1.442695
      %v1485 = vpow.pop %v1484
      %v1486 = vmul.f32 %v1471, 1.442695
      %v1487 = vpow.pop %v1486
      %1496 = vrot.lane.b32.xlu0 %v1473, 80
      %v1497 = vpop.permute.xlu0 %1496
      %1498 = vrot.lane.b32.xlu0 %v1475, 80
      %v1499 = vpop.permute.xlu0 %1498
      %1500 = vrot.lane.b32.xlu0 %v1477, 80
      %v1501 = vpop.permute.xlu0 %1500
      %1502 = vrot.lane.b32.xlu0 %v1479, 80
      %v1503 = vpop.permute.xlu0 %1502
      %1504 = vrot.lane.b32.xlu0 %v1481, 80
      %v1505 = vpop.permute.xlu0 %1504
      %1506 = vrot.lane.b32.xlu0 %v1483, 80
      %v1507 = vpop.permute.xlu0 %1506
      %1508 = vrot.lane.b32.xlu0 %v1485, 80
      %v1509 = vpop.permute.xlu0 %1508
      %1510 = vrot.lane.b32.xlu0 %v1487, 80
      %v1511 = vpop.permute.xlu0 %1510
      %v1520 = vsel %vm745, %v1497, 0.0
      %1521 = vadd.xlane.f32.xlu0 %v1520
      %v1522 = vpop.xlane.xlu0 %1521
      %v1523 = vsel %vm745, %v1499, 0.0
      %1524 = vadd.xlane.f32.xlu0 %v1523
      %v1525 = vpop.xlane.xlu0 %1524
      %v1526 = vsel %vm745, %v1501, 0.0
      %1527 = vadd.xlane.f32.xlu0 %v1526
      %v1528 = vpop.xlane.xlu0 %1527
      %v1529 = vsel %vm745, %v1503, 0.0
      %1530 = vadd.xlane.f32.xlu0 %v1529
      %v1531 = vpop.xlane.xlu0 %1530
      %v1532 = vsel %vm745, %v1505, 0.0
      %1533 = vadd.xlane.f32.xlu0 %v1532
      %v1534 = vpop.xlane.xlu0 %1533
      %v1535 = vsel %vm745, %v1507, 0.0
      %1536 = vadd.xlane.f32.xlu0 %v1535
      %v1537 = vpop.xlane.xlu0 %1536
      %v1538 = vsel %vm745, %v1509, 0.0
      %1539 = vadd.xlane.f32.xlu0 %v1538
      %v1540 = vpop.xlane.xlu0 %1539
      %v1541 = vsel %vm745, %v1511, 0.0
      %1542 = vadd.xlane.f32.xlu0 %v1541
      %v1543 = vpop.xlane.xlu0 %1542
      %v1544 = vrcp.pop %v1522
      %v1545 = vrcp.pop %v1525
      %v1546 = vrcp.pop %v1528
      %v1547 = vrcp.pop %v1531
      %v1548 = vrcp.pop %v1534
      %v1549 = vrcp.pop %v1537
      %v1550 = vrcp.pop %v1540
      %v1551 = vrcp.pop %v1543
      %v1552 = vmul.f32 %v1473, %v1544
      %v1553 = vmul.f32 %v1475, %v1545
      %v1554 = vmul.f32 %v1477, %v1546
      %v1555 = vmul.f32 %v1479, %v1547
      %v1556 = vmul.f32 %v1481, %v1548
      %v1557 = vmul.f32 %v1483, %v1549
      %v1558 = vmul.f32 %v1485, %v1550
      %v1559 = vmul.f32 %v1487, %v1551
      %vm1560 = vcmask 523712
      %v1561 = vsel %vm1560, %v715, -inf
      %1562 = vmax.xlane.f32.xlu0 %v1561
      %v1563 = vpop.xlane.xlu0 %1562
      %v1564 = vsel %vm1560, %v718, -inf
      %1565 = vmax.xlane.f32.xlu0 %v1564
      %v1566 = vpop.xlane.xlu0 %1565
      %v1567 = vsel %vm1560, %v723, -inf
      %1568 = vmax.xlane.f32.xlu0 %v1567
      %v1569 = vpop.xlane.xlu0 %1568
      %v1570 = vsel %vm1560, %v726, -inf
      %1571 = vmax.xlane.f32.xlu0 %v1570
      %v1572 = vpop.xlane.xlu0 %1571
      %v1573 = vsel %vm1560, %v731, -inf
      %1574 = vmax.xlane.f32.xlu0 %v1573
      %v1575 = vpop.xlane.xlu0 %1574
      %v1576 = vsel %vm1560, %v734, -inf
      %1577 = vmax.xlane.f32.xlu0 %v1576
      %v1578 = vpop.xlane.xlu0 %1577
      %v1579 = vsel %vm1560, %v739, -inf
      %1580 = vmax.xlane.f32.xlu0 %v1579
      %v1581 = vpop.xlane.xlu0 %1580
      %v1582 = vsel %vm1560, %v742, -inf
      %1583 = vmax.xlane.f32.xlu0 %v1582
      %v1584 = vpop.xlane.xlu0 %1583
      %v1585 = vsub.f32 %v715, %v1563
      %v1586 = vsub.f32 %v718, %v1566
      %v1587 = vsub.f32 %v723, %v1569
      %v1588 = vsub.f32 %v726, %v1572
      %v1589 = vsub.f32 %v731, %v1575
      %v1590 = vsub.f32 %v734, %v1578
      %v1591 = vsub.f32 %v739, %v1581
      %v1592 = vsub.f32 %v742, %v1584
      %v1593 = vmul.f32 %v1585, 1.442695
      %v1594 = vpow.pop %v1593
      %v1595 = vmul.f32 %v1586, 1.442695
      %v1596 = vpow.pop %v1595
      %v1597 = vmul.f32 %v1587, 1.442695
      %v1598 = vpow.pop %v1597
      %v1599 = vmul.f32 %v1588, 1.442695
      %v1600 = vpow.pop %v1599
      %v1601 = vmul.f32 %v1589, 1.442695
      %v1602 = vpow.pop %v1601
      %v1603 = vmul.f32 %v1590, 1.442695
      %v1604 = vpow.pop %v1603
      %v1605 = vmul.f32 %v1591, 1.442695
      %v1606 = vpow.pop %v1605
      %v1607 = vmul.f32 %v1592, 1.442695
      %v1608 = vpow.pop %v1607
      %1617 = vrot.lane.b32.xlu0 %v1594, 72
      %v1618 = vpop.permute.xlu0 %1617
      %1619 = vrot.lane.b32.xlu0 %v1596, 72
      %v1620 = vpop.permute.xlu0 %1619
      %1621 = vrot.lane.b32.xlu0 %v1598, 72
      %v1622 = vpop.permute.xlu0 %1621
      %1623 = vrot.lane.b32.xlu0 %v1600, 72
      %v1624 = vpop.permute.xlu0 %1623
      %1625 = vrot.lane.b32.xlu0 %v1602, 72
      %v1626 = vpop.permute.xlu0 %1625
      %1627 = vrot.lane.b32.xlu0 %v1604, 72
      %v1628 = vpop.permute.xlu0 %1627
      %1629 = vrot.lane.b32.xlu0 %v1606, 72
      %v1630 = vpop.permute.xlu0 %1629
      %1631 = vrot.lane.b32.xlu0 %v1608, 72
      %v1632 = vpop.permute.xlu0 %1631
      %v1641 = vsel %vm745, %v1618, 0.0
      %1642 = vadd.xlane.f32.xlu0 %v1641
      %v1643 = vpop.xlane.xlu0 %1642
      %v1644 = vsel %vm745, %v1620, 0.0
      %1645 = vadd.xlane.f32.xlu0 %v1644
      %v1646 = vpop.xlane.xlu0 %1645
      %v1647 = vsel %vm745, %v1622, 0.0
      %1648 = vadd.xlane.f32.xlu0 %v1647
      %v1649 = vpop.xlane.xlu0 %1648
      %v1650 = vsel %vm745, %v1624, 0.0
      %1651 = vadd.xlane.f32.xlu0 %v1650
      %v1652 = vpop.xlane.xlu0 %1651
      %v1653 = vsel %vm745, %v1626, 0.0
      %1654 = vadd.xlane.f32.xlu0 %v1653
      %v1655 = vpop.xlane.xlu0 %1654
      %v1656 = vsel %vm745, %v1628, 0.0
      %1657 = vadd.xlane.f32.xlu0 %v1656
      %v1658 = vpop.xlane.xlu0 %1657
      %v1659 = vsel %vm745, %v1630, 0.0
      %1660 = vadd.xlane.f32.xlu0 %v1659
      %v1661 = vpop.xlane.xlu0 %1660
      %v1662 = vsel %vm745, %v1632, 0.0
      %1663 = vadd.xlane.f32.xlu0 %v1662
      %v1664 = vpop.xlane.xlu0 %1663
      %v1665 = vrcp.pop %v1643
      %v1666 = vrcp.pop %v1646
      %v1667 = vrcp.pop %v1649
      %v1668 = vrcp.pop %v1652
      %v1669 = vrcp.pop %v1655
      %v1670 = vrcp.pop %v1658
      %v1671 = vrcp.pop %v1661
      %v1672 = vrcp.pop %v1664
      %v1673 = vmul.f32 %v1594, %v1665
      %v1674 = vmul.f32 %v1596, %v1666
      %v1675 = vmul.f32 %v1598, %v1667
      %v1676 = vmul.f32 %v1600, %v1668
      %v1677 = vmul.f32 %v1602, %v1669
      %v1678 = vmul.f32 %v1604, %v1670
      %v1679 = vmul.f32 %v1606, %v1671
      %v1680 = vmul.f32 %v1608, %v1672
      %v1681 = vsel %vm745, %v826, %v947
      %v1682 = vsel %vm745, %v827, %v948
      %v1683 = vsel %vm745, %v828, %v949
      %v1684 = vsel %vm745, %v829, %v950
      %v1685 = vsel %vm745, %v830, %v951
      %v1686 = vsel %vm745, %v831, %v952
      %v1687 = vsel %vm745, %v832, %v953
      %v1688 = vsel %vm745, %v833, %v954
      %v1689 = vsel %vm391, %v1681, %v1068
      %v1690 = vsel %vm391, %v1682, %v1069
      %v1691 = vsel %vm391, %v1683, %v1070
      %v1692 = vsel %vm391, %v1684, %v1071
      %v1693 = vsel %vm391, %v1685, %v1072
      %v1694 = vsel %vm391, %v1686, %v1073
      %v1695 = vsel %vm391, %v1687, %v1074
      %v1696 = vsel %vm391, %v1688, %v1075
      %vm1697 = vcmask 195584
      %v1698 = vsel %vm1697, %v1689, %v1189
      %v1699 = vsel %vm1697, %v1690, %v1190
      %v1700 = vsel %vm1697, %v1691, %v1191
      %v1701 = vsel %vm1697, %v1692, %v1192
      %v1702 = vsel %vm1697, %v1693, %v1193
      %v1703 = vsel %vm1697, %v1694, %v1194
      %v1704 = vsel %vm1697, %v1695, %v1195
      %v1705 = vsel %vm1697, %v1696, %v1196
      %vm1706 = vcmask 261120
      %v1707 = vsel %vm1706, %v1698, %v1310
      %v1708 = vsel %vm1706, %v1699, %v1311
      %v1709 = vsel %vm1706, %v1700, %v1312
      %v1710 = vsel %vm1706, %v1701, %v1313
      %v1711 = vsel %vm1706, %v1702, %v1314
      %v1712 = vsel %vm1706, %v1703, %v1315
      %v1713 = vsel %vm1706, %v1704, %v1316
      %v1714 = vsel %vm1706, %v1705, %v1317
      %vm1715 = vcmask 326656
      %v1716 = vsel %vm1715, %v1707, %v1431
      %v1717 = vsel %vm1715, %v1708, %v1432
      %v1718 = vsel %vm1715, %v1709, %v1433
      %v1719 = vsel %vm1715, %v1710, %v1434
      %v1720 = vsel %vm1715, %v1711, %v1435
      %v1721 = vsel %vm1715, %v1712, %v1436
      %v1722 = vsel %vm1715, %v1713, %v1437
      %v1723 = vsel %vm1715, %v1714, %v1438
      %vm1724 = vcmask 392192
      %v1725 = vsel %vm1724, %v1716, %v1552
      %v1726 = vsel %vm1724, %v1717, %v1553
      %v1727 = vsel %vm1724, %v1718, %v1554
      %v1728 = vsel %vm1724, %v1719, %v1555
      %v1729 = vsel %vm1724, %v1720, %v1556
      %v1730 = vsel %vm1724, %v1721, %v1557
      %v1731 = vsel %vm1724, %v1722, %v1558
      %v1732 = vsel %vm1724, %v1723, %v1559
      %vm1733 = vcmask 457728
      %v1734 = vsel %vm1733, %v1725, %v1673
      %v1735 = vsel %vm1733, %v1726, %v1674
      %v1736 = vsel %vm1733, %v1727, %v1675
      %v1737 = vsel %vm1733, %v1728, %v1676
      %v1738 = vsel %vm1733, %v1729, %v1677
      %v1739 = vsel %vm1733, %v1730, %v1678
      %v1740 = vsel %vm1733, %v1731, %v1679
      %v1741 = vsel %vm1733, %v1732, %v1680
      %v1743 = vsel %vm655, %v635, 0
      %v1746 = vsel %vm655, %v636, 0
      %v1749 = vsel %vm655, %v637, 0
      %v1752 = vsel %vm655, %v638, 0
      %1754 = vmatprep.subr.bf16.mxu0 0
      %1755 = vmatpush1.bf16.xpose.msra.mxu0 %v669
      %1756 = vmatprep.subr.bf16.mxu0 0
      %1757 = vmatpush1.bf16.xpose.msra.mxu0 %v672
      %1758 = vmatprep.subr.bf16.mxu0 0
      %1759 = vmatpush1.bf16.xpose.msra.mxu0 %v675
      %1760 = vmatprep.subr.bf16.mxu0 0
      %1761 = vmatpush1.bf16.xpose.msra.mxu0 %v678
      %1762 = vmatprep.subr.bf16.mxu0 0
      %1763 = vmatpush1.bf16.xpose.msra.mxu0 0
      %1764 = vmatprep.subr.bf16.mxu0 0
      %1765 = vmatpush1.bf16.xpose.msra.mxu0 0
      %1766 = vmatprep.subr.bf16.mxu0 0
      %1767 = vmatpush1.bf16.xpose.msra.mxu0 0
      %1768 = vmatprep.subr.bf16.mxu0 0
      %1769 = vmatpush1.bf16.xpose.msra.mxu0 0
      %1770 = vmatprep.subr.bf16.mxu0 0
      %1771 = vmatpush1.bf16.xpose.msra.mxu0 0
      %1772 = vmatprep.subr.bf16.mxu0 0
      %1773 = vmatpush1.bf16.xpose.msra.mxu0 0
      %1774 = vmatprep.subr.bf16.mxu0 0
      %1775 = vmatpush1.bf16.xpose.msra.mxu0 0
      %1776 = vmatprep.subr.bf16.mxu0 0
      %1777 = vmatpush1.bf16.xpose.msra.mxu0 0
      %1778 = vmatprep.subr.bf16.mxu0 0
      %1779 = vmatpush1.bf16.xpose.msra.mxu0 0
      %1780 = vmatprep.subr.bf16.mxu0 0
      %1781 = vmatpush1.bf16.xpose.msra.mxu0 0
      %1782 = vmatprep.subr.bf16.mxu0 0
      %1783 = vmatpush1.bf16.xpose.msra.mxu0 0
      %1784 = vmatprep.subr.bf16.mxu0 0
      %1785 = vmatpush1.bf16.xpose.msra.mxu0 0
      %1786 = vmatprep.mubr.bf16.mxu0 0
      %1787 = vmatmul.mubr.bf16.gmra.mrb[0].mxu0 %v1743
      %v1788 = vpop.f32.mrb[0].mxu0
      %v1789 = vadd.f32 0.0, %v1788
      %v1790 = vpop.f32.mrb[0].mxu0
      %v1791 = vpop.f32.mrb[0].mxu0
      %v1792 = vadd.f32 0.0, %v1791
      %v1793 = vpop.f32.mrb[0].mxu0
      %1794 = vmatprep.mubr.bf16.mxu0 0
      %1795 = vmatmul.mubr.bf16.gmra.mrb[0].mxu0 %v1746
      %v1796 = vpop.f32.mrb[0].mxu0
      %v1797 = vadd.f32 0.0, %v1796
      %v1798 = vpop.f32.mrb[0].mxu0
      %v1799 = vpop.f32.mrb[0].mxu0
      %v1800 = vadd.f32 0.0, %v1799
      %v1801 = vpop.f32.mrb[0].mxu0
      %1802 = vmatprep.mubr.bf16.mxu0 0
      %1803 = vmatmul.mubr.bf16.gmra.mrb[0].mxu0 %v1749
      %v1804 = vpop.f32.mrb[0].mxu0
      %v1805 = vadd.f32 0.0, %v1804
      %v1806 = vpop.f32.mrb[0].mxu0
      %v1807 = vpop.f32.mrb[0].mxu0
      %v1808 = vadd.f32 0.0, %v1807
      %v1809 = vpop.f32.mrb[0].mxu0
      %1810 = vmatprep.mubr.bf16.mxu0 0
      %1811 = vmatmul.mubr.bf16.gmra.mrb[0].mxu0 %v1752
      %v1812 = vpop.f32.mrb[0].mxu0
      %v1813 = vadd.f32 0.0, %v1812
      %v1814 = vpop.f32.mrb[0].mxu0
      %v1815 = vpop.f32.mrb[0].mxu0
      %v1816 = vadd.f32 0.0, %v1815
      %v1817 = vpop.f32.mrb[0].mxu0
      %1818 = vdwg.mxu0
      %v1819 = vsel %vm745, %v1789, -inf
      %1820 = vmax.xlane.f32.xlu0 %v1819
      %v1821 = vpop.xlane.xlu0 %1820
      %v1822 = vsel %vm745, %v1792, -inf
      %1823 = vmax.xlane.f32.xlu0 %v1822
      %v1824 = vpop.xlane.xlu0 %1823
      %v1825 = vsel %vm745, %v1797, -inf
      %1826 = vmax.xlane.f32.xlu0 %v1825
      %v1827 = vpop.xlane.xlu0 %1826
      %v1828 = vsel %vm745, %v1800, -inf
      %1829 = vmax.xlane.f32.xlu0 %v1828
      %v1830 = vpop.xlane.xlu0 %1829
      %v1831 = vsel %vm745, %v1805, -inf
      %1832 = vmax.xlane.f32.xlu0 %v1831
      %v1833 = vpop.xlane.xlu0 %1832
      %v1834 = vsel %vm745, %v1808, -inf
      %1835 = vmax.xlane.f32.xlu0 %v1834
      %v1836 = vpop.xlane.xlu0 %1835
      %v1837 = vsel %vm745, %v1813, -inf
      %1838 = vmax.xlane.f32.xlu0 %v1837
      %v1839 = vpop.xlane.xlu0 %1838
      %v1840 = vsel %vm745, %v1816, -inf
      %1841 = vmax.xlane.f32.xlu0 %v1840
      %v1842 = vpop.xlane.xlu0 %1841
      %v1843 = vsub.f32 %v1789, %v1821
      %v1844 = vsub.f32 %v1792, %v1824
      %v1845 = vsub.f32 %v1797, %v1827
      %v1846 = vsub.f32 %v1800, %v1830
      %v1847 = vsub.f32 %v1805, %v1833
      %v1848 = vsub.f32 %v1808, %v1836
      %v1849 = vsub.f32 %v1813, %v1839
      %v1850 = vsub.f32 %v1816, %v1842
      %v1851 = vmul.f32 %v1843, 1.442695
      %v1852 = vpow.pop %v1851
      %v1853 = vmul.f32 %v1844, 1.442695
      %v1854 = vpow.pop %v1853
      %v1855 = vmul.f32 %v1845, 1.442695
      %v1856 = vpow.pop %v1855
      %v1857 = vmul.f32 %v1846, 1.442695
      %v1858 = vpow.pop %v1857
      %v1859 = vmul.f32 %v1847, 1.442695
      %v1860 = vpow.pop %v1859
      %v1861 = vmul.f32 %v1848, 1.442695
      %v1862 = vpow.pop %v1861
      %v1863 = vmul.f32 %v1849, 1.442695
      %v1864 = vpow.pop %v1863
      %v1865 = vmul.f32 %v1850, 1.442695
      %v1866 = vpow.pop %v1865
      %v1867 = vsel %vm745, %v1852, 0.0
      %1868 = vadd.xlane.f32.xlu0 %v1867
      %v1869 = vpop.xlane.xlu0 %1868
      %v1870 = vsel %vm745, %v1854, 0.0
      %1871 = vadd.xlane.f32.xlu0 %v1870
      %v1872 = vpop.xlane.xlu0 %1871
      %v1873 = vsel %vm745, %v1856, 0.0
      %1874 = vadd.xlane.f32.xlu0 %v1873
      %v1875 = vpop.xlane.xlu0 %1874
      %v1876 = vsel %vm745, %v1858, 0.0
      %1877 = vadd.xlane.f32.xlu0 %v1876
      %v1878 = vpop.xlane.xlu0 %1877
      %v1879 = vsel %vm745, %v1860, 0.0
      %1880 = vadd.xlane.f32.xlu0 %v1879
      %v1881 = vpop.xlane.xlu0 %1880
      %v1882 = vsel %vm745, %v1862, 0.0
      %1883 = vadd.xlane.f32.xlu0 %v1882
      %v1884 = vpop.xlane.xlu0 %1883
      %v1885 = vsel %vm745, %v1864, 0.0
      %1886 = vadd.xlane.f32.xlu0 %v1885
      %v1887 = vpop.xlane.xlu0 %1886
      %v1888 = vsel %vm745, %v1866, 0.0
      %1889 = vadd.xlane.f32.xlu0 %v1888
      %v1890 = vpop.xlane.xlu0 %1889
      %v1891 = vrcp.pop %v1869
      %v1892 = vrcp.pop %v1872
      %v1893 = vrcp.pop %v1875
      %v1894 = vrcp.pop %v1878
      %v1895 = vrcp.pop %v1881
      %v1896 = vrcp.pop %v1884
      %v1897 = vrcp.pop %v1887
      %v1898 = vrcp.pop %v1890
      %v1899 = vmul.f32 %v1852, %v1891
      %v1900 = vmul.f32 %v1854, %v1892
      %v1901 = vmul.f32 %v1856, %v1893
      %v1902 = vmul.f32 %v1858, %v1894
      %v1903 = vmul.f32 %v1860, %v1895
      %v1904 = vmul.f32 %v1862, %v1896
      %v1905 = vmul.f32 %v1864, %v1897
      %v1906 = vmul.f32 %v1866, %v1898
      %v1907 = vsel %vm834, %v1789, -inf
      %1908 = vmax.xlane.f32.xlu0 %v1907
      %v1909 = vpop.xlane.xlu0 %1908
      %v1910 = vsel %vm834, %v1792, -inf
      %1911 = vmax.xlane.f32.xlu0 %v1910
      %v1912 = vpop.xlane.xlu0 %1911
      %v1913 = vsel %vm834, %v1797, -inf
      %1914 = vmax.xlane.f32.xlu0 %v1913
      %v1915 = vpop.xlane.xlu0 %1914
      %v1916 = vsel %vm834, %v1800, -inf
      %1917 = vmax.xlane.f32.xlu0 %v1916
      %v1918 = vpop.xlane.xlu0 %1917
      %v1919 = vsel %vm834, %v1805, -inf
      %1920 = vmax.xlane.f32.xlu0 %v1919
      %v1921 = vpop.xlane.xlu0 %1920
      %v1922 = vsel %vm834, %v1808, -inf
      %1923 = vmax.xlane.f32.xlu0 %v1922
      %v1924 = vpop.xlane.xlu0 %1923
      %v1925 = vsel %vm834, %v1813, -inf
      %1926 = vmax.xlane.f32.xlu0 %v1925
      %v1927 = vpop.xlane.xlu0 %1926
      %v1928 = vsel %vm834, %v1816, -inf
      %1929 = vmax.xlane.f32.xlu0 %v1928
      %v1930 = vpop.xlane.xlu0 %1929
      %v1931 = vsub.f32 %v1789, %v1909
      %v1932 = vsub.f32 %v1792, %v1912
      %v1933 = vsub.f32 %v1797, %v1915
      %v1934 = vsub.f32 %v1800, %v1918
      %v1935 = vsub.f32 %v1805, %v1921
      %v1936 = vsub.f32 %v1808, %v1924
      %v1937 = vsub.f32 %v1813, %v1927
      %v1938 = vsub.f32 %v1816, %v1930
      %v1939 = vmul.f32 %v1931, 1.442695
      %v1940 = vpow.pop %v1939
      %v1941 = vmul.f32 %v1932, 1.442695
      %v1942 = vpow.pop %v1941
      %v1943 = vmul.f32 %v1933, 1.442695
      %v1944 = vpow.pop %v1943
      %v1945 = vmul.f32 %v1934, 1.442695
      %v1946 = vpow.pop %v1945
      %v1947 = vmul.f32 %v1935, 1.442695
      %v1948 = vpow.pop %v1947
      %v1949 = vmul.f32 %v1936, 1.442695
      %v1950 = vpow.pop %v1949
      %v1951 = vmul.f32 %v1937, 1.442695
      %v1952 = vpow.pop %v1951
      %v1953 = vmul.f32 %v1938, 1.442695
      %v1954 = vpow.pop %v1953
      %1963 = vrot.lane.b32.xlu0 %v1940, 120
      %v1964 = vpop.permute.xlu0 %1963
      %1965 = vrot.lane.b32.xlu0 %v1942, 120
      %v1966 = vpop.permute.xlu0 %1965
      %1967 = vrot.lane.b32.xlu0 %v1944, 120
      %v1968 = vpop.permute.xlu0 %1967
      %1969 = vrot.lane.b32.xlu0 %v1946, 120
      %v1970 = vpop.permute.xlu0 %1969
      %1971 = vrot.lane.b32.xlu0 %v1948, 120
      %v1972 = vpop.permute.xlu0 %1971
      %1973 = vrot.lane.b32.xlu0 %v1950, 120
      %v1974 = vpop.permute.xlu0 %1973
      %1975 = vrot.lane.b32.xlu0 %v1952, 120
      %v1976 = vpop.permute.xlu0 %1975
      %1977 = vrot.lane.b32.xlu0 %v1954, 120
      %v1978 = vpop.permute.xlu0 %1977
      %v1987 = vsel %vm745, %v1964, 0.0
      %1988 = vadd.xlane.f32.xlu0 %v1987
      %v1989 = vpop.xlane.xlu0 %1988
      %v1990 = vsel %vm745, %v1966, 0.0
      %1991 = vadd.xlane.f32.xlu0 %v1990
      %v1992 = vpop.xlane.xlu0 %1991
      %v1993 = vsel %vm745, %v1968, 0.0
      %1994 = vadd.xlane.f32.xlu0 %v1993
      %v1995 = vpop.xlane.xlu0 %1994
      %v1996 = vsel %vm745, %v1970, 0.0
      %1997 = vadd.xlane.f32.xlu0 %v1996
      %v1998 = vpop.xlane.xlu0 %1997
      %v1999 = vsel %vm745, %v1972, 0.0
      %2000 = vadd.xlane.f32.xlu0 %v1999
      %v2001 = vpop.xlane.xlu0 %2000
      %v2002 = vsel %vm745, %v1974, 0.0
      %2003 = vadd.xlane.f32.xlu0 %v2002
      %v2004 = vpop.xlane.xlu0 %2003
      %v2005 = vsel %vm745, %v1976, 0.0
      %2006 = vadd.xlane.f32.xlu0 %v2005
      %v2007 = vpop.xlane.xlu0 %2006
      %v2008 = vsel %vm745, %v1978, 0.0
      %2009 = vadd.xlane.f32.xlu0 %v2008
      %v2010 = vpop.xlane.xlu0 %2009
      %v2011 = vrcp.pop %v1989
      %v2012 = vrcp.pop %v1992
      %v2013 = vrcp.pop %v1995
      %v2014 = vrcp.pop %v1998
      %v2015 = vrcp.pop %v2001
      %v2016 = vrcp.pop %v2004
      %v2017 = vrcp.pop %v2007
      %v2018 = vrcp.pop %v2010
      %v2019 = vmul.f32 %v1940, %v2011
      %v2020 = vmul.f32 %v1942, %v2012
      %v2021 = vmul.f32 %v1944, %v2013
      %v2022 = vmul.f32 %v1946, %v2014
      %v2023 = vmul.f32 %v1948, %v2015
      %v2024 = vmul.f32 %v1950, %v2016
      %v2025 = vmul.f32 %v1952, %v2017
      %v2026 = vmul.f32 %v1954, %v2018
      %v2027 = vsel %vm955, %v1789, -inf
      %2028 = vmax.xlane.f32.xlu0 %v2027
      %v2029 = vpop.xlane.xlu0 %2028
      %v2030 = vsel %vm955, %v1792, -inf
      %2031 = vmax.xlane.f32.xlu0 %v2030
      %v2032 = vpop.xlane.xlu0 %2031
      %v2033 = vsel %vm955, %v1797, -inf
      %2034 = vmax.xlane.f32.xlu0 %v2033
      %v2035 = vpop.xlane.xlu0 %2034
      %v2036 = vsel %vm955, %v1800, -inf
      %2037 = vmax.xlane.f32.xlu0 %v2036
      %v2038 = vpop.xlane.xlu0 %2037
      %v2039 = vsel %vm955, %v1805, -inf
      %2040 = vmax.xlane.f32.xlu0 %v2039
      %v2041 = vpop.xlane.xlu0 %2040
      %v2042 = vsel %vm955, %v1808, -inf
      %2043 = vmax.xlane.f32.xlu0 %v2042
      %v2044 = vpop.xlane.xlu0 %2043
      %v2045 = vsel %vm955, %v1813, -inf
      %2046 = vmax.xlane.f32.xlu0 %v2045
      %v2047 = vpop.xlane.xlu0 %2046
      %v2048 = vsel %vm955, %v1816, -inf
      %2049 = vmax.xlane.f32.xlu0 %v2048
      %v2050 = vpop.xlane.xlu0 %2049
      %v2051 = vsub.f32 %v1789, %v2029
      %v2052 = vsub.f32 %v1792, %v2032
      %v2053 = vsub.f32 %v1797, %v2035
      %v2054 = vsub.f32 %v1800, %v2038
      %v2055 = vsub.f32 %v1805, %v2041
      %v2056 = vsub.f32 %v1808, %v2044
      %v2057 = vsub.f32 %v1813, %v2047
      %v2058 = vsub.f32 %v1816, %v2050
      %v2059 = vmul.f32 %v2051, 1.442695
      %v2060 = vpow.pop %v2059
      %v2061 = vmul.f32 %v2052, 1.442695
      %v2062 = vpow.pop %v2061
      %v2063 = vmul.f32 %v2053, 1.442695
      %v2064 = vpow.pop %v2063
      %v2065 = vmul.f32 %v2054, 1.442695
      %v2066 = vpow.pop %v2065
      %v2067 = vmul.f32 %v2055, 1.442695
      %v2068 = vpow.pop %v2067
      %v2069 = vmul.f32 %v2056, 1.442695
      %v2070 = vpow.pop %v2069
      %v2071 = vmul.f32 %v2057, 1.442695
      %v2072 = vpow.pop %v2071
      %v2073 = vmul.f32 %v2058, 1.442695
      %v2074 = vpow.pop %v2073
      %2083 = vrot.lane.b32.xlu0 %v2060, 112
      %v2084 = vpop.permute.xlu0 %2083
      %2085 = vrot.lane.b32.xlu0 %v2062, 112
      %v2086 = vpop.permute.xlu0 %2085
      %2087 = vrot.lane.b32.xlu0 %v2064, 112
      %v2088 = vpop.permute.xlu0 %2087
      %2089 = vrot.lane.b32.xlu0 %v2066, 112
      %v2090 = vpop.permute.xlu0 %2089
      %2091 = vrot.lane.b32.xlu0 %v2068, 112
      %v2092 = vpop.permute.xlu0 %2091
      %2093 = vrot.lane.b32.xlu0 %v2070, 112
      %v2094 = vpop.permute.xlu0 %2093
      %2095 = vrot.lane.b32.xlu0 %v2072, 112
      %v2096 = vpop.permute.xlu0 %2095
      %2097 = vrot.lane.b32.xlu0 %v2074, 112
      %v2098 = vpop.permute.xlu0 %2097
      %v2107 = vsel %vm745, %v2084, 0.0
      %2108 = vadd.xlane.f32.xlu0 %v2107
      %v2109 = vpop.xlane.xlu0 %2108
      %v2110 = vsel %vm745, %v2086, 0.0
      %2111 = vadd.xlane.f32.xlu0 %v2110
      %v2112 = vpop.xlane.xlu0 %2111
      %v2113 = vsel %vm745, %v2088, 0.0
      %2114 = vadd.xlane.f32.xlu0 %v2113
      %v2115 = vpop.xlane.xlu0 %2114
      %v2116 = vsel %vm745, %v2090, 0.0
      %2117 = vadd.xlane.f32.xlu0 %v2116
      %v2118 = vpop.xlane.xlu0 %2117
      %v2119 = vsel %vm745, %v2092, 0.0
      %2120 = vadd.xlane.f32.xlu0 %v2119
      %v2121 = vpop.xlane.xlu0 %2120
      %v2122 = vsel %vm745, %v2094, 0.0
      %2123 = vadd.xlane.f32.xlu0 %v2122
      %v2124 = vpop.xlane.xlu0 %2123
      %v2125 = vsel %vm745, %v2096, 0.0
      %2126 = vadd.xlane.f32.xlu0 %v2125
      %v2127 = vpop.xlane.xlu0 %2126
      %v2128 = vsel %vm745, %v2098, 0.0
      %2129 = vadd.xlane.f32.xlu0 %v2128
      %v2130 = vpop.xlane.xlu0 %2129
      %v2131 = vrcp.pop %v2109
      %v2132 = vrcp.pop %v2112
      %v2133 = vrcp.pop %v2115
      %v2134 = vrcp.pop %v2118
      %v2135 = vrcp.pop %v2121
      %v2136 = vrcp.pop %v2124
      %v2137 = vrcp.pop %v2127
      %v2138 = vrcp.pop %v2130
      %v2139 = vmul.f32 %v2060, %v2131
      %v2140 = vmul.f32 %v2062, %v2132
      %v2141 = vmul.f32 %v2064, %v2133
      %v2142 = vmul.f32 %v2066, %v2134
      %v2143 = vmul.f32 %v2068, %v2135
      %v2144 = vmul.f32 %v2070, %v2136
      %v2145 = vmul.f32 %v2072, %v2137
      %v2146 = vmul.f32 %v2074, %v2138
      %v2147 = vsel %vm1076, %v1789, -inf
      %2148 = vmax.xlane.f32.xlu0 %v2147
      %v2149 = vpop.xlane.xlu0 %2148
      %v2150 = vsel %vm1076, %v1792, -inf
      %2151 = vmax.xlane.f32.xlu0 %v2150
      %v2152 = vpop.xlane.xlu0 %2151
      %v2153 = vsel %vm1076, %v1797, -inf
      %2154 = vmax.xlane.f32.xlu0 %v2153
      %v2155 = vpop.xlane.xlu0 %2154
      %v2156 = vsel %vm1076, %v1800, -inf
      %2157 = vmax.xlane.f32.xlu0 %v2156
      %v2158 = vpop.xlane.xlu0 %2157
      %v2159 = vsel %vm1076, %v1805, -inf
      %2160 = vmax.xlane.f32.xlu0 %v2159
      %v2161 = vpop.xlane.xlu0 %2160
      %v2162 = vsel %vm1076, %v1808, -inf
      %2163 = vmax.xlane.f32.xlu0 %v2162
      %v2164 = vpop.xlane.xlu0 %2163
      %v2165 = vsel %vm1076, %v1813, -inf
      %2166 = vmax.xlane.f32.xlu0 %v2165
      %v2167 = vpop.xlane.xlu0 %2166
      %v2168 = vsel %vm1076, %v1816, -inf
      %2169 = vmax.xlane.f32.xlu0 %v2168
      %v2170 = vpop.xlane.xlu0 %2169
      %v2171 = vsub.f32 %v1789, %v2149
      %v2172 = vsub.f32 %v1792, %v2152
      %v2173 = vsub.f32 %v1797, %v2155
      %v2174 = vsub.f32 %v1800, %v2158
      %v2175 = vsub.f32 %v1805, %v2161
      %v2176 = vsub.f32 %v1808, %v2164
      %v2177 = vsub.f32 %v1813, %v2167
      %v2178 = vsub.f32 %v1816, %v2170
      %v2179 = vmul.f32 %v2171, 1.442695
      %v2180 = vpow.pop %v2179
      %v2181 = vmul.f32 %v2172, 1.442695
      %v2182 = vpow.pop %v2181
      %v2183 = vmul.f32 %v2173, 1.442695
      %v2184 = vpow.pop %v2183
      %v2185 = vmul.f32 %v2174, 1.442695
      %v2186 = vpow.pop %v2185
      %v2187 = vmul.f32 %v2175, 1.442695
      %v2188 = vpow.pop %v2187
      %v2189 = vmul.f32 %v2176, 1.442695
      %v2190 = vpow.pop %v2189
      %v2191 = vmul.f32 %v2177, 1.442695
      %v2192 = vpow.pop %v2191
      %v2193 = vmul.f32 %v2178, 1.442695
      %v2194 = vpow.pop %v2193
      %2203 = vrot.lane.b32.xlu0 %v2180, 104
      %v2204 = vpop.permute.xlu0 %2203
      %2205 = vrot.lane.b32.xlu0 %v2182, 104
      %v2206 = vpop.permute.xlu0 %2205
      %2207 = vrot.lane.b32.xlu0 %v2184, 104
      %v2208 = vpop.permute.xlu0 %2207
      %2209 = vrot.lane.b32.xlu0 %v2186, 104
      %v2210 = vpop.permute.xlu0 %2209
      %2211 = vrot.lane.b32.xlu0 %v2188, 104
      %v2212 = vpop.permute.xlu0 %2211
      %2213 = vrot.lane.b32.xlu0 %v2190, 104
      %v2214 = vpop.permute.xlu0 %2213
      %2215 = vrot.lane.b32.xlu0 %v2192, 104
      %v2216 = vpop.permute.xlu0 %2215
      %2217 = vrot.lane.b32.xlu0 %v2194, 104
      %v2218 = vpop.permute.xlu0 %2217
      %v2227 = vsel %vm745, %v2204, 0.0
      %2228 = vadd.xlane.f32.xlu0 %v2227
      %v2229 = vpop.xlane.xlu0 %2228
      %v2230 = vsel %vm745, %v2206, 0.0
      %2231 = vadd.xlane.f32.xlu0 %v2230
      %v2232 = vpop.xlane.xlu0 %2231
      %v2233 = vsel %vm745, %v2208, 0.0
      %2234 = vadd.xlane.f32.xlu0 %v2233
      %v2235 = vpop.xlane.xlu0 %2234
      %v2236 = vsel %vm745, %v2210, 0.0
      %2237 = vadd.xlane.f32.xlu0 %v2236
      %v2238 = vpop.xlane.xlu0 %2237
      %v2239 = vsel %vm745, %v2212, 0.0
      %2240 = vadd.xlane.f32.xlu0 %v2239
      %v2241 = vpop.xlane.xlu0 %2240
      %v2242 = vsel %vm745, %v2214, 0.0
      %2243 = vadd.xlane.f32.xlu0 %v2242
      %v2244 = vpop.xlane.xlu0 %2243
      %v2245 = vsel %vm745, %v2216, 0.0
      %2246 = vadd.xlane.f32.xlu0 %v2245
      %v2247 = vpop.xlane.xlu0 %2246
      %v2248 = vsel %vm745, %v2218, 0.0
      %2249 = vadd.xlane.f32.xlu0 %v2248
      %v2250 = vpop.xlane.xlu0 %2249
      %v2251 = vrcp.pop %v2229
      %v2252 = vrcp.pop %v2232
      %v2253 = vrcp.pop %v2235
      %v2254 = vrcp.pop %v2238
      %v2255 = vrcp.pop %v2241
      %v2256 = vrcp.pop %v2244
      %v2257 = vrcp.pop %v2247
      %v2258 = vrcp.pop %v2250
      %v2259 = vmul.f32 %v2180, %v2251
      %v2260 = vmul.f32 %v2182, %v2252
      %v2261 = vmul.f32 %v2184, %v2253
      %v2262 = vmul.f32 %v2186, %v2254
      %v2263 = vmul.f32 %v2188, %v2255
      %v2264 = vmul.f32 %v2190, %v2256
      %v2265 = vmul.f32 %v2192, %v2257
      %v2266 = vmul.f32 %v2194, %v2258
      %v2267 = vsel %vm1197, %v1789, -inf
      %2268 = vmax.xlane.f32.xlu0 %v2267
      %v2269 = vpop.xlane.xlu0 %2268
      %v2270 = vsel %vm1197, %v1792, -inf
      %2271 = vmax.xlane.f32.xlu0 %v2270
      %v2272 = vpop.xlane.xlu0 %2271
      %v2273 = vsel %vm1197, %v1797, -inf
      %2274 = vmax.xlane.f32.xlu0 %v2273
      %v2275 = vpop.xlane.xlu0 %2274
      %v2276 = vsel %vm1197, %v1800, -inf
      %2277 = vmax.xlane.f32.xlu0 %v2276
      %v2278 = vpop.xlane.xlu0 %2277
      %v2279 = vsel %vm1197, %v1805, -inf
      %2280 = vmax.xlane.f32.xlu0 %v2279
      %v2281 = vpop.xlane.xlu0 %2280
      %v2282 = vsel %vm1197, %v1808, -inf
      %2283 = vmax.xlane.f32.xlu0 %v2282
      %v2284 = vpop.xlane.xlu0 %2283
      %v2285 = vsel %vm1197, %v1813, -inf
      %2286 = vmax.xlane.f32.xlu0 %v2285
      %v2287 = vpop.xlane.xlu0 %2286
      %v2288 = vsel %vm1197, %v1816, -inf
      %2289 = vmax.xlane.f32.xlu0 %v2288
      %v2290 = vpop.xlane.xlu0 %2289
      %v2291 = vsub.f32 %v1789, %v2269
      %v2292 = vsub.f32 %v1792, %v2272
      %v2293 = vsub.f32 %v1797, %v2275
      %v2294 = vsub.f32 %v1800, %v2278
      %v2295 = vsub.f32 %v1805, %v2281
      %v2296 = vsub.f32 %v1808, %v2284
      %v2297 = vsub.f32 %v1813, %v2287
      %v2298 = vsub.f32 %v1816, %v2290
      %v2299 = vmul.f32 %v2291, 1.442695
      %v2300 = vpow.pop %v2299
      %v2301 = vmul.f32 %v2292, 1.442695
      %v2302 = vpow.pop %v2301
      %v2303 = vmul.f32 %v2293, 1.442695
      %v2304 = vpow.pop %v2303
      %v2305 = vmul.f32 %v2294, 1.442695
      %v2306 = vpow.pop %v2305
      %v2307 = vmul.f32 %v2295, 1.442695
      %v2308 = vpow.pop %v2307
      %v2309 = vmul.f32 %v2296, 1.442695
      %v2310 = vpow.pop %v2309
      %v2311 = vmul.f32 %v2297, 1.442695
      %v2312 = vpow.pop %v2311
      %v2313 = vmul.f32 %v2298, 1.442695
      %v2314 = vpow.pop %v2313
      %2323 = vrot.lane.b32.xlu0 %v2300, 96
      %v2324 = vpop.permute.xlu0 %2323
      %2325 = vrot.lane.b32.xlu0 %v2302, 96
      %v2326 = vpop.permute.xlu0 %2325
      %2327 = vrot.lane.b32.xlu0 %v2304, 96
      %v2328 = vpop.permute.xlu0 %2327
      %2329 = vrot.lane.b32.xlu0 %v2306, 96
      %v2330 = vpop.permute.xlu0 %2329
      %2331 = vrot.lane.b32.xlu0 %v2308, 96
      %v2332 = vpop.permute.xlu0 %2331
      %2333 = vrot.lane.b32.xlu0 %v2310, 96
      %v2334 = vpop.permute.xlu0 %2333
      %2335 = vrot.lane.b32.xlu0 %v2312, 96
      %v2336 = vpop.permute.xlu0 %2335
      %2337 = vrot.lane.b32.xlu0 %v2314, 96
      %v2338 = vpop.permute.xlu0 %2337
      %v2347 = vsel %vm745, %v2324, 0.0
      %2348 = vadd.xlane.f32.xlu0 %v2347
      %v2349 = vpop.xlane.xlu0 %2348
      %v2350 = vsel %vm745, %v2326, 0.0
      %2351 = vadd.xlane.f32.xlu0 %v2350
      %v2352 = vpop.xlane.xlu0 %2351
      %v2353 = vsel %vm745, %v2328, 0.0
      %2354 = vadd.xlane.f32.xlu0 %v2353
      %v2355 = vpop.xlane.xlu0 %2354
      %v2356 = vsel %vm745, %v2330, 0.0
      %2357 = vadd.xlane.f32.xlu0 %v2356
      %v2358 = vpop.xlane.xlu0 %2357
      %v2359 = vsel %vm745, %v2332, 0.0
      %2360 = vadd.xlane.f32.xlu0 %v2359
      %v2361 = vpop.xlane.xlu0 %2360
      %v2362 = vsel %vm745, %v2334, 0.0
      %2363 = vadd.xlane.f32.xlu0 %v2362
      %v2364 = vpop.xlane.xlu0 %2363
      %v2365 = vsel %vm745, %v2336, 0.0
      %2366 = vadd.xlane.f32.xlu0 %v2365
      %v2367 = vpop.xlane.xlu0 %2366
      %v2368 = vsel %vm745, %v2338, 0.0
      %2369 = vadd.xlane.f32.xlu0 %v2368
      %v2370 = vpop.xlane.xlu0 %2369
      %v2371 = vrcp.pop %v2349
      %v2372 = vrcp.pop %v2352
      %v2373 = vrcp.pop %v2355
      %v2374 = vrcp.pop %v2358
      %v2375 = vrcp.pop %v2361
      %v2376 = vrcp.pop %v2364
      %v2377 = vrcp.pop %v2367
      %v2378 = vrcp.pop %v2370
      %v2379 = vmul.f32 %v2300, %v2371
      %v2380 = vmul.f32 %v2302, %v2372
      %v2381 = vmul.f32 %v2304, %v2373
      %v2382 = vmul.f32 %v2306, %v2374
      %v2383 = vmul.f32 %v2308, %v2375
      %v2384 = vmul.f32 %v2310, %v2376
      %v2385 = vmul.f32 %v2312, %v2377
      %v2386 = vmul.f32 %v2314, %v2378
      %v2387 = vsel %vm1318, %v1789, -inf
      %2388 = vmax.xlane.f32.xlu0 %v2387
      %v2389 = vpop.xlane.xlu0 %2388
      %v2390 = vsel %vm1318, %v1792, -inf
      %2391 = vmax.xlane.f32.xlu0 %v2390
      %v2392 = vpop.xlane.xlu0 %2391
      %v2393 = vsel %vm1318, %v1797, -inf
      %2394 = vmax.xlane.f32.xlu0 %v2393
      %v2395 = vpop.xlane.xlu0 %2394
      %v2396 = vsel %vm1318, %v1800, -inf
      %2397 = vmax.xlane.f32.xlu0 %v2396
      %v2398 = vpop.xlane.xlu0 %2397
      %v2399 = vsel %vm1318, %v1805, -inf
      %2400 = vmax.xlane.f32.xlu0 %v2399
      %v2401 = vpop.xlane.xlu0 %2400
      %v2402 = vsel %vm1318, %v1808, -inf
      %2403 = vmax.xlane.f32.xlu0 %v2402
      %v2404 = vpop.xlane.xlu0 %2403
      %v2405 = vsel %vm1318, %v1813, -inf
      %2406 = vmax.xlane.f32.xlu0 %v2405
      %v2407 = vpop.xlane.xlu0 %2406
      %v2408 = vsel %vm1318, %v1816, -inf
      %2409 = vmax.xlane.f32.xlu0 %v2408
      %v2410 = vpop.xlane.xlu0 %2409
      %v2411 = vsub.f32 %v1789, %v2389
      %v2412 = vsub.f32 %v1792, %v2392
      %v2413 = vsub.f32 %v1797, %v2395
      %v2414 = vsub.f32 %v1800, %v2398
      %v2415 = vsub.f32 %v1805, %v2401
      %v2416 = vsub.f32 %v1808, %v2404
      %v2417 = vsub.f32 %v1813, %v2407
      %v2418 = vsub.f32 %v1816, %v2410
      %v2419 = vmul.f32 %v2411, 1.442695
      %v2420 = vpow.pop %v2419
      %v2421 = vmul.f32 %v2412, 1.442695
      %v2422 = vpow.pop %v2421
      %v2423 = vmul.f32 %v2413, 1.442695
      %v2424 = vpow.pop %v2423
      %v2425 = vmul.f32 %v2414, 1.442695
      %v2426 = vpow.pop %v2425
      %v2427 = vmul.f32 %v2415, 1.442695
      %v2428 = vpow.pop %v2427
      %v2429 = vmul.f32 %v2416, 1.442695
      %v2430 = vpow.pop %v2429
      %v2431 = vmul.f32 %v2417, 1.442695
      %v2432 = vpow.pop %v2431
      %v2433 = vmul.f32 %v2418, 1.442695
      %v2434 = vpow.pop %v2433
      %2443 = vrot.lane.b32.xlu0 %v2420, 88
      %v2444 = vpop.permute.xlu0 %2443
      %2445 = vrot.lane.b32.xlu0 %v2422, 88
      %v2446 = vpop.permute.xlu0 %2445
      %2447 = vrot.lane.b32.xlu0 %v2424, 88
      %v2448 = vpop.permute.xlu0 %2447
      %2449 = vrot.lane.b32.xlu0 %v2426, 88
      %v2450 = vpop.permute.xlu0 %2449
      %2451 = vrot.lane.b32.xlu0 %v2428, 88
      %v2452 = vpop.permute.xlu0 %2451
      %2453 = vrot.lane.b32.xlu0 %v2430, 88
      %v2454 = vpop.permute.xlu0 %2453
      %2455 = vrot.lane.b32.xlu0 %v2432, 88
      %v2456 = vpop.permute.xlu0 %2455
      %2457 = vrot.lane.b32.xlu0 %v2434, 88
      %v2458 = vpop.permute.xlu0 %2457
      %v2467 = vsel %vm745, %v2444, 0.0
      %2468 = vadd.xlane.f32.xlu0 %v2467
      %v2469 = vpop.xlane.xlu0 %2468
      %v2470 = vsel %vm745, %v2446, 0.0
      %2471 = vadd.xlane.f32.xlu0 %v2470
      %v2472 = vpop.xlane.xlu0 %2471
      %v2473 = vsel %vm745, %v2448, 0.0
      %2474 = vadd.xlane.f32.xlu0 %v2473
      %v2475 = vpop.xlane.xlu0 %2474
      %v2476 = vsel %vm745, %v2450, 0.0
      %2477 = vadd.xlane.f32.xlu0 %v2476
      %v2478 = vpop.xlane.xlu0 %2477
      %v2479 = vsel %vm745, %v2452, 0.0
      %2480 = vadd.xlane.f32.xlu0 %v2479
      %v2481 = vpop.xlane.xlu0 %2480
      %v2482 = vsel %vm745, %v2454, 0.0
      %2483 = vadd.xlane.f32.xlu0 %v2482
      %v2484 = vpop.xlane.xlu0 %2483
      %v2485 = vsel %vm745, %v2456, 0.0
      %2486 = vadd.xlane.f32.xlu0 %v2485
      %v2487 = vpop.xlane.xlu0 %2486
      %v2488 = vsel %vm745, %v2458, 0.0
      %2489 = vadd.xlane.f32.xlu0 %v2488
      %v2490 = vpop.xlane.xlu0 %2489
      %v2491 = vrcp.pop %v2469
      %v2492 = vrcp.pop %v2472
      %v2493 = vrcp.pop %v2475
      %v2494 = vrcp.pop %v2478
      %v2495 = vrcp.pop %v2481
      %v2496 = vrcp.pop %v2484
      %v2497 = vrcp.pop %v2487
      %v2498 = vrcp.pop %v2490
      %v2499 = vmul.f32 %v2420, %v2491
      %v2500 = vmul.f32 %v2422, %v2492
      %v2501 = vmul.f32 %v2424, %v2493
      %v2502 = vmul.f32 %v2426, %v2494
      %v2503 = vmul.f32 %v2428, %v2495
      %v2504 = vmul.f32 %v2430, %v2496
      %v2505 = vmul.f32 %v2432, %v2497
      %v2506 = vmul.f32 %v2434, %v2498
      %v2507 = vsel %vm1439, %v1789, -inf
      %2508 = vmax.xlane.f32.xlu0 %v2507
      %v2509 = vpop.xlane.xlu0 %2508
      %v2510 = vsel %vm1439, %v1792, -inf
      %2511 = vmax.xlane.f32.xlu0 %v2510
      %v2512 = vpop.xlane.xlu0 %2511
      %v2513 = vsel %vm1439, %v1797, -inf
      %2514 = vmax.xlane.f32.xlu0 %v2513
      %v2515 = vpop.xlane.xlu0 %2514
      %v2516 = vsel %vm1439, %v1800, -inf
      %2517 = vmax.xlane.f32.xlu0 %v2516
      %v2518 = vpop.xlane.xlu0 %2517
      %v2519 = vsel %vm1439, %v1805, -inf
      %2520 = vmax.xlane.f32.xlu0 %v2519
      %v2521 = vpop.xlane.xlu0 %2520
      %v2522 = vsel %vm1439, %v1808, -inf
      %2523 = vmax.xlane.f32.xlu0 %v2522
      %v2524 = vpop.xlane.xlu0 %2523
      %v2525 = vsel %vm1439, %v1813, -inf
      %2526 = vmax.xlane.f32.xlu0 %v2525
      %v2527 = vpop.xlane.xlu0 %2526
      %v2528 = vsel %vm1439, %v1816, -inf
      %2529 = vmax.xlane.f32.xlu0 %v2528
      %v2530 = vpop.xlane.xlu0 %2529
      %v2531 = vsub.f32 %v1789, %v2509
      %v2532 = vsub.f32 %v1792, %v2512
      %v2533 = vsub.f32 %v1797, %v2515
      %v2534 = vsub.f32 %v1800, %v2518
      %v2535 = vsub.f32 %v1805, %v2521
      %v2536 = vsub.f32 %v1808, %v2524
      %v2537 = vsub.f32 %v1813, %v2527
      %v2538 = vsub.f32 %v1816, %v2530
      %v2539 = vmul.f32 %v2531, 1.442695
      %v2540 = vpow.pop %v2539
      %v2541 = vmul.f32 %v2532, 1.442695
      %v2542 = vpow.pop %v2541
      %v2543 = vmul.f32 %v2533, 1.442695
      %v2544 = vpow.pop %v2543
      %v2545 = vmul.f32 %v2534, 1.442695
      %v2546 = vpow.pop %v2545
      %v2547 = vmul.f32 %v2535, 1.442695
      %v2548 = vpow.pop %v2547
      %v2549 = vmul.f32 %v2536, 1.442695
      %v2550 = vpow.pop %v2549
      %v2551 = vmul.f32 %v2537, 1.442695
      %v2552 = vpow.pop %v2551
      %v2553 = vmul.f32 %v2538, 1.442695
      %v2554 = vpow.pop %v2553
      %2563 = vrot.lane.b32.xlu0 %v2540, 80
      %v2564 = vpop.permute.xlu0 %2563
      %2565 = vrot.lane.b32.xlu0 %v2542, 80
      %v2566 = vpop.permute.xlu0 %2565
      %2567 = vrot.lane.b32.xlu0 %v2544, 80
      %v2568 = vpop.permute.xlu0 %2567
      %2569 = vrot.lane.b32.xlu0 %v2546, 80
      %v2570 = vpop.permute.xlu0 %2569
      %2571 = vrot.lane.b32.xlu0 %v2548, 80
      %v2572 = vpop.permute.xlu0 %2571
      %2573 = vrot.lane.b32.xlu0 %v2550, 80
      %v2574 = vpop.permute.xlu0 %2573
      %2575 = vrot.lane.b32.xlu0 %v2552, 80
      %v2576 = vpop.permute.xlu0 %2575
      %2577 = vrot.lane.b32.xlu0 %v2554, 80
      %v2578 = vpop.permute.xlu0 %2577
      %v2587 = vsel %vm745, %v2564, 0.0
      %2588 = vadd.xlane.f32.xlu0 %v2587
      %v2589 = vpop.xlane.xlu0 %2588
      %v2590 = vsel %vm745, %v2566, 0.0
      %2591 = vadd.xlane.f32.xlu0 %v2590
      %v2592 = vpop.xlane.xlu0 %2591
      %v2593 = vsel %vm745, %v2568, 0.0
      %2594 = vadd.xlane.f32.xlu0 %v2593
      %v2595 = vpop.xlane.xlu0 %2594
      %v2596 = vsel %vm745, %v2570, 0.0
      %2597 = vadd.xlane.f32.xlu0 %v2596
      %v2598 = vpop.xlane.xlu0 %2597
      %v2599 = vsel %vm745, %v2572, 0.0
      %2600 = vadd.xlane.f32.xlu0 %v2599
      %v2601 = vpop.xlane.xlu0 %2600
      %v2602 = vsel %vm745, %v2574, 0.0
      %2603 = vadd.xlane.f32.xlu0 %v2602
      %v2604 = vpop.xlane.xlu0 %2603
      %v2605 = vsel %vm745, %v2576, 0.0
      %2606 = vadd.xlane.f32.xlu0 %v2605
      %v2607 = vpop.xlane.xlu0 %2606
      %v2608 = vsel %vm745, %v2578, 0.0
      %2609 = vadd.xlane.f32.xlu0 %v2608
      %v2610 = vpop.xlane.xlu0 %2609
      %v2611 = vrcp.pop %v2589
      %v2612 = vrcp.pop %v2592
      %v2613 = vrcp.pop %v2595
      %v2614 = vrcp.pop %v2598
      %v2615 = vrcp.pop %v2601
      %v2616 = vrcp.pop %v2604
      %v2617 = vrcp.pop %v2607
      %v2618 = vrcp.pop %v2610
      %v2619 = vmul.f32 %v2540, %v2611
      %v2620 = vmul.f32 %v2542, %v2612
      %v2621 = vmul.f32 %v2544, %v2613
      %v2622 = vmul.f32 %v2546, %v2614
      %v2623 = vmul.f32 %v2548, %v2615
      %v2624 = vmul.f32 %v2550, %v2616
      %v2625 = vmul.f32 %v2552, %v2617
      %v2626 = vmul.f32 %v2554, %v2618
      %v2627 = vsel %vm1560, %v1789, -inf
      %2628 = vmax.xlane.f32.xlu0 %v2627
      %v2629 = vpop.xlane.xlu0 %2628
      %v2630 = vsel %vm1560, %v1792, -inf
      %2631 = vmax.xlane.f32.xlu0 %v2630
      %v2632 = vpop.xlane.xlu0 %2631
      %v2633 = vsel %vm1560, %v1797, -inf
      %2634 = vmax.xlane.f32.xlu0 %v2633
      %v2635 = vpop.xlane.xlu0 %2634
      %v2636 = vsel %vm1560, %v1800, -inf
      %2637 = vmax.xlane.f32.xlu0 %v2636
      %v2638 = vpop.xlane.xlu0 %2637
      %v2639 = vsel %vm1560, %v1805, -inf
      %2640 = vmax.xlane.f32.xlu0 %v2639
      %v2641 = vpop.xlane.xlu0 %2640
      %v2642 = vsel %vm1560, %v1808, -inf
      %2643 = vmax.xlane.f32.xlu0 %v2642
      %v2644 = vpop.xlane.xlu0 %2643
      %v2645 = vsel %vm1560, %v1813, -inf
      %2646 = vmax.xlane.f32.xlu0 %v2645
      %v2647 = vpop.xlane.xlu0 %2646
      %v2648 = vsel %vm1560, %v1816, -inf
      %2649 = vmax.xlane.f32.xlu0 %v2648
      %v2650 = vpop.xlane.xlu0 %2649
      %v2651 = vsub.f32 %v1789, %v2629
      %v2652 = vsub.f32 %v1792, %v2632
      %v2653 = vsub.f32 %v1797, %v2635
      %v2654 = vsub.f32 %v1800, %v2638
      %v2655 = vsub.f32 %v1805, %v2641
      %v2656 = vsub.f32 %v1808, %v2644
      %v2657 = vsub.f32 %v1813, %v2647
      %v2658 = vsub.f32 %v1816, %v2650
      %v2659 = vmul.f32 %v2651, 1.442695
      %v2660 = vpow.pop %v2659
      %v2661 = vmul.f32 %v2652, 1.442695
      %v2662 = vpow.pop %v2661
      %v2663 = vmul.f32 %v2653, 1.442695
      %v2664 = vpow.pop %v2663
      %v2665 = vmul.f32 %v2654, 1.442695
      %v2666 = vpow.pop %v2665
      %v2667 = vmul.f32 %v2655, 1.442695
      %v2668 = vpow.pop %v2667
      %v2669 = vmul.f32 %v2656, 1.442695
      %v2670 = vpow.pop %v2669
      %v2671 = vmul.f32 %v2657, 1.442695
      %v2672 = vpow.pop %v2671
      %v2673 = vmul.f32 %v2658, 1.442695
      %v2674 = vpow.pop %v2673
      %2683 = vrot.lane.b32.xlu0 %v2660, 72
      %v2684 = vpop.permute.xlu0 %2683
      %2685 = vrot.lane.b32.xlu0 %v2662, 72
      %v2686 = vpop.permute.xlu0 %2685
      %2687 = vrot.lane.b32.xlu0 %v2664, 72
      %v2688 = vpop.permute.xlu0 %2687
      %2689 = vrot.lane.b32.xlu0 %v2666, 72
      %v2690 = vpop.permute.xlu0 %2689
      %2691 = vrot.lane.b32.xlu0 %v2668, 72
      %v2692 = vpop.permute.xlu0 %2691
      %2693 = vrot.lane.b32.xlu0 %v2670, 72
      %v2694 = vpop.permute.xlu0 %2693
      %2695 = vrot.lane.b32.xlu0 %v2672, 72
      %v2696 = vpop.permute.xlu0 %2695
      %2697 = vrot.lane.b32.xlu0 %v2674, 72
      %v2698 = vpop.permute.xlu0 %2697
      %v2707 = vsel %vm745, %v2684, 0.0
      %2708 = vadd.xlane.f32.xlu0 %v2707
      %v2709 = vpop.xlane.xlu0 %2708
      %v2710 = vsel %vm745, %v2686, 0.0
      %2711 = vadd.xlane.f32.xlu0 %v2710
      %v2712 = vpop.xlane.xlu0 %2711
      %v2713 = vsel %vm745, %v2688, 0.0
      %2714 = vadd.xlane.f32.xlu0 %v2713
      %v2715 = vpop.xlane.xlu0 %2714
      %v2716 = vsel %vm745, %v2690, 0.0
      %2717 = vadd.xlane.f32.xlu0 %v2716
      %v2718 = vpop.xlane.xlu0 %2717
      %v2719 = vsel %vm745, %v2692, 0.0
      %2720 = vadd.xlane.f32.xlu0 %v2719
      %v2721 = vpop.xlane.xlu0 %2720
      %v2722 = vsel %vm745, %v2694, 0.0
      %2723 = vadd.xlane.f32.xlu0 %v2722
      %v2724 = vpop.xlane.xlu0 %2723
      %v2725 = vsel %vm745, %v2696, 0.0
      %2726 = vadd.xlane.f32.xlu0 %v2725
      %v2727 = vpop.xlane.xlu0 %2726
      %v2728 = vsel %vm745, %v2698, 0.0
      %2729 = vadd.xlane.f32.xlu0 %v2728
      %v2730 = vpop.xlane.xlu0 %2729
      %v2731 = vrcp.pop %v2709
      %v2732 = vrcp.pop %v2712
      %v2733 = vrcp.pop %v2715
      %v2734 = vrcp.pop %v2718
      %v2735 = vrcp.pop %v2721
      %v2736 = vrcp.pop %v2724
      %v2737 = vrcp.pop %v2727
      %v2738 = vrcp.pop %v2730
      %v2739 = vmul.f32 %v2660, %v2731
      %v2740 = vmul.f32 %v2662, %v2732
      %v2741 = vmul.f32 %v2664, %v2733
      %v2742 = vmul.f32 %v2666, %v2734
      %v2743 = vmul.f32 %v2668, %v2735
      %v2744 = vmul.f32 %v2670, %v2736
      %v2745 = vmul.f32 %v2672, %v2737
      %v2746 = vmul.f32 %v2674, %v2738
      %v2747 = vsel %vm745, %v1899, %v2019
      %v2748 = vsel %vm745, %v1900, %v2020
      %v2749 = vsel %vm745, %v1901, %v2021
      %v2750 = vsel %vm745, %v1902, %v2022
      %v2751 = vsel %vm745, %v1903, %v2023
      %v2752 = vsel %vm745, %v1904, %v2024
      %v2753 = vsel %vm745, %v1905, %v2025
      %v2754 = vsel %vm745, %v1906, %v2026
      %v2755 = vsel %vm391, %v2747, %v2139
      %v2756 = vsel %vm391, %v2748, %v2140
      %v2757 = vsel %vm391, %v2749, %v2141
      %v2758 = vsel %vm391, %v2750, %v2142
      %v2759 = vsel %vm391, %v2751, %v2143
      %v2760 = vsel %vm391, %v2752, %v2144
      %v2761 = vsel %vm391, %v2753, %v2145
      %v2762 = vsel %vm391, %v2754, %v2146
      %v2763 = vsel %vm1697, %v2755, %v2259
      %v2764 = vsel %vm1697, %v2756, %v2260
      %v2765 = vsel %vm1697, %v2757, %v2261
      %v2766 = vsel %vm1697, %v2758, %v2262
      %v2767 = vsel %vm1697, %v2759, %v2263
      %v2768 = vsel %vm1697, %v2760, %v2264
      %v2769 = vsel %vm1697, %v2761, %v2265
      %v2770 = vsel %vm1697, %v2762, %v2266
      %v2771 = vsel %vm1706, %v2763, %v2379
      %v2772 = vsel %vm1706, %v2764, %v2380
      %v2773 = vsel %vm1706, %v2765, %v2381
      %v2774 = vsel %vm1706, %v2766, %v2382
      %v2775 = vsel %vm1706, %v2767, %v2383
      %v2776 = vsel %vm1706, %v2768, %v2384
      %v2777 = vsel %vm1706, %v2769, %v2385
      %v2778 = vsel %vm1706, %v2770, %v2386
      %v2779 = vsel %vm1715, %v2771, %v2499
      %v2780 = vsel %vm1715, %v2772, %v2500
      %v2781 = vsel %vm1715, %v2773, %v2501
      %v2782 = vsel %vm1715, %v2774, %v2502
      %v2783 = vsel %vm1715, %v2775, %v2503
      %v2784 = vsel %vm1715, %v2776, %v2504
      %v2785 = vsel %vm1715, %v2777, %v2505
      %v2786 = vsel %vm1715, %v2778, %v2506
      %v2787 = vsel %vm1724, %v2779, %v2619
      %v2788 = vsel %vm1724, %v2780, %v2620
      %v2789 = vsel %vm1724, %v2781, %v2621
      %v2790 = vsel %vm1724, %v2782, %v2622
      %v2791 = vsel %vm1724, %v2783, %v2623
      %v2792 = vsel %vm1724, %v2784, %v2624
      %v2793 = vsel %vm1724, %v2785, %v2625
      %v2794 = vsel %vm1724, %v2786, %v2626
      %v2795 = vsel %vm1733, %v2787, %v2739
      %v2796 = vsel %vm1733, %v2788, %v2740
      %v2797 = vsel %vm1733, %v2789, %v2741
      %v2798 = vsel %vm1733, %v2790, %v2742
      %v2799 = vsel %vm1733, %v2791, %v2743
      %v2800 = vsel %vm1733, %v2792, %v2744
      %v2801 = vsel %vm1733, %v2793, %v2745
      %v2802 = vsel %vm1733, %v2794, %v2746
      %v2804 = vsel %vm655, %v639, 0
      %v2807 = vsel %vm655, %v640, 0
      %v2810 = vsel %vm655, %v641, 0
      %v2813 = vsel %vm655, %v642, 0
      %2815 = vmatprep.subr.bf16.mxu0 0
      %2816 = vmatpush1.bf16.xpose.msra.mxu0 %v669
      %2817 = vmatprep.subr.bf16.mxu0 0
      %2818 = vmatpush1.bf16.xpose.msra.mxu0 %v672
      %2819 = vmatprep.subr.bf16.mxu0 0
      %2820 = vmatpush1.bf16.xpose.msra.mxu0 %v675
      %2821 = vmatprep.subr.bf16.mxu0 0
      %2822 = vmatpush1.bf16.xpose.msra.mxu0 %v678
      %2823 = vmatprep.subr.bf16.mxu0 0
      %2824 = vmatpush1.bf16.xpose.msra.mxu0 0
      %2825 = vmatprep.subr.bf16.mxu0 0
      %2826 = vmatpush1.bf16.xpose.msra.mxu0 0
      %2827 = vmatprep.subr.bf16.mxu0 0
      %2828 = vmatpush1.bf16.xpose.msra.mxu0 0
      %2829 = vmatprep.subr.bf16.mxu0 0
      %2830 = vmatpush1.bf16.xpose.msra.mxu0 0
      %2831 = vmatprep.subr.bf16.mxu0 0
      %2832 = vmatpush1.bf16.xpose.msra.mxu0 0
      %2833 = vmatprep.subr.bf16.mxu0 0
      %2834 = vmatpush1.bf16.xpose.msra.mxu0 0
      %2835 = vmatprep.subr.bf16.mxu0 0
      %2836 = vmatpush1.bf16.xpose.msra.mxu0 0
      %2837 = vmatprep.subr.bf16.mxu0 0
      %2838 = vmatpush1.bf16.xpose.msra.mxu0 0
      %2839 = vmatprep.subr.bf16.mxu0 0
      %2840 = vmatpush1.bf16.xpose.msra.mxu0 0
      %2841 = vmatprep.subr.bf16.mxu0 0
      %2842 = vmatpush1.bf16.xpose.msra.mxu0 0
      %2843 = vmatprep.subr.bf16.mxu0 0
      %2844 = vmatpush1.bf16.xpose.msra.mxu0 0
      %2845 = vmatprep.subr.bf16.mxu0 0
      %2846 = vmatpush1.bf16.xpose.msra.mxu0 0
      %2847 = vmatprep.mubr.bf16.mxu0 0
      %2848 = vmatmul.mubr.bf16.gmra.mrb[0].mxu0 %v2804
      %v2849 = vpop.f32.mrb[0].mxu0
      %v2850 = vadd.f32 0.0, %v2849
      %v2851 = vpop.f32.mrb[0].mxu0
      %v2852 = vpop.f32.mrb[0].mxu0
      %v2853 = vadd.f32 0.0, %v2852
      %v2854 = vpop.f32.mrb[0].mxu0
      %2855 = vmatprep.mubr.bf16.mxu0 0
      %2856 = vmatmul.mubr.bf16.gmra.mrb[0].mxu0 %v2807
      %v2857 = vpop.f32.mrb[0].mxu0
      %v2858 = vadd.f32 0.0, %v2857
      %v2859 = vpop.f32.mrb[0].mxu0
      %v2860 = vpop.f32.mrb[0].mxu0
      %v2861 = vadd.f32 0.0, %v2860
      %v2862 = vpop.f32.mrb[0].mxu0
      %2863 = vmatprep.mubr.bf16.mxu0 0
      %2864 = vmatmul.mubr.bf16.gmra.mrb[0].mxu0 %v2810
      %v2865 = vpop.f32.mrb[0].mxu0
      %v2866 = vadd.f32 0.0, %v2865
      %v2867 = vpop.f32.mrb[0].mxu0
      %v2868 = vpop.f32.mrb[0].mxu0
      %v2869 = vadd.f32 0.0, %v2868
      %v2870 = vpop.f32.mrb[0].mxu0
      %2871 = vmatprep.mubr.bf16.mxu0 0
      %2872 = vmatmul.mubr.bf16.gmra.mrb[0].mxu0 %v2813
      %v2873 = vpop.f32.mrb[0].mxu0
      %v2874 = vadd.f32 0.0, %v2873
      %v2875 = vpop.f32.mrb[0].mxu0
      %v2876 = vpop.f32.mrb[0].mxu0
      %v2877 = vadd.f32 0.0, %v2876
      %v2878 = vpop.f32.mrb[0].mxu0
      %2879 = vdwg.mxu0
      %v2880 = vsel %vm745, %v2850, -inf
      %2881 = vmax.xlane.f32.xlu0 %v2880
      %v2882 = vpop.xlane.xlu0 %2881
      %v2883 = vsel %vm745, %v2853, -inf
      %2884 = vmax.xlane.f32.xlu0 %v2883
      %v2885 = vpop.xlane.xlu0 %2884
      %v2886 = vsel %vm745, %v2858, -inf
      %2887 = vmax.xlane.f32.xlu0 %v2886
      %v2888 = vpop.xlane.xlu0 %2887
      %v2889 = vsel %vm745, %v2861, -inf
      %2890 = vmax.xlane.f32.xlu0 %v2889
      %v2891 = vpop.xlane.xlu0 %2890
      %v2892 = vsel %vm745, %v2866, -inf
      %2893 = vmax.xlane.f32.xlu0 %v2892
      %v2894 = vpop.xlane.xlu0 %2893
      %v2895 = vsel %vm745, %v2869, -inf
      %2896 = vmax.xlane.f32.xlu0 %v2895
      %v2897 = vpop.xlane.xlu0 %2896
      %v2898 = vsel %vm745, %v2874, -inf
      %2899 = vmax.xlane.f32.xlu0 %v2898
      %v2900 = vpop.xlane.xlu0 %2899
      %v2901 = vsel %vm745, %v2877, -inf
      %2902 = vmax.xlane.f32.xlu0 %v2901
      %v2903 = vpop.xlane.xlu0 %2902
      %v2904 = vsub.f32 %v2850, %v2882
      %v2905 = vsub.f32 %v2853, %v2885
      %v2906 = vsub.f32 %v2858, %v2888
      %v2907 = vsub.f32 %v2861, %v2891
      %v2908 = vsub.f32 %v2866, %v2894
      %v2909 = vsub.f32 %v2869, %v2897
      %v2910 = vsub.f32 %v2874, %v2900
      %v2911 = vsub.f32 %v2877, %v2903
      %v2912 = vmul.f32 %v2904, 1.442695
      %v2913 = vpow.pop %v2912
      %v2914 = vmul.f32 %v2905, 1.442695
      %v2915 = vpow.pop %v2914
      %v2916 = vmul.f32 %v2906, 1.442695
      %v2917 = vpow.pop %v2916
      %v2918 = vmul.f32 %v2907, 1.442695
      %v2919 = vpow.pop %v2918
      %v2920 = vmul.f32 %v2908, 1.442695
      %v2921 = vpow.pop %v2920
      %v2922 = vmul.f32 %v2909, 1.442695
      %v2923 = vpow.pop %v2922
      %v2924 = vmul.f32 %v2910, 1.442695
      %v2925 = vpow.pop %v2924
      %v2926 = vmul.f32 %v2911, 1.442695
      %v2927 = vpow.pop %v2926
      %v2928 = vsel %vm745, %v2913, 0.0
      %2929 = vadd.xlane.f32.xlu0 %v2928
      %v2930 = vpop.xlane.xlu0 %2929
      %v2931 = vsel %vm745, %v2915, 0.0
      %2932 = vadd.xlane.f32.xlu0 %v2931
      %v2933 = vpop.xlane.xlu0 %2932
      %v2934 = vsel %vm745, %v2917, 0.0
      %2935 = vadd.xlane.f32.xlu0 %v2934
      %v2936 = vpop.xlane.xlu0 %2935
      %v2937 = vsel %vm745, %v2919, 0.0
      %2938 = vadd.xlane.f32.xlu0 %v2937
      %v2939 = vpop.xlane.xlu0 %2938
      %v2940 = vsel %vm745, %v2921, 0.0
      %2941 = vadd.xlane.f32.xlu0 %v2940
      %v2942 = vpop.xlane.xlu0 %2941
      %v2943 = vsel %vm745, %v2923, 0.0
      %2944 = vadd.xlane.f32.xlu0 %v2943
      %v2945 = vpop.xlane.xlu0 %2944
      %v2946 = vsel %vm745, %v2925, 0.0
      %2947 = vadd.xlane.f32.xlu0 %v2946
      %v2948 = vpop.xlane.xlu0 %2947
      %v2949 = vsel %vm745, %v2927, 0.0
      %2950 = vadd.xlane.f32.xlu0 %v2949
      %v2951 = vpop.xlane.xlu0 %2950
      %v2952 = vsel %vm834, %v2850, -inf
      %2953 = vmax.xlane.f32.xlu0 %v2952
      %v2954 = vpop.xlane.xlu0 %2953
      %v2955 = vsel %vm834, %v2853, -inf
      %2956 = vmax.xlane.f32.xlu0 %v2955
      %v2957 = vpop.xlane.xlu0 %2956
      %v2958 = vsel %vm834, %v2858, -inf
      %2959 = vmax.xlane.f32.xlu0 %v2958
      %v2960 = vpop.xlane.xlu0 %2959
      %v2961 = vsel %vm834, %v2861, -inf
      %2962 = vmax.xlane.f32.xlu0 %v2961
      %v2963 = vpop.xlane.xlu0 %2962
      %v2964 = vsel %vm834, %v2866, -inf
      %2965 = vmax.xlane.f32.xlu0 %v2964
      %v2966 = vpop.xlane.xlu0 %2965
      %v2967 = vsel %vm834, %v2869, -inf
      %2968 = vmax.xlane.f32.xlu0 %v2967
      %v2969 = vpop.xlane.xlu0 %2968
      %v2970 = vsel %vm834, %v2874, -inf
      %2971 = vmax.xlane.f32.xlu0 %v2970
      %v2972 = vpop.xlane.xlu0 %2971
      %v2973 = vsel %vm834, %v2877, -inf
      %2974 = vmax.xlane.f32.xlu0 %v2973
      %v2975 = vpop.xlane.xlu0 %2974
      %v2976 = vsub.f32 %v2850, %v2954
      %v2977 = vsub.f32 %v2853, %v2957
      %v2978 = vsub.f32 %v2858, %v2960
      %v2979 = vsub.f32 %v2861, %v2963
      %v2980 = vsub.f32 %v2866, %v2966
      %v2981 = vsub.f32 %v2869, %v2969
      %v2982 = vsub.f32 %v2874, %v2972
      %v2983 = vsub.f32 %v2877, %v2975
      %v2984 = vmul.f32 %v2976, 1.442695
      %v2985 = vpow.pop %v2984
      %v2986 = vmul.f32 %v2977, 1.442695
      %v2987 = vpow.pop %v2986
      %v2988 = vmul.f32 %v2978, 1.442695
      %v2989 = vpow.pop %v2988
      %v2990 = vmul.f32 %v2979, 1.442695
      %v2991 = vpow.pop %v2990
      %v2992 = vmul.f32 %v2980, 1.442695
      %v2993 = vpow.pop %v2992
      %v2994 = vmul.f32 %v2981, 1.442695
      %v2995 = vpow.pop %v2994
      %v2996 = vmul.f32 %v2982, 1.442695
      %v2997 = vpow.pop %v2996
      %v2998 = vmul.f32 %v2983, 1.442695
      %v2999 = vpow.pop %v2998
      %3008 = vrot.lane.b32.xlu0 %v2985, 120
      %v3009 = vpop.permute.xlu0 %3008
      %3010 = vrot.lane.b32.xlu0 %v2987, 120
      %v3011 = vpop.permute.xlu0 %3010
      %3012 = vrot.lane.b32.xlu0 %v2989, 120
      %v3013 = vpop.permute.xlu0 %3012
      %3014 = vrot.lane.b32.xlu0 %v2991, 120
      %v3015 = vpop.permute.xlu0 %3014
      %3016 = vrot.lane.b32.xlu0 %v2993, 120
      %v3017 = vpop.permute.xlu0 %3016
      %3018 = vrot.lane.b32.xlu0 %v2995, 120
      %v3019 = vpop.permute.xlu0 %3018
      %3020 = vrot.lane.b32.xlu0 %v2997, 120
      %v3021 = vpop.permute.xlu0 %3020
      %3022 = vrot.lane.b32.xlu0 %v2999, 120
      %v3023 = vpop.permute.xlu0 %3022
      %v3032 = vsel %vm745, %v3009, 0.0
      %3033 = vadd.xlane.f32.xlu0 %v3032
      %v3034 = vpop.xlane.xlu0 %3033
      %v3035 = vsel %vm745, %v3011, 0.0
      %3036 = vadd.xlane.f32.xlu0 %v3035
      %v3037 = vpop.xlane.xlu0 %3036
      %v3038 = vsel %vm745, %v3013, 0.0
      %3039 = vadd.xlane.f32.xlu0 %v3038
      %v3040 = vpop.xlane.xlu0 %3039
      %v3041 = vsel %vm745, %v3015, 0.0
      %3042 = vadd.xlane.f32.xlu0 %v3041
      %v3043 = vpop.xlane.xlu0 %3042
      %v3044 = vsel %vm745, %v3017, 0.0
      %3045 = vadd.xlane.f32.xlu0 %v3044
      %v3046 = vpop.xlane.xlu0 %3045
      %v3047 = vsel %vm745, %v3019, 0.0
      %3048 = vadd.xlane.f32.xlu0 %v3047
      %v3049 = vpop.xlane.xlu0 %3048
      %v3050 = vsel %vm745, %v3021, 0.0
      %3051 = vadd.xlane.f32.xlu0 %v3050
      %v3052 = vpop.xlane.xlu0 %3051
      %v3053 = vsel %vm745, %v3023, 0.0
      %3054 = vadd.xlane.f32.xlu0 %v3053
      %v3055 = vpop.xlane.xlu0 %3054
      %v3056 = vsel %vm955, %v2850, -inf
      %3057 = vmax.xlane.f32.xlu0 %v3056
      %v3058 = vpop.xlane.xlu0 %3057
      %v3059 = vsel %vm955, %v2853, -inf
      %3060 = vmax.xlane.f32.xlu0 %v3059
      %v3061 = vpop.xlane.xlu0 %3060
      %v3062 = vsel %vm955, %v2858, -inf
      %3063 = vmax.xlane.f32.xlu0 %v3062
      %v3064 = vpop.xlane.xlu0 %3063
      %v3065 = vsel %vm955, %v2861, -inf
      %3066 = vmax.xlane.f32.xlu0 %v3065
      %v3067 = vpop.xlane.xlu0 %3066
      %v3068 = vsel %vm955, %v2866, -inf
      %3069 = vmax.xlane.f32.xlu0 %v3068
      %v3070 = vpop.xlane.xlu0 %3069
      %v3071 = vsel %vm955, %v2869, -inf
      %3072 = vmax.xlane.f32.xlu0 %v3071
      %v3073 = vpop.xlane.xlu0 %3072
      %v3074 = vsel %vm955, %v2874, -inf
      %3075 = vmax.xlane.f32.xlu0 %v3074
      %v3076 = vpop.xlane.xlu0 %3075
      %v3077 = vsel %vm955, %v2877, -inf
      %3078 = vmax.xlane.f32.xlu0 %v3077
      %v3079 = vpop.xlane.xlu0 %3078
      %v3080 = vsub.f32 %v2850, %v3058
      %v3081 = vsub.f32 %v2853, %v3061
      %v3082 = vsub.f32 %v2858, %v3064
      %v3083 = vsub.f32 %v2861, %v3067
      %v3084 = vsub.f32 %v2866, %v3070
      %v3085 = vsub.f32 %v2869, %v3073
      %v3086 = vsub.f32 %v2874, %v3076
      %v3087 = vsub.f32 %v2877, %v3079
      %v3088 = vmul.f32 %v3080, 1.442695
      %v3089 = vpow.pop %v3088
      %v3090 = vmul.f32 %v3081, 1.442695
      %v3091 = vpow.pop %v3090
      %v3092 = vmul.f32 %v3082, 1.442695
      %v3093 = vpow.pop %v3092
      %v3094 = vmul.f32 %v3083, 1.442695
      %v3095 = vpow.pop %v3094
      %v3096 = vmul.f32 %v3084, 1.442695
      %v3097 = vpow.pop %v3096
      %v3098 = vmul.f32 %v3085, 1.442695
      %v3099 = vpow.pop %v3098
      %v3100 = vmul.f32 %v3086, 1.442695
      %v3101 = vpow.pop %v3100
      %v3102 = vmul.f32 %v3087, 1.442695
      %v3103 = vpow.pop %v3102
      %3112 = vrot.lane.b32.xlu0 %v3089, 112
      %v3113 = vpop.permute.xlu0 %3112
      %3114 = vrot.lane.b32.xlu0 %v3091, 112
      %v3115 = vpop.permute.xlu0 %3114
      %3116 = vrot.lane.b32.xlu0 %v3093, 112
      %v3117 = vpop.permute.xlu0 %3116
      %3118 = vrot.lane.b32.xlu0 %v3095, 112
      %v3119 = vpop.permute.xlu0 %3118
      %3120 = vrot.lane.b32.xlu0 %v3097, 112
      %v3121 = vpop.permute.xlu0 %3120
      %3122 = vrot.lane.b32.xlu0 %v3099, 112
      %v3123 = vpop.permute.xlu0 %3122
      %3124 = vrot.lane.b32.xlu0 %v3101, 112
      %v3125 = vpop.permute.xlu0 %3124
      %3126 = vrot.lane.b32.xlu0 %v3103, 112
      %v3127 = vpop.permute.xlu0 %3126
      %v3136 = vsel %vm745, %v3113, 0.0
      %3137 = vadd.xlane.f32.xlu0 %v3136
      %v3138 = vpop.xlane.xlu0 %3137
      %v3139 = vsel %vm745, %v3115, 0.0
      %3140 = vadd.xlane.f32.xlu0 %v3139
      %v3141 = vpop.xlane.xlu0 %3140
      %v3142 = vsel %vm745, %v3117, 0.0
      %3143 = vadd.xlane.f32.xlu0 %v3142
      %v3144 = vpop.xlane.xlu0 %3143
      %v3145 = vsel %vm745, %v3119, 0.0
      %3146 = vadd.xlane.f32.xlu0 %v3145
      %v3147 = vpop.xlane.xlu0 %3146
      %v3148 = vsel %vm745, %v3121, 0.0
      %3149 = vadd.xlane.f32.xlu0 %v3148
      %v3150 = vpop.xlane.xlu0 %3149
      %v3151 = vsel %vm745, %v3123, 0.0
      %3152 = vadd.xlane.f32.xlu0 %v3151
      %v3153 = vpop.xlane.xlu0 %3152
      %v3154 = vsel %vm745, %v3125, 0.0
      %3155 = vadd.xlane.f32.xlu0 %v3154
      %v3156 = vpop.xlane.xlu0 %3155
      %v3157 = vsel %vm745, %v3127, 0.0
      %3158 = vadd.xlane.f32.xlu0 %v3157
      %v3159 = vpop.xlane.xlu0 %3158
      %v3160 = vsel %vm1076, %v2850, -inf
      %3161 = vmax.xlane.f32.xlu0 %v3160
      %v3162 = vpop.xlane.xlu0 %3161
      %v3163 = vsel %vm1076, %v2853, -inf
      %3164 = vmax.xlane.f32.xlu0 %v3163
      %v3165 = vpop.xlane.xlu0 %3164
      %v3166 = vsel %vm1076, %v2858, -inf
      %3167 = vmax.xlane.f32.xlu0 %v3166
      %v3168 = vpop.xlane.xlu0 %3167
      %v3169 = vsel %vm1076, %v2861, -inf
      %3170 = vmax.xlane.f32.xlu0 %v3169
      %v3171 = vpop.xlane.xlu0 %3170
      %v3172 = vsel %vm1076, %v2866, -inf
      %3173 = vmax.xlane.f32.xlu0 %v3172
      %v3174 = vpop.xlane.xlu0 %3173
      %v3175 = vsel %vm1076, %v2869, -inf
      %3176 = vmax.xlane.f32.xlu0 %v3175
      %v3177 = vpop.xlane.xlu0 %3176
      %v3178 = vsel %vm1076, %v2874, -inf
      %3179 = vmax.xlane.f32.xlu0 %v3178
      %v3180 = vpop.xlane.xlu0 %3179
      %v3181 = vsel %vm1076, %v2877, -inf
      %3182 = vmax.xlane.f32.xlu0 %v3181
      %v3183 = vpop.xlane.xlu0 %3182
      %v3184 = vsub.f32 %v2850, %v3162
      %v3185 = vsub.f32 %v2853, %v3165
      %v3186 = vsub.f32 %v2858, %v3168
      %v3187 = vsub.f32 %v2861, %v3171
      %v3188 = vsub.f32 %v2866, %v3174
      %v3189 = vsub.f32 %v2869, %v3177
      %v3190 = vsub.f32 %v2874, %v3180
      %v3191 = vsub.f32 %v2877, %v3183
      %v3192 = vmul.f32 %v3184, 1.442695
      %v3193 = vpow.pop %v3192
      %v3194 = vmul.f32 %v3185, 1.442695
      %v3195 = vpow.pop %v3194
      %v3196 = vmul.f32 %v3186, 1.442695
      %v3197 = vpow.pop %v3196
      %v3198 = vmul.f32 %v3187, 1.442695
      %v3199 = vpow.pop %v3198
      %v3200 = vmul.f32 %v3188, 1.442695
      %v3201 = vpow.pop %v3200
      %v3202 = vmul.f32 %v3189, 1.442695
      %v3203 = vpow.pop %v3202
      %v3204 = vmul.f32 %v3190, 1.442695
      %v3205 = vpow.pop %v3204
      %v3206 = vmul.f32 %v3191, 1.442695
      %v3207 = vpow.pop %v3206
      %3216 = vrot.lane.b32.xlu0 %v3193, 104
      %v3217 = vpop.permute.xlu0 %3216
      %3218 = vrot.lane.b32.xlu0 %v3195, 104
      %v3219 = vpop.permute.xlu0 %3218
      %3220 = vrot.lane.b32.xlu0 %v3197, 104
      %v3221 = vpop.permute.xlu0 %3220
      %3222 = vrot.lane.b32.xlu0 %v3199, 104
      %v3223 = vpop.permute.xlu0 %3222
      %3224 = vrot.lane.b32.xlu0 %v3201, 104
      %v3225 = vpop.permute.xlu0 %3224
      %3226 = vrot.lane.b32.xlu0 %v3203, 104
      %v3227 = vpop.permute.xlu0 %3226
      %3228 = vrot.lane.b32.xlu0 %v3205, 104
      %v3229 = vpop.permute.xlu0 %3228
      %3230 = vrot.lane.b32.xlu0 %v3207, 104
      %v3231 = vpop.permute.xlu0 %3230
      %v3240 = vsel %vm745, %v3217, 0.0
      %3241 = vadd.xlane.f32.xlu0 %v3240
      %v3242 = vpop.xlane.xlu0 %3241
      %v3243 = vsel %vm745, %v3219, 0.0
      %3244 = vadd.xlane.f32.xlu0 %v3243
      %v3245 = vpop.xlane.xlu0 %3244
      %v3246 = vsel %vm745, %v3221, 0.0
      %3247 = vadd.xlane.f32.xlu0 %v3246
      %v3248 = vpop.xlane.xlu0 %3247
      %v3249 = vsel %vm745, %v3223, 0.0
      %3250 = vadd.xlane.f32.xlu0 %v3249
      %v3251 = vpop.xlane.xlu0 %3250
      %v3252 = vsel %vm745, %v3225, 0.0
      %3253 = vadd.xlane.f32.xlu0 %v3252
      %v3254 = vpop.xlane.xlu0 %3253
      %v3255 = vsel %vm745, %v3227, 0.0
      %3256 = vadd.xlane.f32.xlu0 %v3255
      %v3257 = vpop.xlane.xlu0 %3256
      %v3258 = vsel %vm745, %v3229, 0.0
      %3259 = vadd.xlane.f32.xlu0 %v3258
      %v3260 = vpop.xlane.xlu0 %3259
      %v3261 = vsel %vm745, %v3231, 0.0
      %3262 = vadd.xlane.f32.xlu0 %v3261
      %v3263 = vpop.xlane.xlu0 %3262
      %v3264 = vsel %vm1197, %v2850, -inf
      %3265 = vmax.xlane.f32.xlu0 %v3264
      %v3266 = vpop.xlane.xlu0 %3265
      %v3267 = vsel %vm1197, %v2853, -inf
      %3268 = vmax.xlane.f32.xlu0 %v3267
      %v3269 = vpop.xlane.xlu0 %3268
      %v3270 = vsel %vm1197, %v2858, -inf
      %3271 = vmax.xlane.f32.xlu0 %v3270
      %v3272 = vpop.xlane.xlu0 %3271
      %v3273 = vsel %vm1197, %v2861, -inf
      %3274 = vmax.xlane.f32.xlu0 %v3273
      %v3275 = vpop.xlane.xlu0 %3274
      %v3276 = vsel %vm1197, %v2866, -inf
      %3277 = vmax.xlane.f32.xlu0 %v3276
      %v3278 = vpop.xlane.xlu0 %3277
      %v3279 = vsel %vm1197, %v2869, -inf
      %3280 = vmax.xlane.f32.xlu0 %v3279
      %v3281 = vpop.xlane.xlu0 %3280
      %v3282 = vsel %vm1197, %v2874, -inf
      %3283 = vmax.xlane.f32.xlu0 %v3282
      %v3284 = vpop.xlane.xlu0 %3283
      %v3285 = vsel %vm1197, %v2877, -inf
      %3286 = vmax.xlane.f32.xlu0 %v3285
      %v3287 = vpop.xlane.xlu0 %3286
      %v3288 = vsub.f32 %v2850, %v3266
      %v3289 = vsub.f32 %v2853, %v3269
      %v3290 = vsub.f32 %v2858, %v3272
      %v3291 = vsub.f32 %v2861, %v3275
      %v3292 = vsub.f32 %v2866, %v3278
      %v3293 = vsub.f32 %v2869, %v3281
      %v3294 = vsub.f32 %v2874, %v3284
      %v3295 = vsub.f32 %v2877, %v3287
      %v3296 = vmul.f32 %v3288, 1.442695
      %v3297 = vpow.pop %v3296
      %v3298 = vmul.f32 %v3289, 1.442695
      %v3299 = vpow.pop %v3298
      %v3300 = vmul.f32 %v3290, 1.442695
      %v3301 = vpow.pop %v3300
      %v3302 = vmul.f32 %v3291, 1.442695
      %v3303 = vpow.pop %v3302
      %v3304 = vmul.f32 %v3292, 1.442695
      %v3305 = vpow.pop %v3304
      %v3306 = vmul.f32 %v3293, 1.442695
      %v3307 = vpow.pop %v3306
      %v3308 = vmul.f32 %v3294, 1.442695
      %v3309 = vpow.pop %v3308
      %v3310 = vmul.f32 %v3295, 1.442695
      %v3311 = vpow.pop %v3310
      %3320 = vrot.lane.b32.xlu0 %v3297, 96
      %v3321 = vpop.permute.xlu0 %3320
      %3322 = vrot.lane.b32.xlu0 %v3299, 96
      %v3323 = vpop.permute.xlu0 %3322
      %3324 = vrot.lane.b32.xlu0 %v3301, 96
      %v3325 = vpop.permute.xlu0 %3324
      %3326 = vrot.lane.b32.xlu0 %v3303, 96
      %v3327 = vpop.permute.xlu0 %3326
      %3328 = vrot.lane.b32.xlu0 %v3305, 96
      %v3329 = vpop.permute.xlu0 %3328
      %3330 = vrot.lane.b32.xlu0 %v3307, 96
      %v3331 = vpop.permute.xlu0 %3330
      %3332 = vrot.lane.b32.xlu0 %v3309, 96
      %v3333 = vpop.permute.xlu0 %3332
      %3334 = vrot.lane.b32.xlu0 %v3311, 96
      %v3335 = vpop.permute.xlu0 %3334
      %v3344 = vsel %vm745, %v3321, 0.0
      %3345 = vadd.xlane.f32.xlu0 %v3344
      %v3346 = vpop.xlane.xlu0 %3345
      %v3347 = vsel %vm745, %v3323, 0.0
      %3348 = vadd.xlane.f32.xlu0 %v3347
      %v3349 = vpop.xlane.xlu0 %3348
      %v3350 = vsel %vm745, %v3325, 0.0
      %3351 = vadd.xlane.f32.xlu0 %v3350
      %v3352 = vpop.xlane.xlu0 %3351
      %v3353 = vsel %vm745, %v3327, 0.0
      %3354 = vadd.xlane.f32.xlu0 %v3353
      %v3355 = vpop.xlane.xlu0 %3354
      %v3356 = vsel %vm745, %v3329, 0.0
      %3357 = vadd.xlane.f32.xlu0 %v3356
      %v3358 = vpop.xlane.xlu0 %3357
      %v3359 = vsel %vm745, %v3331, 0.0
      %3360 = vadd.xlane.f32.xlu0 %v3359
      %v3361 = vpop.xlane.xlu0 %3360
      %v3362 = vsel %vm745, %v3333, 0.0
      %3363 = vadd.xlane.f32.xlu0 %v3362
      %v3364 = vpop.xlane.xlu0 %3363
      %v3365 = vsel %vm745, %v3335, 0.0
      %3366 = vadd.xlane.f32.xlu0 %v3365
      %v3367 = vpop.xlane.xlu0 %3366
      %v3368 = vsel %vm1318, %v2850, -inf
      %3369 = vmax.xlane.f32.xlu0 %v3368
      %v3370 = vpop.xlane.xlu0 %3369
      %v3371 = vsel %vm1318, %v2853, -inf
      %3372 = vmax.xlane.f32.xlu0 %v3371
      %v3373 = vpop.xlane.xlu0 %3372
      %v3374 = vsel %vm1318, %v2858, -inf
      %3375 = vmax.xlane.f32.xlu0 %v3374
      %v3376 = vpop.xlane.xlu0 %3375
      %v3377 = vsel %vm1318, %v2861, -inf
      %3378 = vmax.xlane.f32.xlu0 %v3377
      %v3379 = vpop.xlane.xlu0 %3378
      %v3380 = vsel %vm1318, %v2866, -inf
      %3381 = vmax.xlane.f32.xlu0 %v3380
      %v3382 = vpop.xlane.xlu0 %3381
      %v3383 = vsel %vm1318, %v2869, -inf
      %3384 = vmax.xlane.f32.xlu0 %v3383
      %v3385 = vpop.xlane.xlu0 %3384
      %v3386 = vsel %vm1318, %v2874, -inf
      %3387 = vmax.xlane.f32.xlu0 %v3386
      %v3388 = vpop.xlane.xlu0 %3387
      %v3389 = vsel %vm1318, %v2877, -inf
      %3390 = vmax.xlane.f32.xlu0 %v3389
      %v3391 = vpop.xlane.xlu0 %3390
      %v3392 = vsub.f32 %v2850, %v3370
      %v3393 = vsub.f32 %v2853, %v3373
      %v3394 = vsub.f32 %v2858, %v3376
      %v3395 = vsub.f32 %v2861, %v3379
      %v3396 = vsub.f32 %v2866, %v3382
      %v3397 = vsub.f32 %v2869, %v3385
      %v3398 = vsub.f32 %v2874, %v3388
      %v3399 = vsub.f32 %v2877, %v3391
      %v3400 = vmul.f32 %v3392, 1.442695
      %v3401 = vpow.pop %v3400
      %v3402 = vmul.f32 %v3393, 1.442695
      %v3403 = vpow.pop %v3402
      %v3404 = vmul.f32 %v3394, 1.442695
      %v3405 = vpow.pop %v3404
      %v3406 = vmul.f32 %v3395, 1.442695
      %v3407 = vpow.pop %v3406
      %v3408 = vmul.f32 %v3396, 1.442695
      %v3409 = vpow.pop %v3408
      %v3410 = vmul.f32 %v3397, 1.442695
      %v3411 = vpow.pop %v3410
      %v3412 = vmul.f32 %v3398, 1.442695
      %v3413 = vpow.pop %v3412
      %v3414 = vmul.f32 %v3399, 1.442695
      %v3415 = vpow.pop %v3414
      %3424 = vrot.lane.b32.xlu0 %v3401, 88
      %v3425 = vpop.permute.xlu0 %3424
      %3426 = vrot.lane.b32.xlu0 %v3403, 88
      %v3427 = vpop.permute.xlu0 %3426
      %3428 = vrot.lane.b32.xlu0 %v3405, 88
      %v3429 = vpop.permute.xlu0 %3428
      %3430 = vrot.lane.b32.xlu0 %v3407, 88
      %v3431 = vpop.permute.xlu0 %3430
      %3432 = vrot.lane.b32.xlu0 %v3409, 88
      %v3433 = vpop.permute.xlu0 %3432
      %3434 = vrot.lane.b32.xlu0 %v3411, 88
      %v3435 = vpop.permute.xlu0 %3434
      %3436 = vrot.lane.b32.xlu0 %v3413, 88
      %v3437 = vpop.permute.xlu0 %3436
      %3438 = vrot.lane.b32.xlu0 %v3415, 88
      %v3439 = vpop.permute.xlu0 %3438
      %v3448 = vsel %vm745, %v3425, 0.0
      %3449 = vadd.xlane.f32.xlu0 %v3448
      %v3450 = vpop.xlane.xlu0 %3449
      %v3451 = vsel %vm745, %v3427, 0.0
      %3452 = vadd.xlane.f32.xlu0 %v3451
      %v3453 = vpop.xlane.xlu0 %3452
      %v3454 = vsel %vm745, %v3429, 0.0
      %3455 = vadd.xlane.f32.xlu0 %v3454
      %v3456 = vpop.xlane.xlu0 %3455
      %v3457 = vsel %vm745, %v3431, 0.0
      %3458 = vadd.xlane.f32.xlu0 %v3457
      %v3459 = vpop.xlane.xlu0 %3458
      %v3460 = vsel %vm745, %v3433, 0.0
      %3461 = vadd.xlane.f32.xlu0 %v3460
      %v3462 = vpop.xlane.xlu0 %3461
      %v3463 = vsel %vm745, %v3435, 0.0
      %3464 = vadd.xlane.f32.xlu0 %v3463
      %v3465 = vpop.xlane.xlu0 %3464
      %v3466 = vsel %vm745, %v3437, 0.0
      %3467 = vadd.xlane.f32.xlu0 %v3466
      %v3468 = vpop.xlane.xlu0 %3467
      %v3469 = vsel %vm745, %v3439, 0.0
      %3470 = vadd.xlane.f32.xlu0 %v3469
      %v3471 = vpop.xlane.xlu0 %3470
      %v3472 = vsel %vm1439, %v2850, -inf
      %3473 = vmax.xlane.f32.xlu0 %v3472
      %v3474 = vpop.xlane.xlu0 %3473
      %v3475 = vsel %vm1439, %v2853, -inf
      %3476 = vmax.xlane.f32.xlu0 %v3475
      %v3477 = vpop.xlane.xlu0 %3476
      %v3478 = vsel %vm1439, %v2858, -inf
      %3479 = vmax.xlane.f32.xlu0 %v3478
      %v3480 = vpop.xlane.xlu0 %3479
      %v3481 = vsel %vm1439, %v2861, -inf
      %3482 = vmax.xlane.f32.xlu0 %v3481
      %v3483 = vpop.xlane.xlu0 %3482
      %v3484 = vsel %vm1439, %v2866, -inf
      %3485 = vmax.xlane.f32.xlu0 %v3484
      %v3486 = vpop.xlane.xlu0 %3485
      %v3487 = vsel %vm1439, %v2869, -inf
      %3488 = vmax.xlane.f32.xlu0 %v3487
      %v3489 = vpop.xlane.xlu0 %3488
      %v3490 = vsel %vm1439, %v2874, -inf
      %3491 = vmax.xlane.f32.xlu0 %v3490
      %v3492 = vpop.xlane.xlu0 %3491
      %v3493 = vsel %vm1439, %v2877, -inf
      %3494 = vmax.xlane.f32.xlu0 %v3493
      %v3495 = vpop.xlane.xlu0 %3494
      %v3496 = vsub.f32 %v2850, %v3474
      %v3497 = vsub.f32 %v2853, %v3477
      %v3498 = vsub.f32 %v2858, %v3480
      %v3499 = vsub.f32 %v2861, %v3483
      %v3500 = vsub.f32 %v2866, %v3486
      %v3501 = vsub.f32 %v2869, %v3489
      %v3502 = vsub.f32 %v2874, %v3492
      %v3503 = vsub.f32 %v2877, %v3495
      %v3504 = vmul.f32 %v3496, 1.442695
      %v3505 = vpow.pop %v3504
      %v3506 = vmul.f32 %v3497, 1.442695
      %v3507 = vpow.pop %v3506
      %v3508 = vmul.f32 %v3498, 1.442695
      %v3509 = vpow.pop %v3508
      %v3510 = vmul.f32 %v3499, 1.442695
      %v3511 = vpow.pop %v3510
      %v3512 = vmul.f32 %v3500, 1.442695
      %v3513 = vpow.pop %v3512
      %v3514 = vmul.f32 %v3501, 1.442695
      %v3515 = vpow.pop %v3514
      %v3516 = vmul.f32 %v3502, 1.442695
      %v3517 = vpow.pop %v3516
      %v3518 = vmul.f32 %v3503, 1.442695
      %v3519 = vpow.pop %v3518
      %3528 = vrot.lane.b32.xlu0 %v3505, 80
      %v3529 = vpop.permute.xlu0 %3528
      %3530 = vrot.lane.b32.xlu0 %v3507, 80
      %v3531 = vpop.permute.xlu0 %3530
      %3532 = vrot.lane.b32.xlu0 %v3509, 80
      %v3533 = vpop.permute.xlu0 %3532
      %3534 = vrot.lane.b32.xlu0 %v3511, 80
      %v3535 = vpop.permute.xlu0 %3534
      %3536 = vrot.lane.b32.xlu0 %v3513, 80
      %v3537 = vpop.permute.xlu0 %3536
      %3538 = vrot.lane.b32.xlu0 %v3515, 80
      %v3539 = vpop.permute.xlu0 %3538
      %3540 = vrot.lane.b32.xlu0 %v3517, 80
      %v3541 = vpop.permute.xlu0 %3540
      %3542 = vrot.lane.b32.xlu0 %v3519, 80
      %v3543 = vpop.permute.xlu0 %3542
      %v3552 = vsel %vm745, %v3529, 0.0
      %3553 = vadd.xlane.f32.xlu0 %v3552
      %v3554 = vpop.xlane.xlu0 %3553
      %v3555 = vsel %vm745, %v3531, 0.0
      %3556 = vadd.xlane.f32.xlu0 %v3555
      %v3557 = vpop.xlane.xlu0 %3556
      %v3558 = vsel %vm745, %v3533, 0.0
      %3559 = vadd.xlane.f32.xlu0 %v3558
      %v3560 = vpop.xlane.xlu0 %3559
      %v3561 = vsel %vm745, %v3535, 0.0
      %3562 = vadd.xlane.f32.xlu0 %v3561
      %v3563 = vpop.xlane.xlu0 %3562
      %v3564 = vsel %vm745, %v3537, 0.0
      %3565 = vadd.xlane.f32.xlu0 %v3564
      %v3566 = vpop.xlane.xlu0 %3565
      %v3567 = vsel %vm745, %v3539, 0.0
      %3568 = vadd.xlane.f32.xlu0 %v3567
      %v3569 = vpop.xlane.xlu0 %3568
      %v3570 = vsel %vm745, %v3541, 0.0
      %3571 = vadd.xlane.f32.xlu0 %v3570
      %v3572 = vpop.xlane.xlu0 %3571
      %v3573 = vsel %vm745, %v3543, 0.0
      %3574 = vadd.xlane.f32.xlu0 %v3573
      %v3575 = vpop.xlane.xlu0 %3574
      %v3576 = vsel %vm1560, %v2850, -inf
      %3577 = vmax.xlane.f32.xlu0 %v3576
      %v3578 = vpop.xlane.xlu0 %3577
      %v3579 = vsel %vm1560, %v2853, -inf
      %3580 = vmax.xlane.f32.xlu0 %v3579
      %v3581 = vpop.xlane.xlu0 %3580
      %v3582 = vsel %vm1560, %v2858, -inf
      %3583 = vmax.xlane.f32.xlu0 %v3582
      %v3584 = vpop.xlane.xlu0 %3583
      %v3585 = vsel %vm1560, %v2861, -inf
      %3586 = vmax.xlane.f32.xlu0 %v3585
      %v3587 = vpop.xlane.xlu0 %3586
      %v3588 = vsel %vm1560, %v2866, -inf
      %3589 = vmax.xlane.f32.xlu0 %v3588
      %v3590 = vpop.xlane.xlu0 %3589
      %v3591 = vsel %vm1560, %v2869, -inf
      %3592 = vmax.xlane.f32.xlu0 %v3591
      %v3593 = vpop.xlane.xlu0 %3592
      %v3594 = vsel %vm1560, %v2874, -inf
      %3595 = vmax.xlane.f32.xlu0 %v3594
      %v3596 = vpop.xlane.xlu0 %3595
      %v3597 = vsel %vm1560, %v2877, -inf
      %3598 = vmax.xlane.f32.xlu0 %v3597
      %v3599 = vpop.xlane.xlu0 %3598
      %v3600 = vsub.f32 %v2850, %v3578
      %v3601 = vsub.f32 %v2853, %v3581
      %v3602 = vsub.f32 %v2858, %v3584
      %v3603 = vsub.f32 %v2861, %v3587
      %v3604 = vsub.f32 %v2866, %v3590
      %v3605 = vsub.f32 %v2869, %v3593
      %v3606 = vsub.f32 %v2874, %v3596
      %v3607 = vsub.f32 %v2877, %v3599
      %v3608 = vmul.f32 %v3600, 1.442695
      %v3609 = vpow.pop %v3608
      %v3610 = vmul.f32 %v3601, 1.442695
      %v3611 = vpow.pop %v3610
      %v3612 = vmul.f32 %v3602, 1.442695
      %v3613 = vpow.pop %v3612
      %v3614 = vmul.f32 %v3603, 1.442695
      %v3615 = vpow.pop %v3614
      %v3616 = vmul.f32 %v3604, 1.442695
      %v3617 = vpow.pop %v3616
      %v3618 = vmul.f32 %v3605, 1.442695
      %v3619 = vpow.pop %v3618
      %v3620 = vmul.f32 %v3606, 1.442695
      %v3621 = vpow.pop %v3620
      %v3622 = vmul.f32 %v3607, 1.442695
      %v3623 = vpow.pop %v3622
      %3632 = vrot.lane.b32.xlu0 %v3609, 72
      %v3633 = vpop.permute.xlu0 %3632
      %3634 = vrot.lane.b32.xlu0 %v3611, 72
      %v3635 = vpop.permute.xlu0 %3634
      %3636 = vrot.lane.b32.xlu0 %v3613, 72
      %v3637 = vpop.permute.xlu0 %3636
      %3638 = vrot.lane.b32.xlu0 %v3615, 72
      %v3639 = vpop.permute.xlu0 %3638
      %3640 = vrot.lane.b32.xlu0 %v3617, 72
      %v3641 = vpop.permute.xlu0 %3640
      %3642 = vrot.lane.b32.xlu0 %v3619, 72
      %v3643 = vpop.permute.xlu0 %3642
      %3644 = vrot.lane.b32.xlu0 %v3621, 72
      %v3645 = vpop.permute.xlu0 %3644
      %3646 = vrot.lane.b32.xlu0 %v3623, 72
      %v3647 = vpop.permute.xlu0 %3646
      %v3656 = vsel %vm745, %v3633, 0.0
      %3657 = vadd.xlane.f32.xlu0 %v3656
      %v3658 = vpop.xlane.xlu0 %3657
      %v3659 = vsel %vm745, %v3635, 0.0
      %3660 = vadd.xlane.f32.xlu0 %v3659
      %v3661 = vpop.xlane.xlu0 %3660
      %v3662 = vsel %vm745, %v3637, 0.0
      %3663 = vadd.xlane.f32.xlu0 %v3662
      %v3664 = vpop.xlane.xlu0 %3663
      %v3665 = vsel %vm745, %v3639, 0.0
      %3666 = vadd.xlane.f32.xlu0 %v3665
      %v3667 = vpop.xlane.xlu0 %3666
      %v3668 = vsel %vm745, %v3641, 0.0
      %3669 = vadd.xlane.f32.xlu0 %v3668
      %v3670 = vpop.xlane.xlu0 %3669
      %v3671 = vsel %vm745, %v3643, 0.0
      %3672 = vadd.xlane.f32.xlu0 %v3671
      %v3673 = vpop.xlane.xlu0 %3672
      %v3674 = vsel %vm745, %v3645, 0.0
      %3675 = vadd.xlane.f32.xlu0 %v3674
      %v3676 = vpop.xlane.xlu0 %3675
      %v3677 = vsel %vm745, %v3647, 0.0
      %3678 = vadd.xlane.f32.xlu0 %v3677
      %v3679 = vpop.xlane.xlu0 %3678
      %vm3680 = vcmask 7168
      %v3681 = vsel %vm3680, %v2882, %v2954
      %v3682 = vsel %vm3680, %v2885, %v2957
      %v3683 = vsel %vm3680, %v2888, %v2960
      %v3684 = vsel %vm3680, %v2891, %v2963
      %v3685 = vsel %vm3680, %v2894, %v2966
      %v3686 = vsel %vm3680, %v2897, %v2969
      %v3687 = vsel %vm3680, %v2900, %v2972
      %v3688 = vsel %vm3680, %v2903, %v2975
      %v3689 = vsel %vm655, %v3681, %v3058
      %v3690 = vsel %vm655, %v3682, %v3061
      %v3691 = vsel %vm655, %v3683, %v3064
      %v3692 = vsel %vm655, %v3684, %v3067
      %v3693 = vsel %vm655, %v3685, %v3070
      %v3694 = vsel %vm655, %v3686, %v3073
      %v3695 = vsel %vm655, %v3687, %v3076
      %v3696 = vsel %vm655, %v3688, %v3079
      %vm3697 = vcmask 23552
      %v3698 = vsel %vm3697, %v3689, %v3162
      %v3699 = vsel %vm3697, %v3690, %v3165
      %v3700 = vsel %vm3697, %v3691, %v3168
      %v3701 = vsel %vm3697, %v3692, %v3171
      %v3702 = vsel %vm3697, %v3693, %v3174
      %v3703 = vsel %vm3697, %v3694, %v3177
      %v3704 = vsel %vm3697, %v3695, %v3180
      %v3705 = vsel %vm3697, %v3696, %v3183
      %vm3706 = vcmask 31744
      %v3707 = vsel %vm3706, %v3698, %v3266
      %v3708 = vsel %vm3706, %v3699, %v3269
      %v3709 = vsel %vm3706, %v3700, %v3272
      %v3710 = vsel %vm3706, %v3701, %v3275
      %v3711 = vsel %vm3706, %v3702, %v3278
      %v3712 = vsel %vm3706, %v3703, %v3281
      %v3713 = vsel %vm3706, %v3704, %v3284
      %v3714 = vsel %vm3706, %v3705, %v3287
      %vm3715 = vcmask 39936
      %v3716 = vsel %vm3715, %v3707, %v3370
      %v3717 = vsel %vm3715, %v3708, %v3373
      %v3718 = vsel %vm3715, %v3709, %v3376
      %v3719 = vsel %vm3715, %v3710, %v3379
      %v3720 = vsel %vm3715, %v3711, %v3382
      %v3721 = vsel %vm3715, %v3712, %v3385
      %v3722 = vsel %vm3715, %v3713, %v3388
      %v3723 = vsel %vm3715, %v3714, %v3391
      %vm3724 = vcmask 48128
      %v3725 = vsel %vm3724, %v3716, %v3474
      %v3726 = vsel %vm3724, %v3717, %v3477
      %v3727 = vsel %vm3724, %v3718, %v3480
      %v3728 = vsel %vm3724, %v3719, %v3483
      %v3729 = vsel %vm3724, %v3720, %v3486
      %v3730 = vsel %vm3724, %v3721, %v3489
      %v3731 = vsel %vm3724, %v3722, %v3492
      %v3732 = vsel %vm3724, %v3723, %v3495
      %vm3733 = vcmask 56320
      %v3734 = vsel %vm3733, %v3725, %v3578
      %v3735 = vsel %vm3733, %v3726, %v3581
      %v3736 = vsel %vm3733, %v3727, %v3584
      %v3737 = vsel %vm3733, %v3728, %v3587
      %v3738 = vsel %vm3733, %v3729, %v3590
      %v3739 = vsel %vm3733, %v3730, %v3593
      %v3740 = vsel %vm3733, %v3731, %v3596
      %v3741 = vsel %vm3733, %v3732, %v3599
      %v3742 = vsel %vm3680, %v2930, %v3034
      %v3743 = vsel %vm3680, %v2933, %v3037
      %v3744 = vsel %vm3680, %v2936, %v3040
      %v3745 = vsel %vm3680, %v2939, %v3043
      %v3746 = vsel %vm3680, %v2942, %v3046
      %v3747 = vsel %vm3680, %v2945, %v3049
      %v3748 = vsel %vm3680, %v2948, %v3052
      %v3749 = vsel %vm3680, %v2951, %v3055
      %v3750 = vsel %vm655, %v3742, %v3138
      %v3751 = vsel %vm655, %v3743, %v3141
      %v3752 = vsel %vm655, %v3744, %v3144
      %v3753 = vsel %vm655, %v3745, %v3147
      %v3754 = vsel %vm655, %v3746, %v3150
      %v3755 = vsel %vm655, %v3747, %v3153
      %v3756 = vsel %vm655, %v3748, %v3156
      %v3757 = vsel %vm655, %v3749, %v3159
      %v3758 = vsel %vm3697, %v3750, %v3242
      %v3759 = vsel %vm3697, %v3751, %v3245
      %v3760 = vsel %vm3697, %v3752, %v3248
      %v3761 = vsel %vm3697, %v3753, %v3251
      %v3762 = vsel %vm3697, %v3754, %v3254
      %v3763 = vsel %vm3697, %v3755, %v3257
      %v3764 = vsel %vm3697, %v3756, %v3260
      %v3765 = vsel %vm3697, %v3757, %v3263
      %v3766 = vsel %vm3706, %v3758, %v3346
      %v3767 = vsel %vm3706, %v3759, %v3349
      %v3768 = vsel %vm3706, %v3760, %v3352
      %v3769 = vsel %vm3706, %v3761, %v3355
      %v3770 = vsel %vm3706, %v3762, %v3358
      %v3771 = vsel %vm3706, %v3763, %v3361
      %v3772 = vsel %vm3706, %v3764, %v3364
      %v3773 = vsel %vm3706, %v3765, %v3367
      %v3774 = vsel %vm3715, %v3766, %v3450
      %v3775 = vsel %vm3715, %v3767, %v3453
      %v3776 = vsel %vm3715, %v3768, %v3456
      %v3777 = vsel %vm3715, %v3769, %v3459
      %v3778 = vsel %vm3715, %v3770, %v3462
      %v3779 = vsel %vm3715, %v3771, %v3465
      %v3780 = vsel %vm3715, %v3772, %v3468
      %v3781 = vsel %vm3715, %v3773, %v3471
      %v3782 = vsel %vm3724, %v3774, %v3554
      %v3783 = vsel %vm3724, %v3775, %v3557
      %v3784 = vsel %vm3724, %v3776, %v3560
      %v3785 = vsel %vm3724, %v3777, %v3563
      %v3786 = vsel %vm3724, %v3778, %v3566
      %v3787 = vsel %vm3724, %v3779, %v3569
      %v3788 = vsel %vm3724, %v3780, %v3572
      %v3789 = vsel %vm3724, %v3781, %v3575
      %v3790 = vsel %vm3733, %v3782, %v3658
      %v3791 = vsel %vm3733, %v3783, %v3661
      %v3792 = vsel %vm3733, %v3784, %v3664
      %v3793 = vsel %vm3733, %v3785, %v3667
      %v3794 = vsel %vm3733, %v3786, %v3670
      %v3795 = vsel %vm3733, %v3787, %v3673
      %v3796 = vsel %vm3733, %v3788, %v3676
      %v3797 = vsel %vm3733, %v3789, %v3679
      %3802 = vrot.lane.b32.xlu0 %v639, 126
      %v3803 = vpop.permute.xlu0 %3802
      %3804 = vrot.lane.b32.xlu0 %v640, 126
      %v3805 = vpop.permute.xlu0 %3804
      %3806 = vrot.lane.b32.xlu0 %v641, 126
      %v3807 = vpop.permute.xlu0 %3806
      %3808 = vrot.lane.b32.xlu0 %v642, 126
      %v3809 = vpop.permute.xlu0 %3808
      %v3811 = vsel %vm655, %v3803, 0
      %v3814 = vsel %vm655, %v3805, 0
      %v3817 = vsel %vm655, %v3807, 0
      %v3820 = vsel %vm655, %v3809, 0
      %3822 = vmatprep.subr.bf16.mxu0 0
      %3823 = vmatpush1.bf16.xpose.msra.mxu0 %v3811
      %3824 = vmatprep.subr.bf16.mxu0 0
      %3825 = vmatpush1.bf16.xpose.msra.mxu0 %v3814
      %3826 = vmatprep.subr.bf16.mxu0 0
      %3827 = vmatpush1.bf16.xpose.msra.mxu0 %v3817
      %3828 = vmatprep.subr.bf16.mxu0 0
      %3829 = vmatpush1.bf16.xpose.msra.mxu0 %v3820
      %3830 = vmatprep.subr.bf16.mxu0 0
      %3831 = vmatpush1.bf16.xpose.msra.mxu0 0
      %3832 = vmatprep.subr.bf16.mxu0 0
      %3833 = vmatpush1.bf16.xpose.msra.mxu0 0
      %3834 = vmatprep.subr.bf16.mxu0 0
      %3835 = vmatpush1.bf16.xpose.msra.mxu0 0
      %3836 = vmatprep.subr.bf16.mxu0 0
      %3837 = vmatpush1.bf16.xpose.msra.mxu0 0
      %3838 = vmatprep.subr.bf16.mxu0 0
      %3839 = vmatpush1.bf16.xpose.msra.mxu0 0
      %3840 = vmatprep.subr.bf16.mxu0 0
      %3841 = vmatpush1.bf16.xpose.msra.mxu0 0
      %3842 = vmatprep.subr.bf16.mxu0 0
      %3843 = vmatpush1.bf16.xpose.msra.mxu0 0
      %3844 = vmatprep.subr.bf16.mxu0 0
      %3845 = vmatpush1.bf16.xpose.msra.mxu0 0
      %3846 = vmatprep.subr.bf16.mxu0 0
      %3847 = vmatpush1.bf16.xpose.msra.mxu0 0
      %3848 = vmatprep.subr.bf16.mxu0 0
      %3849 = vmatpush1.bf16.xpose.msra.mxu0 0
      %3850 = vmatprep.subr.bf16.mxu0 0
      %3851 = vmatpush1.bf16.xpose.msra.mxu0 0
      %3852 = vmatprep.subr.bf16.mxu0 0
      %3853 = vmatpush1.bf16.xpose.msra.mxu0 0
      %3854 = vmatprep.mubr.bf16.mxu0 0
      %3855 = vmatmul.mubr.bf16.gmra.mrb[0].mxu0 %v2804
      %v3856 = vpop.f32.mrb[0].mxu0
      %v3857 = vadd.f32 0.0, %v3856
      %v3858 = vpop.f32.mrb[0].mxu0
      %v3859 = vpop.f32.mrb[0].mxu0
      %v3860 = vadd.f32 0.0, %v3859
      %v3861 = vpop.f32.mrb[0].mxu0
      %3862 = vmatprep.mubr.bf16.mxu0 0
      %3863 = vmatmul.mubr.bf16.gmra.mrb[0].mxu0 %v2807
      %v3864 = vpop.f32.mrb[0].mxu0
      %v3865 = vadd.f32 0.0, %v3864
      %v3866 = vpop.f32.mrb[0].mxu0
      %v3867 = vpop.f32.mrb[0].mxu0
      %v3868 = vadd.f32 0.0, %v3867
      %v3869 = vpop.f32.mrb[0].mxu0
      %3870 = vmatprep.mubr.bf16.mxu0 0
      %3871 = vmatmul.mubr.bf16.gmra.mrb[0].mxu0 %v2810
      %v3872 = vpop.f32.mrb[0].mxu0
      %v3873 = vadd.f32 0.0, %v3872
      %v3874 = vpop.f32.mrb[0].mxu0
      %v3875 = vpop.f32.mrb[0].mxu0
      %v3876 = vadd.f32 0.0, %v3875
      %v3877 = vpop.f32.mrb[0].mxu0
      %3878 = vmatprep.mubr.bf16.mxu0 0
      %3879 = vmatmul.mubr.bf16.gmra.mrb[0].mxu0 %v2813
      %v3880 = vpop.f32.mrb[0].mxu0
      %v3881 = vadd.f32 0.0, %v3880
      %v3882 = vpop.f32.mrb[0].mxu0
      %v3883 = vpop.f32.mrb[0].mxu0
      %v3884 = vadd.f32 0.0, %v3883
      %v3885 = vpop.f32.mrb[0].mxu0
      %3886 = vdwg.mxu0
      %3895 = vrot.lane.b32.xlu0 %v3734, 8
      %v3896 = vpop.permute.xlu0 %3895
      %3897 = vrot.lane.b32.xlu0 %v3735, 8
      %v3898 = vpop.permute.xlu0 %3897
      %3899 = vrot.lane.b32.xlu0 %v3736, 8
      %v3900 = vpop.permute.xlu0 %3899
      %3901 = vrot.lane.b32.xlu0 %v3737, 8
      %v3902 = vpop.permute.xlu0 %3901
      %3903 = vrot.lane.b32.xlu0 %v3738, 8
      %v3904 = vpop.permute.xlu0 %3903
      %3905 = vrot.lane.b32.xlu0 %v3739, 8
      %v3906 = vpop.permute.xlu0 %3905
      %3907 = vrot.lane.b32.xlu0 %v3740, 8
      %v3908 = vpop.permute.xlu0 %3907
      %3909 = vrot.lane.b32.xlu0 %v3741, 8
      %v3910 = vpop.permute.xlu0 %3909
      %3919 = vrot.lane.b32.xlu0 %v3734, 16
      %v3920 = vpop.permute.xlu0 %3919
      %3921 = vrot.lane.b32.xlu0 %v3735, 16
      %v3922 = vpop.permute.xlu0 %3921
      %3923 = vrot.lane.b32.xlu0 %v3736, 16
      %v3924 = vpop.permute.xlu0 %3923
      %3925 = vrot.lane.b32.xlu0 %v3737, 16
      %v3926 = vpop.permute.xlu0 %3925
      %3927 = vrot.lane.b32.xlu0 %v3738, 16
      %v3928 = vpop.permute.xlu0 %3927
      %3929 = vrot.lane.b32.xlu0 %v3739, 16
      %v3930 = vpop.permute.xlu0 %3929
      %3931 = vrot.lane.b32.xlu0 %v3740, 16
      %v3932 = vpop.permute.xlu0 %3931
      %3933 = vrot.lane.b32.xlu0 %v3741, 16
      %v3934 = vpop.permute.xlu0 %3933
      %3943 = vrot.lane.b32.xlu0 %v3734, 24
      %v3944 = vpop.permute.xlu0 %3943
      %3945 = vrot.lane.b32.xlu0 %v3735, 24
      %v3946 = vpop.permute.xlu0 %3945
      %3947 = vrot.lane.b32.xlu0 %v3736, 24
      %v3948 = vpop.permute.xlu0 %3947
      %3949 = vrot.lane.b32.xlu0 %v3737, 24
      %v3950 = vpop.permute.xlu0 %3949
      %3951 = vrot.lane.b32.xlu0 %v3738, 24
      %v3952 = vpop.permute.xlu0 %3951
      %3953 = vrot.lane.b32.xlu0 %v3739, 24
      %v3954 = vpop.permute.xlu0 %3953
      %3955 = vrot.lane.b32.xlu0 %v3740, 24
      %v3956 = vpop.permute.xlu0 %3955
      %3957 = vrot.lane.b32.xlu0 %v3741, 24
      %v3958 = vpop.permute.xlu0 %3957
      %3967 = vrot.lane.b32.xlu0 %v3734, 32
      %v3968 = vpop.permute.xlu0 %3967
      %3969 = vrot.lane.b32.xlu0 %v3735, 32
      %v3970 = vpop.permute.xlu0 %3969
      %3971 = vrot.lane.b32.xlu0 %v3736, 32
      %v3972 = vpop.permute.xlu0 %3971
      %3973 = vrot.lane.b32.xlu0 %v3737, 32
      %v3974 = vpop.permute.xlu0 %3973
      %3975 = vrot.lane.b32.xlu0 %v3738, 32
      %v3976 = vpop.permute.xlu0 %3975
      %3977 = vrot.lane.b32.xlu0 %v3739, 32
      %v3978 = vpop.permute.xlu0 %3977
      %3979 = vrot.lane.b32.xlu0 %v3740, 32
      %v3980 = vpop.permute.xlu0 %3979
      %3981 = vrot.lane.b32.xlu0 %v3741, 32
      %v3982 = vpop.permute.xlu0 %3981
      %3991 = vrot.lane.b32.xlu0 %v3734, 40
      %v3992 = vpop.permute.xlu0 %3991
      %3993 = vrot.lane.b32.xlu0 %v3735, 40
      %v3994 = vpop.permute.xlu0 %3993
      %3995 = vrot.lane.b32.xlu0 %v3736, 40
      %v3996 = vpop.permute.xlu0 %3995
      %3997 = vrot.lane.b32.xlu0 %v3737, 40
      %v3998 = vpop.permute.xlu0 %3997
      %3999 = vrot.lane.b32.xlu0 %v3738, 40
      %v4000 = vpop.permute.xlu0 %3999
      %4001 = vrot.lane.b32.xlu0 %v3739, 40
      %v4002 = vpop.permute.xlu0 %4001
      %4003 = vrot.lane.b32.xlu0 %v3740, 40
      %v4004 = vpop.permute.xlu0 %4003
      %4005 = vrot.lane.b32.xlu0 %v3741, 40
      %v4006 = vpop.permute.xlu0 %4005
      %4015 = vrot.lane.b32.xlu0 %v3734, 48
      %v4016 = vpop.permute.xlu0 %4015
      %4017 = vrot.lane.b32.xlu0 %v3735, 48
      %v4018 = vpop.permute.xlu0 %4017
      %4019 = vrot.lane.b32.xlu0 %v3736, 48
      %v4020 = vpop.permute.xlu0 %4019
      %4021 = vrot.lane.b32.xlu0 %v3737, 48
      %v4022 = vpop.permute.xlu0 %4021
      %4023 = vrot.lane.b32.xlu0 %v3738, 48
      %v4024 = vpop.permute.xlu0 %4023
      %4025 = vrot.lane.b32.xlu0 %v3739, 48
      %v4026 = vpop.permute.xlu0 %4025
      %4027 = vrot.lane.b32.xlu0 %v3740, 48
      %v4028 = vpop.permute.xlu0 %4027
      %4029 = vrot.lane.b32.xlu0 %v3741, 48
      %v4030 = vpop.permute.xlu0 %4029
      %4039 = vrot.lane.b32.xlu0 %v3734, 56
      %v4040 = vpop.permute.xlu0 %4039
      %4041 = vrot.lane.b32.xlu0 %v3735, 56
      %v4042 = vpop.permute.xlu0 %4041
      %4043 = vrot.lane.b32.xlu0 %v3736, 56
      %v4044 = vpop.permute.xlu0 %4043
      %4045 = vrot.lane.b32.xlu0 %v3737, 56
      %v4046 = vpop.permute.xlu0 %4045
      %4047 = vrot.lane.b32.xlu0 %v3738, 56
      %v4048 = vpop.permute.xlu0 %4047
      %4049 = vrot.lane.b32.xlu0 %v3739, 56
      %v4050 = vpop.permute.xlu0 %4049
      %4051 = vrot.lane.b32.xlu0 %v3740, 56
      %v4052 = vpop.permute.xlu0 %4051
      %4053 = vrot.lane.b32.xlu0 %v3741, 56
      %v4054 = vpop.permute.xlu0 %4053
      %v4063 = vsel %vm745, %v3734, %v3896
      %v4064 = vsel %vm745, %v3735, %v3898
      %v4065 = vsel %vm745, %v3736, %v3900
      %v4066 = vsel %vm745, %v3737, %v3902
      %v4067 = vsel %vm745, %v3738, %v3904
      %v4068 = vsel %vm745, %v3739, %v3906
      %v4069 = vsel %vm745, %v3740, %v3908
      %v4070 = vsel %vm745, %v3741, %v3910
      %v4071 = vsel %vm391, %v4063, %v3920
      %v4072 = vsel %vm391, %v4064, %v3922
      %v4073 = vsel %vm391, %v4065, %v3924
      %v4074 = vsel %vm391, %v4066, %v3926
      %v4075 = vsel %vm391, %v4067, %v3928
      %v4076 = vsel %vm391, %v4068, %v3930
      %v4077 = vsel %vm391, %v4069, %v3932
      %v4078 = vsel %vm391, %v4070, %v3934
      %v4079 = vsel %vm1697, %v4071, %v3944
      %v4080 = vsel %vm1697, %v4072, %v3946
      %v4081 = vsel %vm1697, %v4073, %v3948
      %v4082 = vsel %vm1697, %v4074, %v3950
      %v4083 = vsel %vm1697, %v4075, %v3952
      %v4084 = vsel %vm1697, %v4076, %v3954
      %v4085 = vsel %vm1697, %v4077, %v3956
      %v4086 = vsel %vm1697, %v4078, %v3958
      %v4087 = vsel %vm1706, %v4079, %v3968
      %v4088 = vsel %vm1706, %v4080, %v3970
      %v4089 = vsel %vm1706, %v4081, %v3972
      %v4090 = vsel %vm1706, %v4082, %v3974
      %v4091 = vsel %vm1706, %v4083, %v3976
      %v4092 = vsel %vm1706, %v4084, %v3978
      %v4093 = vsel %vm1706, %v4085, %v3980
      %v4094 = vsel %vm1706, %v4086, %v3982
      %v4095 = vsel %vm1715, %v4087, %v3992
      %v4096 = vsel %vm1715, %v4088, %v3994
      %v4097 = vsel %vm1715, %v4089, %v3996
      %v4098 = vsel %vm1715, %v4090, %v3998
      %v4099 = vsel %vm1715, %v4091, %v4000
      %v4100 = vsel %vm1715, %v4092, %v4002
      %v4101 = vsel %vm1715, %v4093, %v4004
      %v4102 = vsel %vm1715, %v4094, %v4006
      %v4103 = vsel %vm1724, %v4095, %v4016
      %v4104 = vsel %vm1724, %v4096, %v4018
      %v4105 = vsel %vm1724, %v4097, %v4020
      %v4106 = vsel %vm1724, %v4098, %v4022
      %v4107 = vsel %vm1724, %v4099, %v4024
      %v4108 = vsel %vm1724, %v4100, %v4026
      %v4109 = vsel %vm1724, %v4101, %v4028
      %v4110 = vsel %vm1724, %v4102, %v4030
      %v4111 = vsel %vm1733, %v4103, %v4040
      %v4112 = vsel %vm1733, %v4104, %v4042
      %v4113 = vsel %vm1733, %v4105, %v4044
      %v4114 = vsel %vm1733, %v4106, %v4046
      %v4115 = vsel %vm1733, %v4107, %v4048
      %v4116 = vsel %vm1733, %v4108, %v4050
      %v4117 = vsel %vm1733, %v4109, %v4052
      %v4118 = vsel %vm1733, %v4110, %v4054
      %4127 = vrot.lane.b32.xlu0 %v3790, 8
      %v4128 = vpop.permute.xlu0 %4127
      %4129 = vrot.lane.b32.xlu0 %v3791, 8
      %v4130 = vpop.permute.xlu0 %4129
      %4131 = vrot.lane.b32.xlu0 %v3792, 8
      %v4132 = vpop.permute.xlu0 %4131
      %4133 = vrot.lane.b32.xlu0 %v3793, 8
      %v4134 = vpop.permute.xlu0 %4133
      %4135 = vrot.lane.b32.xlu0 %v3794, 8
      %v4136 = vpop.permute.xlu0 %4135
      %4137 = vrot.lane.b32.xlu0 %v3795, 8
      %v4138 = vpop.permute.xlu0 %4137
      %4139 = vrot.lane.b32.xlu0 %v3796, 8
      %v4140 = vpop.permute.xlu0 %4139
      %4141 = vrot.lane.b32.xlu0 %v3797, 8
      %v4142 = vpop.permute.xlu0 %4141
      %4151 = vrot.lane.b32.xlu0 %v3790, 16
      %v4152 = vpop.permute.xlu0 %4151
      %4153 = vrot.lane.b32.xlu0 %v3791, 16
      %v4154 = vpop.permute.xlu0 %4153
      %4155 = vrot.lane.b32.xlu0 %v3792, 16
      %v4156 = vpop.permute.xlu0 %4155
      %4157 = vrot.lane.b32.xlu0 %v3793, 16
      %v4158 = vpop.permute.xlu0 %4157
      %4159 = vrot.lane.b32.xlu0 %v3794, 16
      %v4160 = vpop.permute.xlu0 %4159
      %4161 = vrot.lane.b32.xlu0 %v3795, 16
      %v4162 = vpop.permute.xlu0 %4161
      %4163 = vrot.lane.b32.xlu0 %v3796, 16
      %v4164 = vpop.permute.xlu0 %4163
      %4165 = vrot.lane.b32.xlu0 %v3797, 16
      %v4166 = vpop.permute.xlu0 %4165
      %4175 = vrot.lane.b32.xlu0 %v3790, 24
      %v4176 = vpop.permute.xlu0 %4175
      %4177 = vrot.lane.b32.xlu0 %v3791, 24
      %v4178 = vpop.permute.xlu0 %4177
      %4179 = vrot.lane.b32.xlu0 %v3792, 24
      %v4180 = vpop.permute.xlu0 %4179
      %4181 = vrot.lane.b32.xlu0 %v3793, 24
      %v4182 = vpop.permute.xlu0 %4181
      %4183 = vrot.lane.b32.xlu0 %v3794, 24
      %v4184 = vpop.permute.xlu0 %4183
      %4185 = vrot.lane.b32.xlu0 %v3795, 24
      %v4186 = vpop.permute.xlu0 %4185
      %4187 = vrot.lane.b32.xlu0 %v3796, 24
      %v4188 = vpop.permute.xlu0 %4187
      %4189 = vrot.lane.b32.xlu0 %v3797, 24
      %v4190 = vpop.permute.xlu0 %4189
      %4199 = vrot.lane.b32.xlu0 %v3790, 32
      %v4200 = vpop.permute.xlu0 %4199
      %4201 = vrot.lane.b32.xlu0 %v3791, 32
      %v4202 = vpop.permute.xlu0 %4201
      %4203 = vrot.lane.b32.xlu0 %v3792, 32
      %v4204 = vpop.permute.xlu0 %4203
      %4205 = vrot.lane.b32.xlu0 %v3793, 32
      %v4206 = vpop.permute.xlu0 %4205
      %4207 = vrot.lane.b32.xlu0 %v3794, 32
      %v4208 = vpop.permute.xlu0 %4207
      %4209 = vrot.lane.b32.xlu0 %v3795, 32
      %v4210 = vpop.permute.xlu0 %4209
      %4211 = vrot.lane.b32.xlu0 %v3796, 32
      %v4212 = vpop.permute.xlu0 %4211
      %4213 = vrot.lane.b32.xlu0 %v3797, 32
      %v4214 = vpop.permute.xlu0 %4213
      %4223 = vrot.lane.b32.xlu0 %v3790, 40
      %v4224 = vpop.permute.xlu0 %4223
      %4225 = vrot.lane.b32.xlu0 %v3791, 40
      %v4226 = vpop.permute.xlu0 %4225
      %4227 = vrot.lane.b32.xlu0 %v3792, 40
      %v4228 = vpop.permute.xlu0 %4227
      %4229 = vrot.lane.b32.xlu0 %v3793, 40
      %v4230 = vpop.permute.xlu0 %4229
      %4231 = vrot.lane.b32.xlu0 %v3794, 40
      %v4232 = vpop.permute.xlu0 %4231
      %4233 = vrot.lane.b32.xlu0 %v3795, 40
      %v4234 = vpop.permute.xlu0 %4233
      %4235 = vrot.lane.b32.xlu0 %v3796, 40
      %v4236 = vpop.permute.xlu0 %4235
      %4237 = vrot.lane.b32.xlu0 %v3797, 40
      %v4238 = vpop.permute.xlu0 %4237
      %4247 = vrot.lane.b32.xlu0 %v3790, 48
      %v4248 = vpop.permute.xlu0 %4247
      %4249 = vrot.lane.b32.xlu0 %v3791, 48
      %v4250 = vpop.permute.xlu0 %4249
      %4251 = vrot.lane.b32.xlu0 %v3792, 48
      %v4252 = vpop.permute.xlu0 %4251
      %4253 = vrot.lane.b32.xlu0 %v3793, 48
      %v4254 = vpop.permute.xlu0 %4253
      %4255 = vrot.lane.b32.xlu0 %v3794, 48
      %v4256 = vpop.permute.xlu0 %4255
      %4257 = vrot.lane.b32.xlu0 %v3795, 48
      %v4258 = vpop.permute.xlu0 %4257
      %4259 = vrot.lane.b32.xlu0 %v3796, 48
      %v4260 = vpop.permute.xlu0 %4259
      %4261 = vrot.lane.b32.xlu0 %v3797, 48
      %v4262 = vpop.permute.xlu0 %4261
      %4271 = vrot.lane.b32.xlu0 %v3790, 56
      %v4272 = vpop.permute.xlu0 %4271
      %4273 = vrot.lane.b32.xlu0 %v3791, 56
      %v4274 = vpop.permute.xlu0 %4273
      %4275 = vrot.lane.b32.xlu0 %v3792, 56
      %v4276 = vpop.permute.xlu0 %4275
      %4277 = vrot.lane.b32.xlu0 %v3793, 56
      %v4278 = vpop.permute.xlu0 %4277
      %4279 = vrot.lane.b32.xlu0 %v3794, 56
      %v4280 = vpop.permute.xlu0 %4279
      %4281 = vrot.lane.b32.xlu0 %v3795, 56
      %v4282 = vpop.permute.xlu0 %4281
      %4283 = vrot.lane.b32.xlu0 %v3796, 56
      %v4284 = vpop.permute.xlu0 %4283
      %4285 = vrot.lane.b32.xlu0 %v3797, 56
      %v4286 = vpop.permute.xlu0 %4285
      %v4295 = vsel %vm745, %v3790, %v4128
      %v4296 = vsel %vm745, %v3791, %v4130
      %v4297 = vsel %vm745, %v3792, %v4132
      %v4298 = vsel %vm745, %v3793, %v4134
      %v4299 = vsel %vm745, %v3794, %v4136
      %v4300 = vsel %vm745, %v3795, %v4138
      %v4301 = vsel %vm745, %v3796, %v4140
      %v4302 = vsel %vm745, %v3797, %v4142
      %v4303 = vsel %vm391, %v4295, %v4152
      %v4304 = vsel %vm391, %v4296, %v4154
      %v4305 = vsel %vm391, %v4297, %v4156
      %v4306 = vsel %vm391, %v4298, %v4158
      %v4307 = vsel %vm391, %v4299, %v4160
      %v4308 = vsel %vm391, %v4300, %v4162
      %v4309 = vsel %vm391, %v4301, %v4164
      %v4310 = vsel %vm391, %v4302, %v4166
      %v4311 = vsel %vm1697, %v4303, %v4176
      %v4312 = vsel %vm1697, %v4304, %v4178
      %v4313 = vsel %vm1697, %v4305, %v4180
      %v4314 = vsel %vm1697, %v4306, %v4182
      %v4315 = vsel %vm1697, %v4307, %v4184
      %v4316 = vsel %vm1697, %v4308, %v4186
      %v4317 = vsel %vm1697, %v4309, %v4188
      %v4318 = vsel %vm1697, %v4310, %v4190
      %v4319 = vsel %vm1706, %v4311, %v4200
      %v4320 = vsel %vm1706, %v4312, %v4202
      %v4321 = vsel %vm1706, %v4313, %v4204
      %v4322 = vsel %vm1706, %v4314, %v4206
      %v4323 = vsel %vm1706, %v4315, %v4208
      %v4324 = vsel %vm1706, %v4316, %v4210
      %v4325 = vsel %vm1706, %v4317, %v4212
      %v4326 = vsel %vm1706, %v4318, %v4214
      %v4327 = vsel %vm1715, %v4319, %v4224
      %v4328 = vsel %vm1715, %v4320, %v4226
      %v4329 = vsel %vm1715, %v4321, %v4228
      %v4330 = vsel %vm1715, %v4322, %v4230
      %v4331 = vsel %vm1715, %v4323, %v4232
      %v4332 = vsel %vm1715, %v4324, %v4234
      %v4333 = vsel %vm1715, %v4325, %v4236
      %v4334 = vsel %vm1715, %v4326, %v4238
      %v4335 = vsel %vm1724, %v4327, %v4248
      %v4336 = vsel %vm1724, %v4328, %v4250
      %v4337 = vsel %vm1724, %v4329, %v4252
      %v4338 = vsel %vm1724, %v4330, %v4254
      %v4339 = vsel %vm1724, %v4331, %v4256
      %v4340 = vsel %vm1724, %v4332, %v4258
      %v4341 = vsel %vm1724, %v4333, %v4260
      %v4342 = vsel %vm1724, %v4334, %v4262
      %v4343 = vsel %vm1733, %v4335, %v4272
      %v4344 = vsel %vm1733, %v4336, %v4274
      %v4345 = vsel %vm1733, %v4337, %v4276
      %v4346 = vsel %vm1733, %v4338, %v4278
      %v4347 = vsel %vm1733, %v4339, %v4280
      %v4348 = vsel %vm1733, %v4340, %v4282
      %v4349 = vsel %vm1733, %v4341, %v4284
      %v4350 = vsel %vm1733, %v4342, %v4286
      %v4351 = vsub.f32 %v3857, %v4111
      %v4352 = vsub.f32 %v3860, %v4112
      %v4353 = vsub.f32 %v3865, %v4113
      %v4354 = vsub.f32 %v3868, %v4114
      %v4355 = vsub.f32 %v3873, %v4115
      %v4356 = vsub.f32 %v3876, %v4116
      %v4357 = vsub.f32 %v3881, %v4117
      %v4358 = vsub.f32 %v3884, %v4118
      %v4359 = vmul.f32 %v4351, 1.442695
      %v4360 = vpow.pop %v4359
      %v4361 = vmul.f32 %v4352, 1.442695
      %v4362 = vpow.pop %v4361
      %v4363 = vmul.f32 %v4353, 1.442695
      %v4364 = vpow.pop %v4363
      %v4365 = vmul.f32 %v4354, 1.442695
      %v4366 = vpow.pop %v4365
      %v4367 = vmul.f32 %v4355, 1.442695
      %v4368 = vpow.pop %v4367
      %v4369 = vmul.f32 %v4356, 1.442695
      %v4370 = vpow.pop %v4369
      %v4371 = vmul.f32 %v4357, 1.442695
      %v4372 = vpow.pop %v4371
      %v4373 = vmul.f32 %v4358, 1.442695
      %v4374 = vpow.pop %v4373
      %v4375 = vrcp.pop %v4343
      %v4376 = vrcp.pop %v4344
      %v4377 = vrcp.pop %v4345
      %v4378 = vrcp.pop %v4346
      %v4379 = vrcp.pop %v4347
      %v4380 = vrcp.pop %v4348
      %v4381 = vrcp.pop %v4349
      %v4382 = vrcp.pop %v4350
      %v4383 = vmul.f32 %v4360, %v4375
      %v4384 = vmul.f32 %v4362, %v4376
      %v4385 = vmul.f32 %v4364, %v4377
      %v4386 = vmul.f32 %v4366, %v4378
      %v4387 = vmul.f32 %v4368, %v4379
      %v4388 = vmul.f32 %v4370, %v4380
      %v4389 = vmul.f32 %v4372, %v4381
      %v4390 = vmul.f32 %v4374, %v4382
      %4391 = vxpose.xlu0.b32.start [1/16] %v2795, 128
      %4392 = vxpose.xlu0.b32.cont [2/16] %v2796, 128
      %4393 = vxpose.xlu0.b32.cont [3/16] %v2797, 128
      %4394 = vxpose.xlu0.b32.cont [4/16] %v2798, 128
      %4395 = vxpose.xlu0.b32.cont [5/16] %v2799, 128
      %4396 = vxpose.xlu0.b32.cont [6/16] %v2800, 128
      %4397 = vxpose.xlu0.b32.cont [7/16] %v2801, 128
      %4398 = vxpose.xlu0.b32.cont [8/16] %v2802, 128
      %4399 = vxpose.xlu0.b32.cont [9/16] 0.0, 128
      %4400 = vxpose.xlu0.b32.cont [10/16] 0.0, 128
      %4401 = vxpose.xlu0.b32.cont [11/16] 0.0, 128
      %4402 = vxpose.xlu0.b32.cont [12/16] 0.0, 128
      %4403 = vxpose.xlu0.b32.cont [13/16] 0.0, 128
      %4404 = vxpose.xlu0.b32.cont [14/16] 0.0, 128
      %4405 = vxpose.xlu0.b32.cont [15/16] 0.0, 128
      %4406 = vxpose.xlu0.b32.end [16/16] 0.0, 128
      %v4407 = vpop.trf.xlu0
      %v4408 = vpop.trf.xlu0
      %v4409 = vpop.trf.xlu0
      %v4410 = vpop.trf.xlu0
      %v4411 = vpop.trf.xlu0
      %v4412 = vpop.trf.xlu0
      %v4413 = vpop.trf.xlu0
      %v4414 = vpop.trf.xlu0
      %v4415 = vpop.trf.xlu0
      %v4416 = vpop.trf.xlu0
      %v4417 = vpop.trf.xlu0
      %v4418 = vpop.trf.xlu0
      %v4419 = vpop.trf.xlu0
      %v4420 = vpop.trf.xlu0
      %v4421 = vpop.trf.xlu0
      %v4422 = vpop.trf.xlu0
      %4423 = vxpose.xlu0.b32.start [1/16] %v4383, 128
      %4424 = vxpose.xlu0.b32.cont [2/16] %v4384, 128
      %4425 = vxpose.xlu0.b32.cont [3/16] %v4385, 128
      %4426 = vxpose.xlu0.b32.cont [4/16] %v4386, 128
      %4427 = vxpose.xlu0.b32.cont [5/16] %v4387, 128
      %4428 = vxpose.xlu0.b32.cont [6/16] %v4388, 128
      %4429 = vxpose.xlu0.b32.cont [7/16] %v4389, 128
      %4430 = vxpose.xlu0.b32.cont [8/16] %v4390, 128
      %4431 = vxpose.xlu0.b32.cont [9/16] 0.0, 128
      %4432 = vxpose.xlu0.b32.cont [10/16] 0.0, 128
      %4433 = vxpose.xlu0.b32.cont [11/16] 0.0, 128
      %4434 = vxpose.xlu0.b32.cont [12/16] 0.0, 128
      %4435 = vxpose.xlu0.b32.cont [13/16] 0.0, 128
      %4436 = vxpose.xlu0.b32.cont [14/16] 0.0, 128
      %4437 = vxpose.xlu0.b32.cont [15/16] 0.0, 128
      %4438 = vxpose.xlu0.b32.end [16/16] 0.0, 128
      %v4439 = vpop.trf.xlu0
      %v4440 = vpop.trf.xlu0
      %v4441 = vpop.trf.xlu0
      %v4442 = vpop.trf.xlu0
      %v4443 = vpop.trf.xlu0
      %v4444 = vpop.trf.xlu0
      %v4445 = vpop.trf.xlu0
      %v4446 = vpop.trf.xlu0
      %v4447 = vpop.trf.xlu0
      %v4448 = vpop.trf.xlu0
      %v4449 = vpop.trf.xlu0
      %v4450 = vpop.trf.xlu0
      %v4451 = vpop.trf.xlu0
      %v4452 = vpop.trf.xlu0
      %v4453 = vpop.trf.xlu0
      %v4454 = vpop.trf.xlu0
      %4456 = vrot.lane.b32.xlu0 %v4408, 8
      %v4457 = vpop.permute.xlu0 %4456
      %4460 = vrot.lane.b32.xlu0 %v4409, 16
      %v4461 = vpop.permute.xlu0 %4460
      %4464 = vrot.lane.b32.xlu0 %v4410, 24
      %v4465 = vpop.permute.xlu0 %4464
      %4468 = vrot.lane.b32.xlu0 %v4411, 32
      %v4469 = vpop.permute.xlu0 %4468
      %4472 = vrot.lane.b32.xlu0 %v4412, 40
      %v4473 = vpop.permute.xlu0 %4472
      %4476 = vrot.lane.b32.xlu0 %v4413, 48
      %v4477 = vpop.permute.xlu0 %4476
      %4480 = vrot.lane.b32.xlu0 %v4414, 56
      %v4481 = vpop.permute.xlu0 %4480
      %v4483 = vsel %vm745, %v4407, %v4457
      %v4484 = vsel %vm391, %v4483, %v4461
      %v4485 = vsel %vm1697, %v4484, %v4465
      %v4486 = vsel %vm1706, %v4485, %v4469
      %v4487 = vsel %vm1715, %v4486, %v4473
      %v4488 = vsel %vm1724, %v4487, %v4477
      %v4489 = vsel %vm1733, %v4488, %v4481
      %4491 = vrot.lane.b32.xlu0 %v4407, 120
      %v4492 = vpop.permute.xlu0 %4491
      %4494 = vrot.lane.b32.xlu0 %v4409, 8
      %v4495 = vpop.permute.xlu0 %4494
      %4497 = vrot.lane.b32.xlu0 %v4410, 16
      %v4498 = vpop.permute.xlu0 %4497
      %4500 = vrot.lane.b32.xlu0 %v4411, 24
      %v4501 = vpop.permute.xlu0 %4500
      %4503 = vrot.lane.b32.xlu0 %v4412, 32
      %v4504 = vpop.permute.xlu0 %4503
      %4506 = vrot.lane.b32.xlu0 %v4413, 40
      %v4507 = vpop.permute.xlu0 %4506
      %4509 = vrot.lane.b32.xlu0 %v4414, 48
      %v4510 = vpop.permute.xlu0 %4509
      %v4512 = vsel %vm745, %v4492, %v4408
      %v4513 = vsel %vm391, %v4512, %v4495
      %v4514 = vsel %vm1697, %v4513, %v4498
      %v4515 = vsel %vm1706, %v4514, %v4501
      %v4516 = vsel %vm1715, %v4515, %v4504
      %v4517 = vsel %vm1724, %v4516, %v4507
      %v4518 = vsel %vm1733, %v4517, %v4510
      %4519 = vrot.lane.b32.xlu0 %v4407, 112
      %v4520 = vpop.permute.xlu0 %4519
      %4522 = vrot.lane.b32.xlu0 %v4408, 120
      %v4523 = vpop.permute.xlu0 %4522
      %4525 = vrot.lane.b32.xlu0 %v4410, 8
      %v4526 = vpop.permute.xlu0 %4525
      %4528 = vrot.lane.b32.xlu0 %v4411, 16
      %v4529 = vpop.permute.xlu0 %4528
      %4531 = vrot.lane.b32.xlu0 %v4412, 24
      %v4532 = vpop.permute.xlu0 %4531
      %4534 = vrot.lane.b32.xlu0 %v4413, 32
      %v4535 = vpop.permute.xlu0 %4534
      %4537 = vrot.lane.b32.xlu0 %v4414, 40
      %v4538 = vpop.permute.xlu0 %4537
      %v4540 = vsel %vm745, %v4520, %v4523
      %v4541 = vsel %vm391, %v4540, %v4409
      %v4542 = vsel %vm1697, %v4541, %v4526
      %v4543 = vsel %vm1706, %v4542, %v4529
      %v4544 = vsel %vm1715, %v4543, %v4532
      %v4545 = vsel %vm1724, %v4544, %v4535
      %v4546 = vsel %vm1733, %v4545, %v4538
      %4547 = vrot.lane.b32.xlu0 %v4407, 104
      %v4548 = vpop.permute.xlu0 %4547
      %4550 = vrot.lane.b32.xlu0 %v4408, 112
      %v4551 = vpop.permute.xlu0 %4550
      %4553 = vrot.lane.b32.xlu0 %v4409, 120
      %v4554 = vpop.permute.xlu0 %4553
      %4556 = vrot.lane.b32.xlu0 %v4411, 8
      %v4557 = vpop.permute.xlu0 %4556
      %4559 = vrot.lane.b32.xlu0 %v4412, 16
      %v4560 = vpop.permute.xlu0 %4559
      %4562 = vrot.lane.b32.xlu0 %v4413, 24
      %v4563 = vpop.permute.xlu0 %4562
      %4565 = vrot.lane.b32.xlu0 %v4414, 32
      %v4566 = vpop.permute.xlu0 %4565
      %v4568 = vsel %vm745, %v4548, %v4551
      %v4569 = vsel %vm391, %v4568, %v4554
      %v4570 = vsel %vm1697, %v4569, %v4410
      %v4571 = vsel %vm1706, %v4570, %v4557
      %v4572 = vsel %vm1715, %v4571, %v4560
      %v4573 = vsel %vm1724, %v4572, %v4563
      %v4574 = vsel %vm1733, %v4573, %v4566
      %4575 = vrot.lane.b32.xlu0 %v4407, 96
      %v4576 = vpop.permute.xlu0 %4575
      %4578 = vrot.lane.b32.xlu0 %v4408, 104
      %v4579 = vpop.permute.xlu0 %4578
      %4581 = vrot.lane.b32.xlu0 %v4409, 112
      %v4582 = vpop.permute.xlu0 %4581
      %4584 = vrot.lane.b32.xlu0 %v4410, 120
      %v4585 = vpop.permute.xlu0 %4584
      %4587 = vrot.lane.b32.xlu0 %v4412, 8
      %v4588 = vpop.permute.xlu0 %4587
      %4590 = vrot.lane.b32.xlu0 %v4413, 16
      %v4591 = vpop.permute.xlu0 %4590
      %4593 = vrot.lane.b32.xlu0 %v4414, 24
      %v4594 = vpop.permute.xlu0 %4593
      %v4596 = vsel %vm745, %v4576, %v4579
      %v4597 = vsel %vm391, %v4596, %v4582
      %v4598 = vsel %vm1697, %v4597, %v4585
      %v4599 = vsel %vm1706, %v4598, %v4411
      %v4600 = vsel %vm1715, %v4599, %v4588
      %v4601 = vsel %vm1724, %v4600, %v4591
      %v4602 = vsel %vm1733, %v4601, %v4594
      %4603 = vrot.lane.b32.xlu0 %v4407, 88
      %v4604 = vpop.permute.xlu0 %4603
      %4606 = vrot.lane.b32.xlu0 %v4408, 96
      %v4607 = vpop.permute.xlu0 %4606
      %4609 = vrot.lane.b32.xlu0 %v4409, 104
      %v4610 = vpop.permute.xlu0 %4609
      %4612 = vrot.lane.b32.xlu0 %v4410, 112
      %v4613 = vpop.permute.xlu0 %4612
      %4615 = vrot.lane.b32.xlu0 %v4411, 120
      %v4616 = vpop.permute.xlu0 %4615
      %4618 = vrot.lane.b32.xlu0 %v4413, 8
      %v4619 = vpop.permute.xlu0 %4618
      %4621 = vrot.lane.b32.xlu0 %v4414, 16
      %v4622 = vpop.permute.xlu0 %4621
      %v4624 = vsel %vm745, %v4604, %v4607
      %v4625 = vsel %vm391, %v4624, %v4610
      %v4626 = vsel %vm1697, %v4625, %v4613
      %v4627 = vsel %vm1706, %v4626, %v4616
      %v4628 = vsel %vm1715, %v4627, %v4412
      %v4629 = vsel %vm1724, %v4628, %v4619
      %v4630 = vsel %vm1733, %v4629, %v4622
      %4631 = vrot.lane.b32.xlu0 %v4407, 80
      %v4632 = vpop.permute.xlu0 %4631
      %4634 = vrot.lane.b32.xlu0 %v4408, 88
      %v4635 = vpop.permute.xlu0 %4634
      %4637 = vrot.lane.b32.xlu0 %v4409, 96
      %v4638 = vpop.permute.xlu0 %4637
      %4640 = vrot.lane.b32.xlu0 %v4410, 104
      %v4641 = vpop.permute.xlu0 %4640
      %4643 = vrot.lane.b32.xlu0 %v4411, 112
      %v4644 = vpop.permute.xlu0 %4643
      %4646 = vrot.lane.b32.xlu0 %v4412, 120
      %v4647 = vpop.permute.xlu0 %4646
      %4649 = vrot.lane.b32.xlu0 %v4414, 8
      %v4650 = vpop.permute.xlu0 %4649
      %v4652 = vsel %vm745, %v4632, %v4635
      %v4653 = vsel %vm391, %v4652, %v4638
      %v4654 = vsel %vm1697, %v4653, %v4641
      %v4655 = vsel %vm1706, %v4654, %v4644
      %v4656 = vsel %vm1715, %v4655, %v4647
      %v4657 = vsel %vm1724, %v4656, %v4413
      %v4658 = vsel %vm1733, %v4657, %v4650
      %4659 = vrot.lane.b32.xlu0 %v4407, 72
      %v4660 = vpop.permute.xlu0 %4659
      %4662 = vrot.lane.b32.xlu0 %v4408, 80
      %v4663 = vpop.permute.xlu0 %4662
      %4665 = vrot.lane.b32.xlu0 %v4409, 88
      %v4666 = vpop.permute.xlu0 %4665
      %4668 = vrot.lane.b32.xlu0 %v4410, 96
      %v4669 = vpop.permute.xlu0 %4668
      %4671 = vrot.lane.b32.xlu0 %v4411, 104
      %v4672 = vpop.permute.xlu0 %4671
      %4674 = vrot.lane.b32.xlu0 %v4412, 112
      %v4675 = vpop.permute.xlu0 %4674
      %4677 = vrot.lane.b32.xlu0 %v4413, 120
      %v4678 = vpop.permute.xlu0 %4677
      %v4680 = vsel %vm745, %v4660, %v4663
      %v4681 = vsel %vm391, %v4680, %v4666
      %v4682 = vsel %vm1697, %v4681, %v4669
      %v4683 = vsel %vm1706, %v4682, %v4672
      %v4684 = vsel %vm1715, %v4683, %v4675
      %v4685 = vsel %vm1724, %v4684, %v4678
      %v4686 = vsel %vm1733, %v4685, %v4414
      %4688 = vrot.lane.b32.xlu0 %v4440, 8
      %v4689 = vpop.permute.xlu0 %4688
      %4692 = vrot.lane.b32.xlu0 %v4441, 16
      %v4693 = vpop.permute.xlu0 %4692
      %4696 = vrot.lane.b32.xlu0 %v4442, 24
      %v4697 = vpop.permute.xlu0 %4696
      %4700 = vrot.lane.b32.xlu0 %v4443, 32
      %v4701 = vpop.permute.xlu0 %4700
      %4704 = vrot.lane.b32.xlu0 %v4444, 40
      %v4705 = vpop.permute.xlu0 %4704
      %4708 = vrot.lane.b32.xlu0 %v4445, 48
      %v4709 = vpop.permute.xlu0 %4708
      %4712 = vrot.lane.b32.xlu0 %v4446, 56
      %v4713 = vpop.permute.xlu0 %4712
      %v4715 = vsel %vm745, %v4439, %v4689
      %v4716 = vsel %vm391, %v4715, %v4693
      %v4717 = vsel %vm1697, %v4716, %v4697
      %v4718 = vsel %vm1706, %v4717, %v4701
      %v4719 = vsel %vm1715, %v4718, %v4705
      %v4720 = vsel %vm1724, %v4719, %v4709
      %v4721 = vsel %vm1733, %v4720, %v4713
      %4723 = vrot.lane.b32.xlu0 %v4439, 120
      %v4724 = vpop.permute.xlu0 %4723
      %4726 = vrot.lane.b32.xlu0 %v4441, 8
      %v4727 = vpop.permute.xlu0 %4726
      %4729 = vrot.lane.b32.xlu0 %v4442, 16
      %v4730 = vpop.permute.xlu0 %4729
      %4732 = vrot.lane.b32.xlu0 %v4443, 24
      %v4733 = vpop.permute.xlu0 %4732
      %4735 = vrot.lane.b32.xlu0 %v4444, 32
      %v4736 = vpop.permute.xlu0 %4735
      %4738 = vrot.lane.b32.xlu0 %v4445, 40
      %v4739 = vpop.permute.xlu0 %4738
      %4741 = vrot.lane.b32.xlu0 %v4446, 48
      %v4742 = vpop.permute.xlu0 %4741
      %v4744 = vsel %vm745, %v4724, %v4440
      %v4745 = vsel %vm391, %v4744, %v4727
      %v4746 = vsel %vm1697, %v4745, %v4730
      %v4747 = vsel %vm1706, %v4746, %v4733
      %v4748 = vsel %vm1715, %v4747, %v4736
      %v4749 = vsel %vm1724, %v4748, %v4739
      %v4750 = vsel %vm1733, %v4749, %v4742
      %4751 = vrot.lane.b32.xlu0 %v4439, 112
      %v4752 = vpop.permute.xlu0 %4751
      %4754 = vrot.lane.b32.xlu0 %v4440, 120
      %v4755 = vpop.permute.xlu0 %4754
      %4757 = vrot.lane.b32.xlu0 %v4442, 8
      %v4758 = vpop.permute.xlu0 %4757
      %4760 = vrot.lane.b32.xlu0 %v4443, 16
      %v4761 = vpop.permute.xlu0 %4760
      %4763 = vrot.lane.b32.xlu0 %v4444, 24
      %v4764 = vpop.permute.xlu0 %4763
      %4766 = vrot.lane.b32.xlu0 %v4445, 32
      %v4767 = vpop.permute.xlu0 %4766
      %4769 = vrot.lane.b32.xlu0 %v4446, 40
      %v4770 = vpop.permute.xlu0 %4769
      %v4772 = vsel %vm745, %v4752, %v4755
      %v4773 = vsel %vm391, %v4772, %v4441
      %v4774 = vsel %vm1697, %v4773, %v4758
      %v4775 = vsel %vm1706, %v4774, %v4761
      %v4776 = vsel %vm1715, %v4775, %v4764
      %v4777 = vsel %vm1724, %v4776, %v4767
      %v4778 = vsel %vm1733, %v4777, %v4770
      %4779 = vrot.lane.b32.xlu0 %v4439, 104
      %v4780 = vpop.permute.xlu0 %4779
      %4782 = vrot.lane.b32.xlu0 %v4440, 112
      %v4783 = vpop.permute.xlu0 %4782
      %4785 = vrot.lane.b32.xlu0 %v4441, 120
      %v4786 = vpop.permute.xlu0 %4785
      %4788 = vrot.lane.b32.xlu0 %v4443, 8
      %v4789 = vpop.permute.xlu0 %4788
      %4791 = vrot.lane.b32.xlu0 %v4444, 16
      %v4792 = vpop.permute.xlu0 %4791
      %4794 = vrot.lane.b32.xlu0 %v4445, 24
      %v4795 = vpop.permute.xlu0 %4794
      %4797 = vrot.lane.b32.xlu0 %v4446, 32
      %v4798 = vpop.permute.xlu0 %4797
      %v4800 = vsel %vm745, %v4780, %v4783
      %v4801 = vsel %vm391, %v4800, %v4786
      %v4802 = vsel %vm1697, %v4801, %v4442
      %v4803 = vsel %vm1706, %v4802, %v4789
      %v4804 = vsel %vm1715, %v4803, %v4792
      %v4805 = vsel %vm1724, %v4804, %v4795
      %v4806 = vsel %vm1733, %v4805, %v4798
      %4807 = vrot.lane.b32.xlu0 %v4439, 96
      %v4808 = vpop.permute.xlu0 %4807
      %4810 = vrot.lane.b32.xlu0 %v4440, 104
      %v4811 = vpop.permute.xlu0 %4810
      %4813 = vrot.lane.b32.xlu0 %v4441, 112
      %v4814 = vpop.permute.xlu0 %4813
      %4816 = vrot.lane.b32.xlu0 %v4442, 120
      %v4817 = vpop.permute.xlu0 %4816
      %4819 = vrot.lane.b32.xlu0 %v4444, 8
      %v4820 = vpop.permute.xlu0 %4819
      %4822 = vrot.lane.b32.xlu0 %v4445, 16
      %v4823 = vpop.permute.xlu0 %4822
      %4825 = vrot.lane.b32.xlu0 %v4446, 24
      %v4826 = vpop.permute.xlu0 %4825
      %v4828 = vsel %vm745, %v4808, %v4811
      %v4829 = vsel %vm391, %v4828, %v4814
      %v4830 = vsel %vm1697, %v4829, %v4817
      %v4831 = vsel %vm1706, %v4830, %v4443
      %v4832 = vsel %vm1715, %v4831, %v4820
      %v4833 = vsel %vm1724, %v4832, %v4823
      %v4834 = vsel %vm1733, %v4833, %v4826
      %4835 = vrot.lane.b32.xlu0 %v4439, 88
      %v4836 = vpop.permute.xlu0 %4835
      %4838 = vrot.lane.b32.xlu0 %v4440, 96
      %v4839 = vpop.permute.xlu0 %4838
      %4841 = vrot.lane.b32.xlu0 %v4441, 104
      %v4842 = vpop.permute.xlu0 %4841
      %4844 = vrot.lane.b32.xlu0 %v4442, 112
      %v4845 = vpop.permute.xlu0 %4844
      %4847 = vrot.lane.b32.xlu0 %v4443, 120
      %v4848 = vpop.permute.xlu0 %4847
      %4850 = vrot.lane.b32.xlu0 %v4445, 8
      %v4851 = vpop.permute.xlu0 %4850
      %4853 = vrot.lane.b32.xlu0 %v4446, 16
      %v4854 = vpop.permute.xlu0 %4853
      %v4856 = vsel %vm745, %v4836, %v4839
      %v4857 = vsel %vm391, %v4856, %v4842
      %v4858 = vsel %vm1697, %v4857, %v4845
      %v4859 = vsel %vm1706, %v4858, %v4848
      %v4860 = vsel %vm1715, %v4859, %v4444
      %v4861 = vsel %vm1724, %v4860, %v4851
      %v4862 = vsel %vm1733, %v4861, %v4854
      %4863 = vrot.lane.b32.xlu0 %v4439, 80
      %v4864 = vpop.permute.xlu0 %4863
      %4866 = vrot.lane.b32.xlu0 %v4440, 88
      %v4867 = vpop.permute.xlu0 %4866
      %4869 = vrot.lane.b32.xlu0 %v4441, 96
      %v4870 = vpop.permute.xlu0 %4869
      %4872 = vrot.lane.b32.xlu0 %v4442, 104
      %v4873 = vpop.permute.xlu0 %4872
      %4875 = vrot.lane.b32.xlu0 %v4443, 112
      %v4876 = vpop.permute.xlu0 %4875
      %4878 = vrot.lane.b32.xlu0 %v4444, 120
      %v4879 = vpop.permute.xlu0 %4878
      %4881 = vrot.lane.b32.xlu0 %v4446, 8
      %v4882 = vpop.permute.xlu0 %4881
      %v4884 = vsel %vm745, %v4864, %v4867
      %v4885 = vsel %vm391, %v4884, %v4870
      %v4886 = vsel %vm1697, %v4885, %v4873
      %v4887 = vsel %vm1706, %v4886, %v4876
      %v4888 = vsel %vm1715, %v4887, %v4879
      %v4889 = vsel %vm1724, %v4888, %v4445
      %v4890 = vsel %vm1733, %v4889, %v4882
      %4891 = vrot.lane.b32.xlu0 %v4439, 72
      %v4892 = vpop.permute.xlu0 %4891
      %4894 = vrot.lane.b32.xlu0 %v4440, 80
      %v4895 = vpop.permute.xlu0 %4894
      %4897 = vrot.lane.b32.xlu0 %v4441, 88
      %v4898 = vpop.permute.xlu0 %4897
      %4900 = vrot.lane.b32.xlu0 %v4442, 96
      %v4901 = vpop.permute.xlu0 %4900
      %4903 = vrot.lane.b32.xlu0 %v4443, 104
      %v4904 = vpop.permute.xlu0 %4903
      %4906 = vrot.lane.b32.xlu0 %v4444, 112
      %v4907 = vpop.permute.xlu0 %4906
      %4909 = vrot.lane.b32.xlu0 %v4445, 120
      %v4910 = vpop.permute.xlu0 %4909
      %v4912 = vsel %vm745, %v4892, %v4895
      %v4913 = vsel %vm391, %v4912, %v4898
      %v4914 = vsel %vm1697, %v4913, %v4901
      %v4915 = vsel %vm1706, %v4914, %v4904
      %v4916 = vsel %vm1715, %v4915, %v4907
      %v4917 = vsel %vm1724, %v4916, %v4910
      %v4918 = vsel %vm1733, %v4917, %v4446
      %v4919 = vpack.c.bf16 %v1735, %v1734
      %v4920 = vpack.c.bf16 %v1737, %v1736
      %v4921 = vpack.c.bf16 %v1739, %v1738
      %v4922 = vpack.c.bf16 %v1741, %v1740
      %v4923 = vpack.c.bf16 %v4518, %v4489
      %v4924 = vpack.c.bf16 %v4574, %v4546
      %v4925 = vpack.c.bf16 %v4630, %v4602
      %v4926 = vpack.c.bf16 %v4686, %v4658
      %v4927 = vpack.c.bf16 %v4750, %v4721
      %v4928 = vpack.c.bf16 %v4806, %v4778
      %v4929 = vpack.c.bf16 %v4862, %v4834
      %v4930 = vpack.c.bf16 %v4918, %v4890
      %4931 = vrot.lane.b32.xlu0 %v631, 124
      %v4932 = vpop.permute.xlu0 %4931
      %4933 = vrot.lane.b32.xlu0 %v632, 124
      %v4934 = vpop.permute.xlu0 %4933
      %4935 = vrot.lane.b32.xlu0 %v633, 124
      %v4936 = vpop.permute.xlu0 %4935
      %4937 = vrot.lane.b32.xlu0 %v634, 124
      %v4938 = vpop.permute.xlu0 %4937
      %vm4943 = vcmask 523264
      %v4945 = vsel %vm4943, %v4919, 0
      %v4948 = vsel %vm4943, %v4920, 0
      %v4951 = vsel %vm4943, %v4921, 0
      %v4954 = vsel %vm4943, %v4922, 0
      %v4957 = vsel %vm4943, %v4923, 0
      %v4960 = vsel %vm4943, %v4924, 0
      %v4963 = vsel %vm4943, %v4925, 0
      %v4966 = vsel %vm4943, %v4926, 0
      %v4969 = vsel %vm4943, %v4927, 0
      %v4972 = vsel %vm4943, %v4928, 0
      %v4975 = vsel %vm4943, %v4929, 0
      %v4978 = vsel %vm4943, %v4930, 0
      %4980 = vmatprep.subr.bf16.mxu0 0
      %4981 = vmatpush1.bf16.msra.mxu0 %v4932
      %4982 = vmatprep.subr.bf16.mxu0 0
      %4983 = vmatpush1.bf16.msra.mxu0 %v4934
      %4984 = vmatprep.subr.bf16.mxu0 0
      %4985 = vmatpush1.bf16.msra.mxu0 %v4936
      %4986 = vmatprep.subr.bf16.mxu0 0
      %4987 = vmatpush1.bf16.msra.mxu0 %v4938
      %4988 = vmatprep.subr.bf16.mxu0 0
      %4989 = vmatpush1.bf16.msra.mxu0 0
      %4990 = vmatprep.subr.bf16.mxu0 0
      %4991 = vmatpush1.bf16.msra.mxu0 0
      %4992 = vmatprep.subr.bf16.mxu0 0
      %4993 = vmatpush1.bf16.msra.mxu0 0
      %4994 = vmatprep.subr.bf16.mxu0 0
      %4995 = vmatpush1.bf16.msra.mxu0 0
      %4996 = vmatprep.subr.bf16.mxu0 0
      %4997 = vmatpush1.bf16.msra.mxu0 0
      %4998 = vmatprep.subr.bf16.mxu0 0
      %4999 = vmatpush1.bf16.msra.mxu0 0
      %5000 = vmatprep.subr.bf16.mxu0 0
      %5001 = vmatpush1.bf16.msra.mxu0 0
      %5002 = vmatprep.subr.bf16.mxu0 0
      %5003 = vmatpush1.bf16.msra.mxu0 0
      %5004 = vmatprep.subr.bf16.mxu0 0
      %5005 = vmatpush1.bf16.msra.mxu0 0
      %5006 = vmatprep.subr.bf16.mxu0 0
      %5007 = vmatpush1.bf16.msra.mxu0 0
      %5008 = vmatprep.subr.bf16.mxu0 0
      %5009 = vmatpush1.bf16.msra.mxu0 0
      %5010 = vmatprep.subr.bf16.mxu0 0
      %5011 = vmatpush1.bf16.msra.mxu0 0
      %5012 = vmatprep.mubr.bf16.mxu0 0
      %5013 = vmatmul.mubr.bf16.gmra.mrb[0].mxu0 %v4945
      %v5014 = vpop.f32.mrb[0].mxu0
      %v5015 = vadd.f32 0.0, %v5014
      %v5016 = vpop.f32.mrb[0].mxu0
      %v5017 = vpop.f32.mrb[0].mxu0
      %v5018 = vadd.f32 0.0, %v5017
      %v5019 = vpop.f32.mrb[0].mxu0
      %5020 = vmatprep.mubr.bf16.mxu0 0
      %5021 = vmatmul.mubr.bf16.gmra.mrb[0].mxu0 %v4948
      %v5022 = vpop.f32.mrb[0].mxu0
      %v5023 = vadd.f32 0.0, %v5022
      %v5024 = vpop.f32.mrb[0].mxu0
      %v5025 = vpop.f32.mrb[0].mxu0
      %v5026 = vadd.f32 0.0, %v5025
      %v5027 = vpop.f32.mrb[0].mxu0
      %5028 = vmatprep.mubr.bf16.mxu0 0
      %5029 = vmatmul.mubr.bf16.gmra.mrb[0].mxu0 %v4951
      %v5030 = vpop.f32.mrb[0].mxu0
      %v5031 = vadd.f32 0.0, %v5030
      %v5032 = vpop.f32.mrb[0].mxu0
      %v5033 = vpop.f32.mrb[0].mxu0
      %v5034 = vadd.f32 0.0, %v5033
      %v5035 = vpop.f32.mrb[0].mxu0
      %5036 = vmatprep.mubr.bf16.mxu0 0
      %5037 = vmatmul.mubr.bf16.gmra.mrb[0].mxu0 %v4954
      %v5038 = vpop.f32.mrb[0].mxu0
      %v5039 = vadd.f32 0.0, %v5038
      %v5040 = vpop.f32.mrb[0].mxu0
      %v5041 = vpop.f32.mrb[0].mxu0
      %v5042 = vadd.f32 0.0, %v5041
      %v5043 = vpop.f32.mrb[0].mxu0
      %5044 = vmatprep.mubr.bf16.mxu0 0
      %5045 = vmatmul.mubr.bf16.gmra.mrb[0].mxu0 %v4957
      %v5046 = vpop.f32.mrb[0].mxu0
      %v5047 = vadd.f32 0.0, %v5046
      %v5048 = vpop.f32.mrb[0].mxu0
      %v5049 = vpop.f32.mrb[0].mxu0
      %v5050 = vadd.f32 0.0, %v5049
      %v5051 = vpop.f32.mrb[0].mxu0
      %5052 = vmatprep.mubr.bf16.mxu0 0
      %5053 = vmatmul.mubr.bf16.gmra.mrb[0].mxu0 %v4960
      %v5054 = vpop.f32.mrb[0].mxu0
      %v5055 = vadd.f32 0.0, %v5054
      %v5056 = vpop.f32.mrb[0].mxu0
      %v5057 = vpop.f32.mrb[0].mxu0
      %v5058 = vadd.f32 0.0, %v5057
      %v5059 = vpop.f32.mrb[0].mxu0
      %5060 = vmatprep.mubr.bf16.mxu0 0
      %5061 = vmatmul.mubr.bf16.gmra.mrb[0].mxu0 %v4963
      %v5062 = vpop.f32.mrb[0].mxu0
      %v5063 = vadd.f32 0.0, %v5062
      %v5064 = vpop.f32.mrb[0].mxu0
      %v5065 = vpop.f32.mrb[0].mxu0
      %v5066 = vadd.f32 0.0, %v5065
      %v5067 = vpop.f32.mrb[0].mxu0
      %5068 = vmatprep.mubr.bf16.mxu0 0
      %5069 = vmatmul.mubr.bf16.gmra.mrb[0].mxu0 %v4966
      %v5070 = vpop.f32.mrb[0].mxu0
      %v5071 = vadd.f32 0.0, %v5070
      %v5072 = vpop.f32.mrb[0].mxu0
      %v5073 = vpop.f32.mrb[0].mxu0
      %v5074 = vadd.f32 0.0, %v5073
      %v5075 = vpop.f32.mrb[0].mxu0
      %5076 = vmatprep.mubr.bf16.mxu0 0
      %5077 = vmatmul.mubr.bf16.gmra.mrb[0].mxu0 %v4969
      %v5078 = vpop.f32.mrb[0].mxu0
      %v5079 = vadd.f32 0.0, %v5078
      %v5080 = vpop.f32.mrb[0].mxu0
      %v5081 = vpop.f32.mrb[0].mxu0
      %v5082 = vadd.f32 0.0, %v5081
      %v5083 = vpop.f32.mrb[0].mxu0
      %5084 = vmatprep.mubr.bf16.mxu0 0
      %5085 = vmatmul.mubr.bf16.gmra.mrb[0].mxu0 %v4972
      %v5086 = vpop.f32.mrb[0].mxu0
      %v5087 = vadd.f32 0.0, %v5086
      %v5088 = vpop.f32.mrb[0].mxu0
      %v5089 = vpop.f32.mrb[0].mxu0
      %v5090 = vadd.f32 0.0, %v5089
      %v5091 = vpop.f32.mrb[0].mxu0
      %5092 = vmatprep.mubr.bf16.mxu0 0
      %5093 = vmatmul.mubr.bf16.gmra.mrb[0].mxu0 %v4975
      %v5094 = vpop.f32.mrb[0].mxu0
      %v5095 = vadd.f32 0.0, %v5094
      %v5096 = vpop.f32.mrb[0].mxu0
      %v5097 = vpop.f32.mrb[0].mxu0
      %v5098 = vadd.f32 0.0, %v5097
      %v5099 = vpop.f32.mrb[0].mxu0
      %5100 = vmatprep.mubr.bf16.mxu0 0
      %5101 = vmatmul.mubr.bf16.gmra.mrb[0].mxu0 %v4978
      %v5102 = vpop.f32.mrb[0].mxu0
      %v5103 = vadd.f32 0.0, %v5102
      %v5104 = vpop.f32.mrb[0].mxu0
      %v5105 = vpop.f32.mrb[0].mxu0
      %v5106 = vadd.f32 0.0, %v5105
      %v5107 = vpop.f32.mrb[0].mxu0
      %5108 = vdwg.mxu0
      %5113 = vrot.lane.b32.xlu0 %v635, 124
      %v5114 = vpop.permute.xlu0 %5113
      %5115 = vrot.lane.b32.xlu0 %v636, 124
      %v5116 = vpop.permute.xlu0 %5115
      %5117 = vrot.lane.b32.xlu0 %v637, 124
      %v5118 = vpop.permute.xlu0 %5117
      %5119 = vrot.lane.b32.xlu0 %v638, 124
      %v5120 = vpop.permute.xlu0 %5119
      %5125 = vmatprep.subr.bf16.mxu0 0
      %5126 = vmatpush1.bf16.msra.mxu0 %v5114
      %5127 = vmatprep.subr.bf16.mxu0 0
      %5128 = vmatpush1.bf16.msra.mxu0 %v5116
      %5129 = vmatprep.subr.bf16.mxu0 0
      %5130 = vmatpush1.bf16.msra.mxu0 %v5118
      %5131 = vmatprep.subr.bf16.mxu0 0
      %5132 = vmatpush1.bf16.msra.mxu0 %v5120
      %5133 = vmatprep.subr.bf16.mxu0 0
      %5134 = vmatpush1.bf16.msra.mxu0 0
      %5135 = vmatprep.subr.bf16.mxu0 0
      %5136 = vmatpush1.bf16.msra.mxu0 0
      %5137 = vmatprep.subr.bf16.mxu0 0
      %5138 = vmatpush1.bf16.msra.mxu0 0
      %5139 = vmatprep.subr.bf16.mxu0 0
      %5140 = vmatpush1.bf16.msra.mxu0 0
      %5141 = vmatprep.subr.bf16.mxu0 0
      %5142 = vmatpush1.bf16.msra.mxu0 0
      %5143 = vmatprep.subr.bf16.mxu0 0
      %5144 = vmatpush1.bf16.msra.mxu0 0
      %5145 = vmatprep.subr.bf16.mxu0 0
      %5146 = vmatpush1.bf16.msra.mxu0 0
      %5147 = vmatprep.subr.bf16.mxu0 0
      %5148 = vmatpush1.bf16.msra.mxu0 0
      %5149 = vmatprep.subr.bf16.mxu0 0
      %5150 = vmatpush1.bf16.msra.mxu0 0
      %5151 = vmatprep.subr.bf16.mxu0 0
      %5152 = vmatpush1.bf16.msra.mxu0 0
      %5153 = vmatprep.subr.bf16.mxu0 0
      %5154 = vmatpush1.bf16.msra.mxu0 0
      %5155 = vmatprep.subr.bf16.mxu0 0
      %5156 = vmatpush1.bf16.msra.mxu0 0
      %5157 = vmatprep.mubr.bf16.mxu0 0
      %5158 = vmatmul.mubr.bf16.gmra.mrb[0].mxu0 %v4945
      %v5159 = vpop.f32.mrb[0].mxu0
      %v5160 = vadd.f32 0.0, %v5159
      %v5161 = vpop.f32.mrb[0].mxu0
      %v5162 = vpop.f32.mrb[0].mxu0
      %v5163 = vadd.f32 0.0, %v5162
      %v5164 = vpop.f32.mrb[0].mxu0
      %5165 = vmatprep.mubr.bf16.mxu0 0
      %5166 = vmatmul.mubr.bf16.gmra.mrb[0].mxu0 %v4948
      %v5167 = vpop.f32.mrb[0].mxu0
      %v5168 = vadd.f32 0.0, %v5167
      %v5169 = vpop.f32.mrb[0].mxu0
      %v5170 = vpop.f32.mrb[0].mxu0
      %v5171 = vadd.f32 0.0, %v5170
      %v5172 = vpop.f32.mrb[0].mxu0
      %5173 = vmatprep.mubr.bf16.mxu0 0
      %5174 = vmatmul.mubr.bf16.gmra.mrb[0].mxu0 %v4951
      %v5175 = vpop.f32.mrb[0].mxu0
      %v5176 = vadd.f32 0.0, %v5175
      %v5177 = vpop.f32.mrb[0].mxu0
      %v5178 = vpop.f32.mrb[0].mxu0
      %v5179 = vadd.f32 0.0, %v5178
      %v5180 = vpop.f32.mrb[0].mxu0
      %5181 = vmatprep.mubr.bf16.mxu0 0
      %5182 = vmatmul.mubr.bf16.gmra.mrb[0].mxu0 %v4954
      %v5183 = vpop.f32.mrb[0].mxu0
      %v5184 = vadd.f32 0.0, %v5183
      %v5185 = vpop.f32.mrb[0].mxu0
      %v5186 = vpop.f32.mrb[0].mxu0
      %v5187 = vadd.f32 0.0, %v5186
      %v5188 = vpop.f32.mrb[0].mxu0
      %5189 = vdwg.mxu0
      %v5190 = vld [vmem:[%s5] sm:$0xf]
      %v5191 = vld [vmem:[%s5 + $0x4] sm:$0xf]
      %v5192 = vld [vmem:[%s5 + $0x8] sm:$0xf]
      %v5193 = vld [vmem:[%s5 + $0xc] sm:$0xf]
      %v5194 = vld [vmem:[%s5 + $0x10] sm:$0xf]
      %v5195 = vld [vmem:[%s5 + $0x14] sm:$0xf]
      %v5196 = vld [vmem:[%s5 + $0x18] sm:$0xf]
      %v5197 = vld [vmem:[%s5 + $0x1c] sm:$0xf]
      %v5198 = vpack.c.bf16 %v5018, %v5015
      %v5199 = vpack.c.bf16 %v5026, %v5023
      %v5200 = vpack.c.bf16 %v5034, %v5031
      %v5201 = vpack.c.bf16 %v5042, %v5039
      %v5202 = vpack.c.bf16 %v5163, %v5160
      %v5203 = vpack.c.bf16 %v5171, %v5168
      %v5204 = vpack.c.bf16 %v5179, %v5176
      %v5205 = vpack.c.bf16 %v5187, %v5184
      %v5208 = vunpack.c.l.b16 %v5192
      %v5209 = vunpack.c.l.b16 %v5193
      %v5210 = vpack.c.b16 %v5209, %v5208
      %v5213 = vsel %vm391, %v5202, 0
      %v5216 = vsel %vm391, %v5203, 0
      %v5219 = vsel %vm391, %v5204, 0
      %v5222 = vsel %vm391, %v5205, 0
      %5224 = vmatprep.subr.bf16.mxu0 0
      %5225 = vmatpush1.bf16.msra.mxu0 %v5210
      %5226 = vmatprep.subr.bf16.mxu0 0
      %5227 = vmatpush1.bf16.msra.mxu0 0
      %5228 = vmatprep.subr.bf16.mxu0 0
      %5229 = vmatpush1.bf16.msra.mxu0 0
      %5230 = vmatprep.subr.bf16.mxu0 0
      %5231 = vmatpush1.bf16.msra.mxu0 0
      %5232 = vmatprep.subr.bf16.mxu0 0
      %5233 = vmatpush1.bf16.msra.mxu0 0
      %5234 = vmatprep.subr.bf16.mxu0 0
      %5235 = vmatpush1.bf16.msra.mxu0 0
      %5236 = vmatprep.subr.bf16.mxu0 0
      %5237 = vmatpush1.bf16.msra.mxu0 0
      %5238 = vmatprep.subr.bf16.mxu0 0
      %5239 = vmatpush1.bf16.msra.mxu0 0
      %5240 = vmatprep.subr.bf16.mxu0 0
      %5241 = vmatpush1.bf16.msra.mxu0 0
      %5242 = vmatprep.subr.bf16.mxu0 0
      %5243 = vmatpush1.bf16.msra.mxu0 0
      %5244 = vmatprep.subr.bf16.mxu0 0
      %5245 = vmatpush1.bf16.msra.mxu0 0
      %5246 = vmatprep.subr.bf16.mxu0 0
      %5247 = vmatpush1.bf16.msra.mxu0 0
      %5248 = vmatprep.subr.bf16.mxu0 0
      %5249 = vmatpush1.bf16.msra.mxu0 0
      %5250 = vmatprep.subr.bf16.mxu0 0
      %5251 = vmatpush1.bf16.msra.mxu0 0
      %5252 = vmatprep.subr.bf16.mxu0 0
      %5253 = vmatpush1.bf16.msra.mxu0 0
      %5254 = vmatprep.subr.bf16.mxu0 0
      %5255 = vmatpush1.bf16.msra.mxu0 0
      %5256 = vmatprep.mubr.bf16.mxu0 0
      %5257 = vmatmul.mubr.bf16.gmra.mrb[0].mxu0 %v5213
      %v5258 = vpop.f32.mrb[0].mxu0
      %v5259 = vadd.f32 0.0, %v5258
      %v5260 = vpop.f32.mrb[0].mxu0
      %v5261 = vpop.f32.mrb[0].mxu0
      %v5262 = vadd.f32 0.0, %v5261
      %v5263 = vpop.f32.mrb[0].mxu0
      %5264 = vmatprep.mubr.bf16.mxu0 0
      %5265 = vmatmul.mubr.bf16.gmra.mrb[0].mxu0 %v5216
      %v5266 = vpop.f32.mrb[0].mxu0
      %v5267 = vadd.f32 0.0, %v5266
      %v5268 = vpop.f32.mrb[0].mxu0
      %v5269 = vpop.f32.mrb[0].mxu0
      %v5270 = vadd.f32 0.0, %v5269
      %v5271 = vpop.f32.mrb[0].mxu0
      %5272 = vmatprep.mubr.bf16.mxu0 0
      %5273 = vmatmul.mubr.bf16.gmra.mrb[0].mxu0 %v5219
      %v5274 = vpop.f32.mrb[0].mxu0
      %v5275 = vadd.f32 0.0, %v5274
      %v5276 = vpop.f32.mrb[0].mxu0
      %v5277 = vpop.f32.mrb[0].mxu0
      %v5278 = vadd.f32 0.0, %v5277
      %v5279 = vpop.f32.mrb[0].mxu0
      %5280 = vmatprep.mubr.bf16.mxu0 0
      %5281 = vmatmul.mubr.bf16.gmra.mrb[0].mxu0 %v5222
      %v5282 = vpop.f32.mrb[0].mxu0
      %v5283 = vadd.f32 0.0, %v5282
      %v5284 = vpop.f32.mrb[0].mxu0
      %v5285 = vpop.f32.mrb[0].mxu0
      %v5286 = vadd.f32 0.0, %v5285
      %v5287 = vpop.f32.mrb[0].mxu0
      %5288 = vdwg.mxu0
      %v5291 = vunpack.c.l.b16 %v5190
      %v5292 = vunpack.c.l.b16 %v5191
      %v5293 = vpack.c.b16 %v5292, %v5291
      %v5296 = vsel %vm391, %v5198, 0
      %v5299 = vsel %vm391, %v5199, 0
      %v5302 = vsel %vm391, %v5200, 0
      %v5305 = vsel %vm391, %v5201, 0
      %5307 = vmatprep.subr.bf16.mxu0 0
      %5308 = vmatpush1.bf16.msra.mxu0 %v5293
      %5309 = vmatprep.subr.bf16.mxu0 0
      %5310 = vmatpush1.bf16.msra.mxu0 0
      %5311 = vmatprep.subr.bf16.mxu0 0
      %5312 = vmatpush1.bf16.msra.mxu0 0
      %5313 = vmatprep.subr.bf16.mxu0 0
      %5314 = vmatpush1.bf16.msra.mxu0 0
      %5315 = vmatprep.subr.bf16.mxu0 0
      %5316 = vmatpush1.bf16.msra.mxu0 0
      %5317 = vmatprep.subr.bf16.mxu0 0
      %5318 = vmatpush1.bf16.msra.mxu0 0
      %5319 = vmatprep.subr.bf16.mxu0 0
      %5320 = vmatpush1.bf16.msra.mxu0 0
      %5321 = vmatprep.subr.bf16.mxu0 0
      %5322 = vmatpush1.bf16.msra.mxu0 0
      %5323 = vmatprep.subr.bf16.mxu0 0
      %5324 = vmatpush1.bf16.msra.mxu0 0
      %5325 = vmatprep.subr.bf16.mxu0 0
      %5326 = vmatpush1.bf16.msra.mxu0 0
      %5327 = vmatprep.subr.bf16.mxu0 0
      %5328 = vmatpush1.bf16.msra.mxu0 0
      %5329 = vmatprep.subr.bf16.mxu0 0
      %5330 = vmatpush1.bf16.msra.mxu0 0
      %5331 = vmatprep.subr.bf16.mxu0 0
      %5332 = vmatpush1.bf16.msra.mxu0 0
      %5333 = vmatprep.subr.bf16.mxu0 0
      %5334 = vmatpush1.bf16.msra.mxu0 0
      %5335 = vmatprep.subr.bf16.mxu0 0
      %5336 = vmatpush1.bf16.msra.mxu0 0
      %5337 = vmatprep.subr.bf16.mxu0 0
      %5338 = vmatpush1.bf16.msra.mxu0 0
      %5339 = vmatprep.mubr.bf16.mxu0 0
      %5340 = vmatmul.mubr.bf16.gmra.mrb[0].mxu0 %v5296
      %v5341 = vpop.f32.mrb[0].mxu0
      %v5342 = vadd.f32 %v5259, %v5341
      %v5343 = vpop.f32.mrb[0].mxu0
      %v5344 = vpop.f32.mrb[0].mxu0
      %v5345 = vadd.f32 %v5262, %v5344
      %v5346 = vpop.f32.mrb[0].mxu0
      %5347 = vmatprep.mubr.bf16.mxu0 0
      %5348 = vmatmul.mubr.bf16.gmra.mrb[0].mxu0 %v5299
      %v5349 = vpop.f32.mrb[0].mxu0
      %v5350 = vadd.f32 %v5267, %v5349
      %v5351 = vpop.f32.mrb[0].mxu0
      %v5352 = vpop.f32.mrb[0].mxu0
      %v5353 = vadd.f32 %v5270, %v5352
      %v5354 = vpop.f32.mrb[0].mxu0
      %5355 = vmatprep.mubr.bf16.mxu0 0
      %5356 = vmatmul.mubr.bf16.gmra.mrb[0].mxu0 %v5302
      %v5357 = vpop.f32.mrb[0].mxu0
      %v5358 = vadd.f32 %v5275, %v5357
      %v5359 = vpop.f32.mrb[0].mxu0
      %v5360 = vpop.f32.mrb[0].mxu0
      %v5361 = vadd.f32 %v5278, %v5360
      %v5362 = vpop.f32.mrb[0].mxu0
      %5363 = vmatprep.mubr.bf16.mxu0 0
      %5364 = vmatmul.mubr.bf16.gmra.mrb[0].mxu0 %v5305
      %v5365 = vpop.f32.mrb[0].mxu0
      %v5366 = vadd.f32 %v5283, %v5365
      %v5367 = vpop.f32.mrb[0].mxu0
      %v5368 = vpop.f32.mrb[0].mxu0
      %v5369 = vadd.f32 %v5286, %v5368
      %v5370 = vpop.f32.mrb[0].mxu0
      %5371 = vdwg.mxu0
      %v5372 = vpack.c.bf16 %v5050, %v5047
      %v5373 = vpack.c.bf16 %v5058, %v5055
      %v5374 = vpack.c.bf16 %v5066, %v5063
      %v5375 = vpack.c.bf16 %v5074, %v5071
      %v5378 = vunpack.c.l.b16 %v5194
      %v5379 = vunpack.c.l.b16 %v5195
      %v5380 = vpack.c.b16 %v5379, %v5378
      %v5383 = vsel %vm391, %v5372, 0
      %v5386 = vsel %vm391, %v5373, 0
      %v5389 = vsel %vm391, %v5374, 0
      %v5392 = vsel %vm391, %v5375, 0
      %5394 = vmatprep.subr.bf16.mxu0 0
      %5395 = vmatpush1.bf16.msra.mxu0 %v5380
      %5396 = vmatprep.subr.bf16.mxu0 0
      %5397 = vmatpush1.bf16.msra.mxu0 0
      %5398 = vmatprep.subr.bf16.mxu0 0
      %5399 = vmatpush1.bf16.msra.mxu0 0
      %5400 = vmatprep.subr.bf16.mxu0 0
      %5401 = vmatpush1.bf16.msra.mxu0 0
      %5402 = vmatprep.subr.bf16.mxu0 0
      %5403 = vmatpush1.bf16.msra.mxu0 0
      %5404 = vmatprep.subr.bf16.mxu0 0
      %5405 = vmatpush1.bf16.msra.mxu0 0
      %5406 = vmatprep.subr.bf16.mxu0 0
      %5407 = vmatpush1.bf16.msra.mxu0 0
      %5408 = vmatprep.subr.bf16.mxu0 0
      %5409 = vmatpush1.bf16.msra.mxu0 0
      %5410 = vmatprep.subr.bf16.mxu0 0
      %5411 = vmatpush1.bf16.msra.mxu0 0
      %5412 = vmatprep.subr.bf16.mxu0 0
      %5413 = vmatpush1.bf16.msra.mxu0 0
      %5414 = vmatprep.subr.bf16.mxu0 0
      %5415 = vmatpush1.bf16.msra.mxu0 0
      %5416 = vmatprep.subr.bf16.mxu0 0
      %5417 = vmatpush1.bf16.msra.mxu0 0
      %5418 = vmatprep.subr.bf16.mxu0 0
      %5419 = vmatpush1.bf16.msra.mxu0 0
      %5420 = vmatprep.subr.bf16.mxu0 0
      %5421 = vmatpush1.bf16.msra.mxu0 0
      %5422 = vmatprep.subr.bf16.mxu0 0
      %5423 = vmatpush1.bf16.msra.mxu0 0
      %5424 = vmatprep.subr.bf16.mxu0 0
      %5425 = vmatpush1.bf16.msra.mxu0 0
      %5426 = vmatprep.mubr.bf16.mxu0 0
      %5427 = vmatmul.mubr.bf16.gmra.mrb[0].mxu0 %v5383
      %v5428 = vpop.f32.mrb[0].mxu0
      %v5429 = vadd.f32 0.0, %v5428
      %v5430 = vpop.f32.mrb[0].mxu0
      %v5431 = vpop.f32.mrb[0].mxu0
      %v5432 = vadd.f32 0.0, %v5431
      %v5433 = vpop.f32.mrb[0].mxu0
      %5434 = vmatprep.mubr.bf16.mxu0 0
      %5435 = vmatmul.mubr.bf16.gmra.mrb[0].mxu0 %v5386
      %v5436 = vpop.f32.mrb[0].mxu0
      %v5437 = vadd.f32 0.0, %v5436
      %v5438 = vpop.f32.mrb[0].mxu0
      %v5439 = vpop.f32.mrb[0].mxu0
      %v5440 = vadd.f32 0.0, %v5439
      %v5441 = vpop.f32.mrb[0].mxu0
      %5442 = vmatprep.mubr.bf16.mxu0 0
      %5443 = vmatmul.mubr.bf16.gmra.mrb[0].mxu0 %v5389
      %v5444 = vpop.f32.mrb[0].mxu0
      %v5445 = vadd.f32 0.0, %v5444
      %v5446 = vpop.f32.mrb[0].mxu0
      %v5447 = vpop.f32.mrb[0].mxu0
      %v5448 = vadd.f32 0.0, %v5447
      %v5449 = vpop.f32.mrb[0].mxu0
      %5450 = vmatprep.mubr.bf16.mxu0 0
      %5451 = vmatmul.mubr.bf16.gmra.mrb[0].mxu0 %v5392
      %v5452 = vpop.f32.mrb[0].mxu0
      %v5453 = vadd.f32 0.0, %v5452
      %v5454 = vpop.f32.mrb[0].mxu0
      %v5455 = vpop.f32.mrb[0].mxu0
      %v5456 = vadd.f32 0.0, %v5455
      %v5457 = vpop.f32.mrb[0].mxu0
      %5458 = vdwg.mxu0
      %v5459 = vadd.f32 %v5342, %v5429
      %v5460 = vadd.f32 %v5345, %v5432
      %v5461 = vadd.f32 %v5350, %v5437
      %v5462 = vadd.f32 %v5353, %v5440
      %v5463 = vadd.f32 %v5358, %v5445
      %v5464 = vadd.f32 %v5361, %v5448
      %v5465 = vadd.f32 %v5366, %v5453
      %v5466 = vadd.f32 %v5369, %v5456
      %v5467 = vpack.c.bf16 %v5082, %v5079
      %v5468 = vpack.c.bf16 %v5090, %v5087
      %v5469 = vpack.c.bf16 %v5098, %v5095
      %v5470 = vpack.c.bf16 %v5106, %v5103
      %v5473 = vunpack.c.l.b16 %v5196
      %v5474 = vunpack.c.l.b16 %v5197
      %v5475 = vpack.c.b16 %v5474, %v5473
      %v5478 = vsel %vm391, %v5467, 0
      %v5481 = vsel %vm391, %v5468, 0
      %v5484 = vsel %vm391, %v5469, 0
      %v5487 = vsel %vm391, %v5470, 0
      %5489 = vmatprep.subr.bf16.mxu0 0
      %5490 = vmatpush1.bf16.msra.mxu0 %v5475
      %5491 = vmatprep.subr.bf16.mxu0 0
      %5492 = vmatpush1.bf16.msra.mxu0 0
      %5493 = vmatprep.subr.bf16.mxu0 0
      %5494 = vmatpush1.bf16.msra.mxu0 0
      %5495 = vmatprep.subr.bf16.mxu0 0
      %5496 = vmatpush1.bf16.msra.mxu0 0
      %5497 = vmatprep.subr.bf16.mxu0 0
      %5498 = vmatpush1.bf16.msra.mxu0 0
      %5499 = vmatprep.subr.bf16.mxu0 0
      %5500 = vmatpush1.bf16.msra.mxu0 0
      %5501 = vmatprep.subr.bf16.mxu0 0
      %5502 = vmatpush1.bf16.msra.mxu0 0
      %5503 = vmatprep.subr.bf16.mxu0 0
      %5504 = vmatpush1.bf16.msra.mxu0 0
      %5505 = vmatprep.subr.bf16.mxu0 0
      %5506 = vmatpush1.bf16.msra.mxu0 0
      %5507 = vmatprep.subr.bf16.mxu0 0
      %5508 = vmatpush1.bf16.msra.mxu0 0
      %5509 = vmatprep.subr.bf16.mxu0 0
      %5510 = vmatpush1.bf16.msra.mxu0 0
      %5511 = vmatprep.subr.bf16.mxu0 0
      %5512 = vmatpush1.bf16.msra.mxu0 0
      %5513 = vmatprep.subr.bf16.mxu0 0
      %5514 = vmatpush1.bf16.msra.mxu0 0
      %5515 = vmatprep.subr.bf16.mxu0 0
      %5516 = vmatpush1.bf16.msra.mxu0 0
      %5517 = vmatprep.subr.bf16.mxu0 0
      %5518 = vmatpush1.bf16.msra.mxu0 0
      %5519 = vmatprep.subr.bf16.mxu0 0
      %5520 = vmatpush1.bf16.msra.mxu0 0
      %5521 = vmatprep.mubr.bf16.mxu0 0
      %5522 = vmatmul.mubr.bf16.gmra.mrb[0].mxu0 %v5478
      %v5523 = vpop.f32.mrb[0].mxu0
      %v5524 = vadd.f32 0.0, %v5523
      %v5525 = vpop.f32.mrb[0].mxu0
      %v5526 = vpop.f32.mrb[0].mxu0
      %v5527 = vadd.f32 0.0, %v5526
      %v5528 = vpop.f32.mrb[0].mxu0
      %5529 = vmatprep.mubr.bf16.mxu0 0
      %5530 = vmatmul.mubr.bf16.gmra.mrb[0].mxu0 %v5481
      %v5531 = vpop.f32.mrb[0].mxu0
      %v5532 = vadd.f32 0.0, %v5531
      %v5533 = vpop.f32.mrb[0].mxu0
      %v5534 = vpop.f32.mrb[0].mxu0
      %v5535 = vadd.f32 0.0, %v5534
      %v5536 = vpop.f32.mrb[0].mxu0
      %5537 = vmatprep.mubr.bf16.mxu0 0
      %5538 = vmatmul.mubr.bf16.gmra.mrb[0].mxu0 %v5484
      %v5539 = vpop.f32.mrb[0].mxu0
      %v5540 = vadd.f32 0.0, %v5539
      %v5541 = vpop.f32.mrb[0].mxu0
      %v5542 = vpop.f32.mrb[0].mxu0
      %v5543 = vadd.f32 0.0, %v5542
      %v5544 = vpop.f32.mrb[0].mxu0
      %5545 = vmatprep.mubr.bf16.mxu0 0
      %5546 = vmatmul.mubr.bf16.gmra.mrb[0].mxu0 %v5487
      %v5547 = vpop.f32.mrb[0].mxu0
      %v5548 = vadd.f32 0.0, %v5547
      %v5549 = vpop.f32.mrb[0].mxu0
      %v5550 = vpop.f32.mrb[0].mxu0
      %v5551 = vadd.f32 0.0, %v5550
      %v5552 = vpop.f32.mrb[0].mxu0
      %5553 = vdwg.mxu0
      %v5554 = vadd.f32 %v5459, %v5524
      %v5555 = vadd.f32 %v5460, %v5527
      %v5556 = vadd.f32 %v5461, %v5532
      %v5557 = vadd.f32 %v5462, %v5535
      %v5558 = vadd.f32 %v5463, %v5540
      %v5559 = vadd.f32 %v5464, %v5543
      %v5560 = vadd.f32 %v5465, %v5548
      %v5561 = vadd.f32 %v5466, %v5551
      %v5562 = vld [vmem:[%s6] sm:$0x1]
      %v5564 = vlaneseq
      %v5565 = vshrl.u32 %v5564, 7
      %v5566 = vsub.s32 0, %v5565
      %v5567 = vrot.slane %v5562, %v5566
      %v5569 = vadd.f32 %v5554, %v5567
      %v5570 = vadd.f32 %v5555, %v5567
      %v5571 = vadd.f32 %v5556, %v5567
      %v5572 = vadd.f32 %v5557, %v5567
      %v5573 = vadd.f32 %v5558, %v5567
      %v5574 = vadd.f32 %v5559, %v5567
      %v5575 = vadd.f32 %v5560, %v5567
      %v5576 = vadd.f32 %v5561, %v5567
      %s5577 = sld [smem:[#allocation2]]
      %v5578 = vstv %s5577
      %v5579 = vmul.f32 %v5578, %v5569
      %v5580 = vmul.f32 %v5578, %v5570
      %v5581 = vmul.f32 %v5578, %v5571
      %v5582 = vmul.f32 %v5578, %v5572
      %v5583 = vmul.f32 %v5578, %v5573
      %v5584 = vmul.f32 %v5578, %v5574
      %v5585 = vmul.f32 %v5578, %v5575
      %v5586 = vmul.f32 %v5578, %v5576
      %v5587 = vadd.f32 %v5579, %v348
      %v5588 = vadd.f32 %v5580, %v349
      %v5589 = vadd.f32 %v5581, %v350
      %v5590 = vadd.f32 %v5582, %v351
      %v5591 = vadd.f32 %v5583, %v352
      %v5592 = vadd.f32 %v5584, %v353
      %v5593 = vadd.f32 %v5585, %v354
      %v5594 = vadd.f32 %v5586, %v355
      %5595 = vst.msk [vmem:[%s346] sm:$0xff] %vm391, %v5587
      %5596 = vst.msk [vmem:[%s346 + $0x8] sm:$0xff] %vm391, %v5588
      %5597 = vst.msk [vmem:[%s346 + $0x10] sm:$0xff] %vm391, %v5589
      %5598 = vst.msk [vmem:[%s346 + $0x18] sm:$0xff] %vm391, %v5590
      %5599 = vst.msk [vmem:[%s346 + $0x20] sm:$0xff] %vm391, %v5591
      %5600 = vst.msk [vmem:[%s346 + $0x28] sm:$0xff] %vm391, %v5592
      %5601 = vst.msk [vmem:[%s346 + $0x30] sm:$0xff] %vm391, %v5593
      %5602 = vst.msk [vmem:[%s346 + $0x38] sm:$0xff] %vm391, %v5594
      %p5603 = scmp.lt.s32.totalorder %s20, 1
      %s5604 = scalar_select %p5603, %s20, 1
      %s5605 = smul.addr %s5604, 8
      %s5606 = smul.addr %s5605, 8
      %s5607 = scalar_lea.vmem %s8, %s5606
      // Predicated region
      $region53: #{tpu_custom_call.1} parent=51 // pred_check
        %p5608 = pneg %p221
      $region54: #{tpu_custom_call.1} parent=51 // pred_check_branch
        %5610 = sbr.rel (%p5608) target = $region56
      $region55: #{tpu_custom_call.1} parent=51 // pred_region
        _
      $region56: #{tpu_custom_call.1} parent=51 // pred_fallthru
        _
    $region52: #{tpu_custom_call.1} parent=5 // pred_fallthru
      _
    %p5611 = scmp.le.s32.totalorder 2, %s15
    // Predicated region
    $region57: #{tpu_custom_call.1} parent=5 // pred_check
      %p5612 = pneg %p5611
    $region58: #{tpu_custom_call.1} parent=5 // pred_check_branch
      %5614 = sbr.rel (%p5612) target = $region60
    $region59: #{tpu_custom_call.1} parent=5 // pred_region
      %s5615 = ssub.s32 %s15, 2
      // Predicated region
      $region61: #{tpu_custom_call.1} parent=59 // pred_check
        %p5616 = pneg %p227
      $region62: #{tpu_custom_call.1} parent=59 // pred_check_branch
        %5618 = sbr.rel (%p5616) target = $region64
      $region63: #{tpu_custom_call.1} parent=59 // pred_region
        %p5619 = scmp.lt.s32.totalorder %s21, 1
        %s5620 = scalar_select %p5619, %s21, 1
        %s5621 = smul.addr %s5620, 8
        %s5622 = smul.addr %s5621, 8
        %s5623 = scalar_lea.vmem %s8, %s5622
      $region64: #{tpu_custom_call.1} parent=59 // pred_fallthru
        _
    $region60: #{tpu_custom_call.1} parent=5 // pred_fallthru
      _
  $region6: #{tpu_custom_call.1} parent=0 // loop_footer
    %s19 = sadd.s32 1, %s15
  $region7: #{tpu_custom_call.1} parent=0 // loop_footer_branch
    %14 = sbr.rel target = $region3
  $region8: #{tpu_custom_call.1} parent=0 // loop_exit
    _

</llo_original>
